<compile_context>
chip_gen: v7x
topology: tpu7x:2x2x1
jax: 0.10.0
libtpu: 0.0.40
codegen_flags: <defaults>
</compile_context>

<pallas_src>
import jax
import jax.numpy as jnp
from jax.experimental import pallas as pl
from jax.experimental.pallas import tpu as pltpu

# ---- AC_Args (mirrors the PyTorch config) ----------------------------------
ACTOR_HIDDEN = [512, 256, 128]
CRITIC_HIDDEN = [512, 256, 128]
# TODO(synk): EstimationModule source not provided; assumed MLP with hidden dims
# [256, 128], ELU activations, linear output of size num_privileged_obs.
EST_HIDDEN = [256, 128]
INIT_NOISE_STD = 1.0


def _round_up(x, m):
    return ((x + m - 1) // m) * m


def _elu(x):
    # nn.ELU(alpha=1): exp(min(x,0)) - 1 avoids inf on the discarded branch and keeps the
    # transcendental on the EUP slot.  Works in f32 or bf16.
    return jnp.where(x > 0, x, jnp.exp(jnp.minimum(x, 0)) - 1)


def _default_elementwise_dtype():
    # bf16-native VPU/EUP on v6e / v7x; keep elementwise math in f32 on v5e and older.
    try:
        kind = jax.devices()[0].device_kind.lower()
    except Exception:
        return jnp.float32
    if "v6" in kind or "v7" in kind:
        return jnp.bfloat16
    return jnp.float32


# ----------------------------------------------------------------------------
# Parameter init (PyTorch-default-like) and packing into kernel operands.
# ----------------------------------------------------------------------------
def init_params(key, num_obs_history, num_privileged_obs, num_actions):
    """Logical (f32) parameters, same shapes/semantics as the PyTorch module."""
    def linear(k, fan_in, fan_out):
        kw, kb = jax.random.split(k)
        bound = 1.0 / (fan_in ** 0.5)
        w = jax.random.uniform(kw, (fan_in, fan_out), jnp.float32, -bound, bound)
        b = jax.random.uniform(kb, (1, fan_out), jnp.float32, -bound, bound)
        return w, b

    H, P, A = num_obs_history, num_privileged_obs, num_actions
    keys = jax.random.split(key, 11)
    p = {}
    # estimation module: H -> 256 -> 128 -> P
    p["ew1"], p["eb1"] = linear(keys[0], H, EST_HIDDEN[0])
    p["ew2"], p["eb2"] = linear(keys[1], EST_HIDDEN[0], EST_HIDDEN[1])
    p["ew3"], p["eb3"] = linear(keys[2], EST_HIDDEN[1], P)
    # actor: (H + P) -> 512 -> 256 -> 128 -> A    (input order = cat(obs_history, latent))
    p["aw1"], p["ab1"] = linear(keys[3], H + P, ACTOR_HIDDEN[0])
    p["aw2"], p["ab2"] = linear(keys[4], ACTOR_HIDDEN[0], ACTOR_HIDDEN[1])
    p["aw3"], p["ab3"] = linear(keys[5], ACTOR_HIDDEN[1], ACTOR_HIDDEN[2])
    p["aw4"], p["ab4"] = linear(keys[6], ACTOR_HIDDEN[2], A)
    # critic: (H + P) -> 512 -> 256 -> 128 -> 1   (input order = cat(obs_history, priv_obs))
    p["cw1"], p["cb1"] = linear(keys[7], H + P, CRITIC_HIDDEN[0])
    p["cw2"], p["cb2"] = linear(keys[8], CRITIC_HIDDEN[0], CRITIC_HIDDEN[1])
    p["cw3"], p["cb3"] = linear(keys[9], CRITIC_HIDDEN[1], CRITIC_HIDDEN[2])
    p["cw4"], p["cb4"] = linear(keys[10], CRITIC_HIDDEN[2], 1)
    # std parameter (Normal distribution scale; host-side, not part of the kernel)
    p["std"] = INIT_NOISE_STD * jnp.ones((A,), jnp.float32)
    return p


def _bias_layout(out_w):
    """(offset, width) for each segment of the fused bias vector (all 128-aligned)."""
    widths = [("b_in", EST_HIDDEN[0] + ACTOR_HIDDEN[0] + CRITIC_HIDDEN[0]),  # eb1|ab1|cb1
              ("eb2", EST_HIDDEN[1]),
              ("ab2", ACTOR_HIDDEN[1]), ("ab3", ACTOR_HIDDEN[2]),
              ("cb2", CRITIC_HIDDEN[1]), ("cb3", CRITIC_HIDDEN[2]),
              ("out", out_w)]
    offs, cur = {}, 0
    for name, w in widths:
        offs[name] = (cur, w)
        cur += w
    return offs, cur


def pack_params(params, num_obs_history, num_privileged_obs, num_actions):
    """Pack the 24 logical tensors into 8 kernel operands (bf16 weights, fused f32 biases)."""
    H, P, A = num_obs_history, num_privileged_obs, num_actions
    assert ACTOR_HIDDEN == CRITIC_HIDDEN, "stacking assumes identical actor/critic dims"
    assert EST_HIDDEN == ACTOR_HIDDEN[1:], "stacking assumes estimator dims == actor tail dims"
    E0, E1 = EST_HIDDEN
    A0, A1, A2 = ACTOR_HIDDEN
    C0, C1, C2 = CRITIC_HIDDEN
    out_w = _round_up(P + A + 1, 128)          # packed output slab width (lane-dense)
    bf16 = jnp.bfloat16
    b = lambda w: w.astype(bf16)

    # Fused first layer: one (H+P, E0+A0+C0) weight.  Rows [H:H+P) are zero for the estimator
    # and actor columns, so a single matmul against cat(obs_history, privileged_obs) reproduces
    # mm(obs, ew1) | mm(obs, aw1[:H]) | mm(cat(obs, priv), cw1).
    w_in = jnp.zeros((H + P, E0 + A0 + C0), bf16)
    w_in = w_in.at[:H, :E0].set(b(params["ew1"]))
    w_in = w_in.at[:H, E0:E0 + A0].set(b(params["aw1"][:H]))
    w_in = w_in.at[:, E0 + A0:].set(b(params["cw1"]))

    # Latent -> actor-first-layer contribution, indexed by the packed lat_slab columns.
    aw1l = jnp.zeros((out_w, A0), bf16).at[:P].set(b(params["aw1"][H:]))

    w2 = jnp.stack([b(params["aw2"]), b(params["cw2"])])                    # (2, 512, 256)
    w3 = jnp.stack([b(params["ew2"]), b(params["aw3"]), b(params["cw3"])])  # (3, 256, 128)

    # Estimator output head -> lat_slab columns [0:P).
    ew3 = jnp.zeros((E1, out_w), bf16).at[:, :P].set(b(params["ew3"]))
    # Fused actor/critic output heads: rows [0:A2) actor -> cols [P:P+A),
    # rows [A2:A2+C2) critic -> col P+A.
    w4ac = (jnp.zeros((A2 + C2, out_w), bf16)
            .at[:A2, P:P + A].set(b(params["aw4"]))
            .at[A2:, P + A:P + A + 1].set(b(params["cw4"])))

    # Output-slab bias: latent bias + actor/critic head biases folded in once (via lat_slab).
    out_bias = (jnp.zeros((out_w,), jnp.float32)
                .at[:P].set(params["eb3"][0])
                .at[P:P + A].set(params["ab4"][0])
                .at[P + A].set(params["cb4"][0, 0]))
    # Safety (per review): the head-bias fold is only correct because aw1l rows [P:) are exactly
    # zero, so lat_slab columns >= P never leak into the actor's first layer.
    assert P + A + 1 <= out_w
    assert bool(jnp.all(aw1l[P:] == 0))

    bias = jnp.concatenate([
        params["eb1"][0], params["ab1"][0], params["cb1"][0],   # "b_in"
        params["eb2"][0],
        params["ab2"][0], params["ab3"][0],
        params["cb2"][0], params["cb3"][0],
        out_bias,
    ])[None, :]                                                  # (1, total) f32
    offs, total = _bias_layout(out_w)
    assert bias.shape == (1, total)
    return dict(w_in=w_in, aw1l=aw1l, w2=w2, w3=w3, ew3=ew3, w4ac=w4ac, bias=bias)


# ----------------------------------------------------------------------------
# Fused forward pass.
# ----------------------------------------------------------------------------
def actor_critic_forward(obs_history, privileged_obs, packed,
                         num_privileged_obs, num_actions, *,
                         block_m=512, elementwise_dtype=None):
    """Returns (latent, action_mean, value)."""
    if elementwise_dtype is None:
        elementwise_dtype = _default_elementwise_dtype()
    ew_dtype = elementwise_dtype
    assert block_m % 128 == 0 and block_m > 0

    B, H = obs_history.shape
    P, A = num_privileged_obs, num_actions
    E0, E1 = EST_HIDDEN
    A0, A1, A2 = ACTOR_HIDDEN
    C0, C1, C2 = CRITIC_HIDDEN
    in_w = H + P
    out_w = packed["ew3"].shape[-1]
    assert packed["w_in"].shape == (in_w, E0 + A0 + C0)
    offs, total_b = _bias_layout(out_w)
    assert packed["bias"].shape == (1, total_b)

    # Batch tiling: big tiles amortize the ~0.35 us per-grid-step overhead, but keep >= 2 grid
    # steps when the batch allows so the "parallel" axis can shard across v7x's 2 TensorCores.
    block_m = max(128, min(block_m, _round_up(-(-B // 2), 128)))
    b_pad = _round_up(B, block_m)
    n_tiles = b_pad // block_m

    # Fold torch.cat into one streamed bf16 input (halves input DMA bytes, denser rows).
    x = jnp.concatenate([obs_history, privileged_obs], axis=-1).astype(jnp.bfloat16)
    if b_pad != B:
        x = jnp.pad(x, ((0, b_pad - B), (0, 0)))

    def bslice(b_ref, name):
        o, w = offs[name]
        return b_ref[:, o:o + w]            # (1, w) f32, static lane-aligned slice

    def kernel(x_ref, w_in_ref, aw1l_ref, w2_ref, w3_ref, ew3_ref, w4ac_ref, b_ref, out_ref):
        f32, bf16 = jnp.float32, jnp.bfloat16

        def mm(lhs, rhs):
            return jnp.dot(lhs, rhs, preferred_element_type=f32)

        def act(pre_f32):
            # bias/accumulate in f32; nonlinearity in ew_dtype (bf16 on v6e/v7x, f32 on v5e);
            # cast to bf16 for the next MXU matmul.
            return _elu(pre_f32.astype(ew_dtype)).astype(bf16)

        xt = x_ref[...]                                             # (bm, H+P) bf16

        # Fused first layer: estimator | actor(obs part) | critic pre-activations, one matmul.
        h1 = mm(xt, w_in_ref[...]) + bslice(b_ref, "b_in")          # (bm, 1280) f32

        # --- estimation module -> lat_slab: cols [0:P) latent; cols >= P carry the folded
        #     actor/critic output-head biases (ignored by aw1l, whose rows >= P are zero).
        e = act(h1[:, :E0])
        e = act(mm(e, w3_ref[0]) + bslice(b_ref, "eb2"))
        lat_slab = mm(e, ew3_ref[...]) + bslice(b_ref, "out")       # (bm, out_w) f32

        # --- actor body: cat(obs_history, latent) -> action mean
        a = act(h1[:, E0:E0 + A0] + mm(lat_slab.astype(bf16), aw1l_ref[...]))
        a = act(mm(a, w2_ref[0]) + bslice(b_ref, "ab2"))
        a = act(mm(a, w3_ref[1]) + bslice(b_ref, "ab3"))

        # --- critic body: cat(obs_history, privileged_obs) -> value
        c = act(h1[:, E0 + A0:])
        c = act(mm(c, w2_ref[1]) + bslice(b_ref, "cb2"))
        c = act(mm(c, w3_ref[2]) + bslice(b_ref, "cb3"))

        # --- fused actor/critic output heads: [a | c] (bm, 256) @ (256, out_w) in one MXU pass.
        ac = jnp.concatenate([a, c], axis=-1)                       # lane-aligned concat
        out_ref[...] = lat_slab + mm(ac, w4ac_ref[...])             # dense lane-aligned store

    def resident(arr):
        # Constant index_map -> parameter DMA'd once, stays VMEM-resident across grid steps.
        shape = tuple(arr.shape)
        return pl.BlockSpec(shape, lambda i: (0,) * len(shape))

    macs_per_row = (in_w * (E0 + A0 + C0) + E0 * E1 + E1 * out_w + out_w * A0
                    + A0 * A1 + A1 * A2 + C0 * C1 + C1 * C2 + (A2 + C2) * out_w)
    weight_bytes = sum(int(v.size) * v.dtype.itemsize for v in packed.values())
    cost = pl.CostEstimate(
        flops=2 * b_pad * macs_per_row,
        transcendentals=b_pad * (E0 + E1 + A0 + A1 + A2 + C0 + C1 + C2),
        bytes_accessed=int(weight_bytes + b_pad * (in_w * 2 + out_w * 4)),
    )

    # Only raise the scoped-VMEM limit when a very large block_m needs it; stay well below
    # v7x's 64 MiB physical VMEM.
    vmem_est = (2 * weight_bytes
                + 2 * block_m * (in_w * 2 + out_w * 4)
                + block_m * 4 * (E0 + A0 + C0 + A0 + A1 + C1 + 2 * out_w))
    vmem_limit = None
    if vmem_est > 24 * 1024 * 1024:
        vmem_limit = int(min(2 * vmem_est, 56 * 1024 * 1024))

    slab = pl.pallas_call(
        kernel,
        out_shape=jax.ShapeDtypeStruct((b_pad, out_w), jnp.float32),
        grid_spec=pltpu.PrefetchScalarGridSpec(
            num_scalar_prefetch=0,
            grid=(n_tiles,),
            in_specs=[
                pl.BlockSpec((block_m, in_w), lambda i: (i, 0)),   # streamed cat(obs, priv) tile
                resident(packed["w_in"]),
                resident(packed["aw1l"]),
                resident(packed["w2"]),
                resident(packed["w3"]),
                resident(packed["ew3"]),
                resident(packed["w4ac"]),
                resident(packed["bias"]),
            ],
            out_specs=pl.BlockSpec((block_m, out_w), lambda i: (i, 0)),
        ),
        compiler_params=pltpu.CompilerParams(
            dimension_semantics=("parallel",),
            vmem_limit_bytes=vmem_limit),
        cost_estimate=cost,
    )(x, packed["w_in"], packed["aw1l"], packed["w2"], packed["w3"],
      packed["ew3"], packed["w4ac"], packed["bias"])

    latent = slab[:B, :P]
    mean = slab[:B, P:P + A]
    value = slab[:B, P + A:P + A + 1]
    return latent, mean, value


# ----------------------------------------------------------------------------
# Pure-JAX reference (mirrors the kernel's bf16-weight / f32-accumulation math
# and the same elementwise dtype so the comparison is apples-to-apples).
# ----------------------------------------------------------------------------
def reference_forward(obs, priv, params, elementwise_dtype=jnp.float32):
    bf16, f32 = jnp.bfloat16, jnp.float32

    def mm(x, w):
        return jnp.dot(x.astype(bf16), w.astype(bf16), preferred_element_type=f32)

    def act(y):
        return _elu(y.astype(elementwise_dtype)).astype(f32)

    h = act(mm(obs, params["ew1"]) + params["eb1"])
    h = act(mm(h, params["ew2"]) + params["eb2"])
    latent = mm(h, params["ew3"]) + params["eb3"]
    xa = jnp.concatenate([obs, latent], axis=-1)
    a = act(mm(xa, params["aw1"]) + params["ab1"])
    a = act(mm(a, params["aw2"]) + params["ab2"])
    a = act(mm(a, params["aw3"]) + params["ab3"])
    mean = mm(a, params["aw4"]) + params["ab4"]
    xc = jnp.concatenate([obs, priv], axis=-1)
    c = act(mm(xc, params["cw1"]) + params["cb1"])
    c = act(mm(c, params["cw2"]) + params["cb2"])
    c = act(mm(c, params["cw3"]) + params["cb3"])
    value = mm(c, params["cw4"]) + params["cb4"]
    return latent, mean, value


if __name__ == "__main__":
    # Small shapes consistent with the module's forward.
    batch = 8
    num_obs_history = 48      # flattened observation-history vector
    num_privileged_obs = 16   # latent / privileged-obs dim
    num_actions = 12

    key = jax.random.PRNGKey(0)
    k_param, k_obs, k_priv = jax.random.split(key, 3)
    params = init_params(k_param, num_obs_history, num_privileged_obs, num_actions)
    packed = pack_params(params, num_obs_history, num_privileged_obs, num_actions)

    obs_history = jax.random.normal(k_obs, (batch, num_obs_history), jnp.float32)
    privileged_obs = jax.random.normal(k_priv, (batch, num_privileged_obs), jnp.float32)

    ew_dtype = _default_elementwise_dtype()
    fwd = jax.jit(lambda o, p, pk: actor_critic_forward(
        o, p, pk, num_privileged_obs, num_actions, elementwise_dtype=ew_dtype))
    latent, action_mean, value = jax.block_until_ready(
        fwd(obs_history, privileged_obs, packed))

    # update_distribution semantics: Normal(mean, mean*0 + std)
    action_std = action_mean * 0.0 + params["std"]
    # TODO(synk): Normal.sample / log_prob / entropy are host-side distribution ops,
    # fully determined by (mean, std) above; not kernel compute.

    assert latent.shape == (batch, num_privileged_obs)
    assert action_mean.shape == (batch, num_actions)
    assert action_std.shape == (batch, num_actions)
    assert value.shape == (batch, 1)
    assert bool(jnp.all(jnp.isfinite(action_mean))) and bool(jnp.all(jnp.isfinite(value)))

    ref_lat, ref_mean, ref_val = reference_forward(
        obs_history, privileged_obs, params, elementwise_dtype=ew_dtype)
    assert bool(jnp.allclose(latent, ref_lat, atol=3e-2, rtol=3e-2))
    assert bool(jnp.allclose(action_mean, ref_mean, atol=3e-2, rtol=3e-2))
    assert bool(jnp.allclose(value, ref_val, atol=3e-2, rtol=3e-2))
    print("KERNEL_OK")
</pallas_src>

<mosaic_0001>
module attributes {stable_mosaic.version = 11 : i64} {
  func.func @kernel(%arg0: i32, %arg1: memref<128x64xbf16, #tpu.memory_space<vmem>>, %arg2: memref<64x1280xbf16, #tpu.memory_space<vmem>>, %arg3: memref<128x512xbf16, #tpu.memory_space<vmem>>, %arg4: memref<2x512x256xbf16, #tpu.memory_space<vmem>>, %arg5: memref<3x256x128xbf16, #tpu.memory_space<vmem>>, %arg6: memref<128x128xbf16, #tpu.memory_space<vmem>>, %arg7: memref<256x128xbf16, #tpu.memory_space<vmem>>, %arg8: memref<1x2304xf32, #tpu.memory_space<vmem>>, %arg9: memref<128x128xf32, #tpu.memory_space<vmem>>) attributes {dimension_semantics = [#tpu.dimension_semantics<parallel>], iteration_bounds = array<i64: 1>, scalar_prefetch = 0 : i64, scratch_operands = 0 : i64, tpu.core_type = #tpu.core_type<tc>, window_params = [{transform_indices = @transform_0, window_bounds = array<i64: 128, 64>}, {pipeline_mode = #tpu.pipeline_mode<synchronous>, transform_indices = @transform_1, window_bounds = array<i64: 64, 1280>}, {pipeline_mode = #tpu.pipeline_mode<synchronous>, transform_indices = @transform_2, window_bounds = array<i64: 128, 512>}, {pipeline_mode = #tpu.pipeline_mode<synchronous>, transform_indices = @transform_3, window_bounds = array<i64: 2, 512, 256>}, {pipeline_mode = #tpu.pipeline_mode<synchronous>, transform_indices = @transform_4, window_bounds = array<i64: 3, 256, 128>}, {pipeline_mode = #tpu.pipeline_mode<synchronous>, transform_indices = @transform_5, window_bounds = array<i64: 128, 128>}, {pipeline_mode = #tpu.pipeline_mode<synchronous>, transform_indices = @transform_6, window_bounds = array<i64: 256, 128>}, {pipeline_mode = #tpu.pipeline_mode<synchronous>, transform_indices = @transform_7, window_bounds = array<i64: 1, 2304>}, {transform_indices = @transform_8, window_bounds = array<i64: 128, 128>}]} {
    %c0 = arith.constant 0 : index
    %c0_0 = arith.constant 0 : index
    %0 = vector.load %arg1[%c0, %c0_0] : memref<128x64xbf16, #tpu.memory_space<vmem>>, vector<128x64xbf16>
    %c0_1 = arith.constant 0 : index
    %c0_2 = arith.constant 0 : index
    %1 = vector.load %arg2[%c0_1, %c0_2] : memref<64x1280xbf16, #tpu.memory_space<vmem>>, vector<64x1280xbf16>
    %cst = arith.constant dense<0.000000e+00> : vector<128x1280xf32>
    %2 = tpu.matmul %0, %1, %cst {dimension_numbers = #tpu.dot_dimension_numbers<[1], [0], [0], [1], [0, 0, 1, 1], [], []>} : vector<128x64xbf16>, vector<64x1280xbf16>, vector<128x1280xf32> -> vector<128x1280xf32>
    %c0_3 = arith.constant 0 : index
    %c0_4 = arith.constant 0 : index
    %3 = vector.load %arg8[%c0_3, %c0_4] : memref<1x2304xf32, #tpu.memory_space<vmem>>, vector<1x1280xf32>
    %4 = vector.broadcast %3 : vector<1x1280xf32> to vector<128x1280xf32>
    %5 = arith.addf %2, %4 : vector<128x1280xf32>
    %6 = vector.extract_strided_slice %5 {offsets = [0, 0], sizes = [128, 256], strides = [1, 1]} : vector<128x1280xf32> to vector<128x256xf32>
    %cst_5 = arith.constant 0.000000e+00 : f32
    %7 = vector.broadcast %cst_5 : f32 to vector<128x256xf32>
    %8 = arith.cmpf ogt, %6, %7 : vector<128x256xf32>
    %cst_6 = arith.constant 0.000000e+00 : f32
    %9 = vector.broadcast %cst_6 : f32 to vector<128x256xf32>
    %10 = arith.minimumf %6, %9 : vector<128x256xf32>
    %11 = math.exp %10 : vector<128x256xf32>
    %cst_7 = arith.constant 1.000000e+00 : f32
    %12 = vector.broadcast %cst_7 : f32 to vector<128x256xf32>
    %13 = arith.subf %11, %12 : vector<128x256xf32>
    %14 = arith.select %8, %6, %13 : vector<128x256xi1>, vector<128x256xf32>
    %15 = arith.truncf %14 : vector<128x256xf32> to vector<128x256xbf16>
    %c0_8 = arith.constant 0 : index
    %c0_9 = arith.constant 0 : index
    %c0_10 = arith.constant 0 : index
    %16 = vector.load %arg5[%c0_8, %c0_9, %c0_10] : memref<3x256x128xbf16, #tpu.memory_space<vmem>>, vector<1x256x128xbf16>
    %17 = vector.shape_cast %16 : vector<1x256x128xbf16> to vector<256x128xbf16>
    %cst_11 = arith.constant dense<0.000000e+00> : vector<128x128xf32>
    %18 = tpu.matmul %15, %17, %cst_11 {dimension_numbers = #tpu.dot_dimension_numbers<[1], [0], [0], [1], [0, 0, 1, 1], [], []>} : vector<128x256xbf16>, vector<256x128xbf16>, vector<128x128xf32> -> vector<128x128xf32>
    %c0_12 = arith.constant 0 : index
    %c1280 = arith.constant 1280 : index
    %19 = vector.load %arg8[%c0_12, %c1280] : memref<1x2304xf32, #tpu.memory_space<vmem>>, vector<1x128xf32>
    %20 = vector.broadcast %19 : vector<1x128xf32> to vector<128x128xf32>
    %21 = arith.addf %18, %20 : vector<128x128xf32>
    %cst_13 = arith.constant 0.000000e+00 : f32
    %22 = vector.broadcast %cst_13 : f32 to vector<128x128xf32>
    %23 = arith.cmpf ogt, %21, %22 : vector<128x128xf32>
    %cst_14 = arith.constant 0.000000e+00 : f32
    %24 = vector.broadcast %cst_14 : f32 to vector<128x128xf32>
    %25 = arith.minimumf %21, %24 : vector<128x128xf32>
    %26 = math.exp %25 : vector<128x128xf32>
    %cst_15 = arith.constant 1.000000e+00 : f32
    %27 = vector.broadcast %cst_15 : f32 to vector<128x128xf32>
    %28 = arith.subf %26, %27 : vector<128x128xf32>
    %29 = arith.select %23, %21, %28 : vector<128x128xi1>, vector<128x128xf32>
    %30 = arith.truncf %29 : vector<128x128xf32> to vector<128x128xbf16>
    %c0_16 = arith.constant 0 : index
    %c0_17 = arith.constant 0 : index
    %31 = vector.load %arg6[%c0_16, %c0_17] : memref<128x128xbf16, #tpu.memory_space<vmem>>, vector<128x128xbf16>
    %cst_18 = arith.constant dense<0.000000e+00> : vector<128x128xf32>
    %32 = tpu.matmul %30, %31, %cst_18 {dimension_numbers = #tpu.dot_dimension_numbers<[1], [0], [0], [1], [0, 0, 1, 1], [], []>} : vector<128x128xbf16>, vector<128x128xbf16>, vector<128x128xf32> -> vector<128x128xf32>
    %c0_19 = arith.constant 0 : index
    %c2176 = arith.constant 2176 : index
    %33 = vector.load %arg8[%c0_19, %c2176] : memref<1x2304xf32, #tpu.memory_space<vmem>>, vector<1x128xf32>
    %34 = vector.broadcast %33 : vector<1x128xf32> to vector<128x128xf32>
    %35 = arith.addf %32, %34 : vector<128x128xf32>
    %36 = vector.extract_strided_slice %5 {offsets = [0, 256], sizes = [128, 512], strides = [1, 1]} : vector<128x1280xf32> to vector<128x512xf32>
    %37 = arith.truncf %35 : vector<128x128xf32> to vector<128x128xbf16>
    %c0_20 = arith.constant 0 : index
    %c0_21 = arith.constant 0 : index
    %38 = vector.load %arg3[%c0_20, %c0_21] : memref<128x512xbf16, #tpu.memory_space<vmem>>, vector<128x512xbf16>
    %cst_22 = arith.constant dense<0.000000e+00> : vector<128x512xf32>
    %39 = tpu.matmul %37, %38, %cst_22 {dimension_numbers = #tpu.dot_dimension_numbers<[1], [0], [0], [1], [0, 0, 1, 1], [], []>} : vector<128x128xbf16>, vector<128x512xbf16>, vector<128x512xf32> -> vector<128x512xf32>
    %40 = arith.addf %36, %39 : vector<128x512xf32>
    %cst_23 = arith.constant 0.000000e+00 : f32
    %41 = vector.broadcast %cst_23 : f32 to vector<128x512xf32>
    %42 = arith.cmpf ogt, %40, %41 : vector<128x512xf32>
    %cst_24 = arith.constant 0.000000e+00 : f32
    %43 = vector.broadcast %cst_24 : f32 to vector<128x512xf32>
    %44 = arith.minimumf %40, %43 : vector<128x512xf32>
    %45 = math.exp %44 : vector<128x512xf32>
    %cst_25 = arith.constant 1.000000e+00 : f32
    %46 = vector.broadcast %cst_25 : f32 to vector<128x512xf32>
    %47 = arith.subf %45, %46 : vector<128x512xf32>
    %48 = arith.select %42, %40, %47 : vector<128x512xi1>, vector<128x512xf32>
    %49 = arith.truncf %48 : vector<128x512xf32> to vector<128x512xbf16>
    %c0_26 = arith.constant 0 : index
    %c0_27 = arith.constant 0 : index
    %c0_28 = arith.constant 0 : index
    %50 = vector.load %arg4[%c0_26, %c0_27, %c0_28] : memref<2x512x256xbf16, #tpu.memory_space<vmem>>, vector<1x512x256xbf16>
    %51 = vector.shape_cast %50 : vector<1x512x256xbf16> to vector<512x256xbf16>
    %cst_29 = arith.constant dense<0.000000e+00> : vector<128x256xf32>
    %52 = tpu.matmul %49, %51, %cst_29 {dimension_numbers = #tpu.dot_dimension_numbers<[1], [0], [0], [1], [0, 0, 1, 1], [], []>} : vector<128x512xbf16>, vector<512x256xbf16>, vector<128x256xf32> -> vector<128x256xf32>
    %c0_30 = arith.constant 0 : index
    %c1408 = arith.constant 1408 : index
    %53 = vector.load %arg8[%c0_30, %c1408] : memref<1x2304xf32, #tpu.memory_space<vmem>>, vector<1x256xf32>
    %54 = vector.broadcast %53 : vector<1x256xf32> to vector<128x256xf32>
    %55 = arith.addf %52, %54 : vector<128x256xf32>
    %cst_31 = arith.constant 0.000000e+00 : f32
    %56 = vector.broadcast %cst_31 : f32 to vector<128x256xf32>
    %57 = arith.cmpf ogt, %55, %56 : vector<128x256xf32>
    %cst_32 = arith.constant 0.000000e+00 : f32
    %58 = vector.broadcast %cst_32 : f32 to vector<128x256xf32>
    %59 = arith.minimumf %55, %58 : vector<128x256xf32>
    %60 = math.exp %59 : vector<128x256xf32>
    %cst_33 = arith.constant 1.000000e+00 : f32
    %61 = vector.broadcast %cst_33 : f32 to vector<128x256xf32>
    %62 = arith.subf %60, %61 : vector<128x256xf32>
    %63 = arith.select %57, %55, %62 : vector<128x256xi1>, vector<128x256xf32>
    %64 = arith.truncf %63 : vector<128x256xf32> to vector<128x256xbf16>
    %c1 = arith.constant 1 : index
    %c0_34 = arith.constant 0 : index
    %c0_35 = arith.constant 0 : index
    %65 = vector.load %arg5[%c1, %c0_34, %c0_35] : memref<3x256x128xbf16, #tpu.memory_space<vmem>>, vector<1x256x128xbf16>
    %66 = vector.shape_cast %65 : vector<1x256x128xbf16> to vector<256x128xbf16>
    %cst_36 = arith.constant dense<0.000000e+00> : vector<128x128xf32>
    %67 = tpu.matmul %64, %66, %cst_36 {dimension_numbers = #tpu.dot_dimension_numbers<[1], [0], [0], [1], [0, 0, 1, 1], [], []>} : vector<128x256xbf16>, vector<256x128xbf16>, vector<128x128xf32> -> vector<128x128xf32>
    %c0_37 = arith.constant 0 : index
    %c1664 = arith.constant 1664 : index
    %68 = vector.load %arg8[%c0_37, %c1664] : memref<1x2304xf32, #tpu.memory_space<vmem>>, vector<1x128xf32>
    %69 = vector.broadcast %68 : vector<1x128xf32> to vector<128x128xf32>
    %70 = arith.addf %67, %69 : vector<128x128xf32>
    %cst_38 = arith.constant 0.000000e+00 : f32
    %71 = vector.broadcast %cst_38 : f32 to vector<128x128xf32>
    %72 = arith.cmpf ogt, %70, %71 : vector<128x128xf32>
    %cst_39 = arith.constant 0.000000e+00 : f32
    %73 = vector.broadcast %cst_39 : f32 to vector<128x128xf32>
    %74 = arith.minimumf %70, %73 : vector<128x128xf32>
    %75 = math.exp %74 : vector<128x128xf32>
    %cst_40 = arith.constant 1.000000e+00 : f32
    %76 = vector.broadcast %cst_40 : f32 to vector<128x128xf32>
    %77 = arith.subf %75, %76 : vector<128x128xf32>
    %78 = arith.select %72, %70, %77 : vector<128x128xi1>, vector<128x128xf32>
    %79 = arith.truncf %78 : vector<128x128xf32> to vector<128x128xbf16>
    %80 = vector.extract_strided_slice %5 {offsets = [0, 768], sizes = [128, 512], strides = [1, 1]} : vector<128x1280xf32> to vector<128x512xf32>
    %cst_41 = arith.constant 0.000000e+00 : f32
    %81 = vector.broadcast %cst_41 : f32 to vector<128x512xf32>
    %82 = arith.cmpf ogt, %80, %81 : vector<128x512xf32>
    %cst_42 = arith.constant 0.000000e+00 : f32
    %83 = vector.broadcast %cst_42 : f32 to vector<128x512xf32>
    %84 = arith.minimumf %80, %83 : vector<128x512xf32>
    %85 = math.exp %84 : vector<128x512xf32>
    %cst_43 = arith.constant 1.000000e+00 : f32
    %86 = vector.broadcast %cst_43 : f32 to vector<128x512xf32>
    %87 = arith.subf %85, %86 : vector<128x512xf32>
    %88 = arith.select %82, %80, %87 : vector<128x512xi1>, vector<128x512xf32>
    %89 = arith.truncf %88 : vector<128x512xf32> to vector<128x512xbf16>
    %c1_44 = arith.constant 1 : index
    %c0_45 = arith.constant 0 : index
    %c0_46 = arith.constant 0 : index
    %90 = vector.load %arg4[%c1_44, %c0_45, %c0_46] : memref<2x512x256xbf16, #tpu.memory_space<vmem>>, vector<1x512x256xbf16>
    %91 = vector.shape_cast %90 : vector<1x512x256xbf16> to vector<512x256xbf16>
    %cst_47 = arith.constant dense<0.000000e+00> : vector<128x256xf32>
    %92 = tpu.matmul %89, %91, %cst_47 {dimension_numbers = #tpu.dot_dimension_numbers<[1], [0], [0], [1], [0, 0, 1, 1], [], []>} : vector<128x512xbf16>, vector<512x256xbf16>, vector<128x256xf32> -> vector<128x256xf32>
    %c0_48 = arith.constant 0 : index
    %c1792 = arith.constant 1792 : index
    %93 = vector.load %arg8[%c0_48, %c1792] : memref<1x2304xf32, #tpu.memory_space<vmem>>, vector<1x256xf32>
    %94 = vector.broadcast %93 : vector<1x256xf32> to vector<128x256xf32>
    %95 = arith.addf %92, %94 : vector<128x256xf32>
    %cst_49 = arith.constant 0.000000e+00 : f32
    %96 = vector.broadcast %cst_49 : f32 to vector<128x256xf32>
    %97 = arith.cmpf ogt, %95, %96 : vector<128x256xf32>
    %cst_50 = arith.constant 0.000000e+00 : f32
    %98 = vector.broadcast %cst_50 : f32 to vector<128x256xf32>
    %99 = arith.minimumf %95, %98 : vector<128x256xf32>
    %100 = math.exp %99 : vector<128x256xf32>
    %cst_51 = arith.constant 1.000000e+00 : f32
    %101 = vector.broadcast %cst_51 : f32 to vector<128x256xf32>
    %102 = arith.subf %100, %101 : vector<128x256xf32>
    %103 = arith.select %97, %95, %102 : vector<128x256xi1>, vector<128x256xf32>
    %104 = arith.truncf %103 : vector<128x256xf32> to vector<128x256xbf16>
    %c2 = arith.constant 2 : index
    %c0_52 = arith.constant 0 : index
    %c0_53 = arith.constant 0 : index
    %105 = vector.load %arg5[%c2, %c0_52, %c0_53] : memref<3x256x128xbf16, #tpu.memory_space<vmem>>, vector<1x256x128xbf16>
    %106 = vector.shape_cast %105 : vector<1x256x128xbf16> to vector<256x128xbf16>
    %cst_54 = arith.constant dense<0.000000e+00> : vector<128x128xf32>
    %107 = tpu.matmul %104, %106, %cst_54 {dimension_numbers = #tpu.dot_dimension_numbers<[1], [0], [0], [1], [0, 0, 1, 1], [], []>} : vector<128x256xbf16>, vector<256x128xbf16>, vector<128x128xf32> -> vector<128x128xf32>
    %c0_55 = arith.constant 0 : index
    %c2048 = arith.constant 2048 : index
    %108 = vector.load %arg8[%c0_55, %c2048] : memref<1x2304xf32, #tpu.memory_space<vmem>>, vector<1x128xf32>
    %109 = vector.broadcast %108 : vector<1x128xf32> to vector<128x128xf32>
    %110 = arith.addf %107, %109 : vector<128x128xf32>
    %cst_56 = arith.constant 0.000000e+00 : f32
    %111 = vector.broadcast %cst_56 : f32 to vector<128x128xf32>
    %112 = arith.cmpf ogt, %110, %111 : vector<128x128xf32>
    %cst_57 = arith.constant 0.000000e+00 : f32
    %113 = vector.broadcast %cst_57 : f32 to vector<128x128xf32>
    %114 = arith.minimumf %110, %113 : vector<128x128xf32>
    %115 = math.exp %114 : vector<128x128xf32>
    %cst_58 = arith.constant 1.000000e+00 : f32
    %116 = vector.broadcast %cst_58 : f32 to vector<128x128xf32>
    %117 = arith.subf %115, %116 : vector<128x128xf32>
    %118 = arith.select %112, %110, %117 : vector<128x128xi1>, vector<128x128xf32>
    %119 = arith.truncf %118 : vector<128x128xf32> to vector<128x128xbf16>
    %120 = tpu.concatenate %79, %119 in 1 : vector<128x128xbf16>, vector<128x128xbf16> -> vector<128x256xbf16>
    %c0_59 = arith.constant 0 : index
    %c0_60 = arith.constant 0 : index
    %121 = vector.load %arg7[%c0_59, %c0_60] : memref<256x128xbf16, #tpu.memory_space<vmem>>, vector<256x128xbf16>
    %cst_61 = arith.constant dense<0.000000e+00> : vector<128x128xf32>
    %122 = tpu.matmul %120, %121, %cst_61 {dimension_numbers = #tpu.dot_dimension_numbers<[1], [0], [0], [1], [0, 0, 1, 1], [], []>} : vector<128x256xbf16>, vector<256x128xbf16>, vector<128x128xf32> -> vector<128x128xf32>
    %123 = arith.addf %35, %122 : vector<128x128xf32>
    %c0_62 = arith.constant 0 : index
    %c0_63 = arith.constant 0 : index
    %124 = vector.load %arg9[%c0_62, %c0_63] : memref<128x128xf32, #tpu.memory_space<vmem>>, vector<128x128xf32>
    tpu.vector_store %arg9[%c0_62, %c0_63], %123 {strides = array<i32>} : memref<128x128xf32, #tpu.memory_space<vmem>>, vector<128x128xf32>,
    return
  }
  func.func @transform_0(%arg0: i32) -> (i32, i32) {
    %c0_i32 = arith.constant 0 : i32
    %c0_i32_0 = arith.constant 0 : i32
    return %arg0, %c0_i32 : i32, i32
  }
  func.func @transform_1(%arg0: i32) -> (i32, i32) {
    %c0_i32 = arith.constant 0 : i32
    %c0_i32_0 = arith.constant 0 : i32
    %c0_i32_1 = arith.constant 0 : i32
    return %c0_i32, %c0_i32_0 : i32, i32
  }
  func.func @transform_2(%arg0: i32) -> (i32, i32) {
    %c0_i32 = arith.constant 0 : i32
    %c0_i32_0 = arith.constant 0 : i32
    %c0_i32_1 = arith.constant 0 : i32
    return %c0_i32, %c0_i32_0 : i32, i32
  }
  func.func @transform_3(%arg0: i32) -> (i32, i32, i32) {
    %c0_i32 = arith.constant 0 : i32
    %c0_i32_0 = arith.constant 0 : i32
    %c0_i32_1 = arith.constant 0 : i32
    %c0_i32_2 = arith.constant 0 : i32
    return %c0_i32, %c0_i32_0, %c0_i32_1 : i32, i32, i32
  }
  func.func @transform_4(%arg0: i32) -> (i32, i32, i32) {
    %c0_i32 = arith.constant 0 : i32
    %c0_i32_0 = arith.constant 0 : i32
    %c0_i32_1 = arith.constant 0 : i32
    %c0_i32_2 = arith.constant 0 : i32
    return %c0_i32, %c0_i32_0, %c0_i32_1 : i32, i32, i32
  }
  func.func @transform_5(%arg0: i32) -> (i32, i32) {
    %c0_i32 = arith.constant 0 : i32
    %c0_i32_0 = arith.constant 0 : i32
    %c0_i32_1 = arith.constant 0 : i32
    return %c0_i32, %c0_i32_0 : i32, i32
  }
  func.func @transform_6(%arg0: i32) -> (i32, i32) {
    %c0_i32 = arith.constant 0 : i32
    %c0_i32_0 = arith.constant 0 : i32
    %c0_i32_1 = arith.constant 0 : i32
    return %c0_i32, %c0_i32_0 : i32, i32
  }
  func.func @transform_7(%arg0: i32) -> (i32, i32) {
    %c0_i32 = arith.constant 0 : i32
    %c0_i32_0 = arith.constant 0 : i32
    %c0_i32_1 = arith.constant 0 : i32
    return %c0_i32, %c0_i32_0 : i32, i32
  }
  func.func @transform_8(%arg0: i32) -> (i32, i32) {
    %c0_i32 = arith.constant 0 : i32
    %c0_i32_0 = arith.constant 0 : i32
    return %arg0, %c0_i32 : i32, i32
  }
}

</mosaic_0001>

<llo_original>
// kernel: _lambda_.1
$region0: #{_lambda_.1}
  #allocation0 [shape = 'u32[]', space=smem, size = 0x4, offset = 0x4, fixed_abs, tag = 'smem constant byte address 0x4 - core index']
  #allocation1 [shape = 'u32[144,128]{1,0:T(1,128)}', space=vmem, size = 0x12000, scoped, tag = 'internal scratch']
  %s0 = inlined_call_operand.vmem [shape: bf16[128,64], index: 0, kind: input, shape index: {}]
  %s1 = inlined_call_operand.hbm [shape: bf16[64,1280], index: 1, kind: input, shape index: {}]
  %s2 = inlined_call_operand.hbm [shape: bf16[128,512], index: 2, kind: input, shape index: {}]
  %s3 = inlined_call_operand.hbm [shape: bf16[2,512,256], index: 3, kind: input, shape index: {}]
  %s4 = inlined_call_operand.hbm [shape: bf16[3,256,128], index: 4, kind: input, shape index: {}]
  %s5 = inlined_call_operand.vmem [shape: bf16[128,128], index: 5, kind: input, shape index: {}]
  %s6 = inlined_call_operand.hbm [shape: bf16[256,128], index: 6, kind: input, shape index: {}]
  %s7 = inlined_call_operand.vmem [shape: f32[1,2304], index: 7, kind: input, shape index: {}]
  %s8 = inlined_call_operand.vmem [shape: f32[128,128], index: 8, kind: output, shape index: {}]
  %s9 = sld [smem:[#allocation0]]
  $region62: #{_lambda_.1} parent=0
    _
  %s11 = ssub.s32 1, %s9
  %s12 = scalar_select 0, %s11, %s9
  $region1: #{_lambda_.1} parent=0
    #allocation2 [shape = 'u8[163840]{0}', space=vmem, size = 0x28000, scoped, tag = 'input window, operand 1, single buffered']
    #allocation3 [shape = 's32[1]{0}', space=sflag, size = 0x4, scoped, tag = 'scoped memory for _lambda_.1']
    #allocation4 [shape = 'u8[131072]{0}', space=vmem, size = 0x20000, scoped, tag = 'input window, operand 2, single buffered']
    #allocation5 [shape = 's32[1]{0}', space=sflag, size = 0x4, scoped, tag = 'scoped memory for _lambda_.1']
    #allocation6 [shape = 'u8[524288]{0}', space=vmem, size = 0x80000, scoped, tag = 'input window, operand 3, single buffered']
    #allocation7 [shape = 'u8[196608]{0}', space=vmem, size = 0x30000, scoped, tag = 'input window, operand 4, single buffered']
    #allocation8 [shape = 's32[1]{0}', space=sflag, size = 0x4, scoped, tag = 'scoped memory for _lambda_.1']
    #allocation9 [shape = 'u8[65536]{0}', space=vmem, size = 0x10000, scoped, tag = 'input window, operand 6, single buffered']
    %13 = vsyncpa [#allocation3], 0
    %14 = vsyncpa [#allocation5], 0
    %15 = vsyncpa [#allocation8], 0
    // Predicated region
    $region2: #{_lambda_.1} parent=1 // pred_check
      _
    $region3: #{_lambda_.1} parent=1 // pred_check_branch
      %17 = sbr.rel (0) target = $region5
    $region4: #{_lambda_.1} parent=1 // pred_region
      _
    $region5: #{_lambda_.1} parent=1 // pred_fallthru
      _
    // Predicated region
    $region6: #{_lambda_.1} parent=1 // pred_check
      _
    $region7: #{_lambda_.1} parent=1 // pred_check_branch
      %19 = sbr.rel (0) target = $region9
    $region8: #{_lambda_.1} parent=1 // pred_region
      %s21 = ssub.s32 5120, 5120
      %22 = vsyncadd [#allocation3], %s21
      %s23 = sshll.u32 [#allocation2], 4
      %s24 = int_to_ptr.vmem [resolvable:$true] %s23
      %29 = dma.hbm_to_vmem [thread:$0]  %s1, 5120, %s24, [#allocation3], 640, 640, 40
    $region9: #{_lambda_.1} parent=1 // pred_fallthru
      _
    // Predicated region
    $region10: #{_lambda_.1} parent=1 // pred_check
      _
    $region11: #{_lambda_.1} parent=1 // pred_check_branch
      %31 = sbr.rel (0) target = $region13
    $region12: #{_lambda_.1} parent=1 // pred_region
      %s33 = ssub.s32 4096, 4096
      %34 = vsyncadd [#allocation5], %s33
      %s35 = sshll.u32 [#allocation4], 4
      %s36 = int_to_ptr.vmem [resolvable:$true] %s35
      %41 = dma.hbm_to_vmem [thread:$0]  %s2, 4096, %s36, [#allocation5], 256, 256, 16
    $region13: #{_lambda_.1} parent=1 // pred_fallthru
      _
    // Predicated region
    $region14: #{_lambda_.1} parent=1 // pred_check
      _
    $region15: #{_lambda_.1} parent=1 // pred_check_branch
      %43 = sbr.rel (0) target = $region17
    $region16: #{_lambda_.1} parent=1 // pred_region
      %s45 = ssub.s32 16384, 16384
      %46 = vsyncadd [#allocation5], %s45
      %s47 = sshll.u32 [#allocation6], 4
      %s48 = int_to_ptr.vmem [resolvable:$true] %s47
      %53 = dma.hbm_to_vmem [thread:$0]  %s3, 16384, %s48, [#allocation5], 128, 128, 8
    $region17: #{_lambda_.1} parent=1 // pred_fallthru
      _
    // Predicated region
    $region18: #{_lambda_.1} parent=1 // pred_check
      _
    $region19: #{_lambda_.1} parent=1 // pred_check_branch
      %55 = sbr.rel (0) target = $region21
    $region20: #{_lambda_.1} parent=1 // pred_region
      %s57 = ssub.s32 6144, 6144
      %58 = vsyncadd [#allocation8], %s57
      %s59 = sshll.u32 [#allocation7], 4
      %s60 = int_to_ptr.vmem [resolvable:$true] %s59
      %65 = dma.hbm_to_vmem [thread:$0]  %s4, 6144, %s60, [#allocation8], 64, 64, 4
    $region21: #{_lambda_.1} parent=1 // pred_fallthru
      _
    // Predicated region
    $region22: #{_lambda_.1} parent=1 // pred_check
      _
    $region23: #{_lambda_.1} parent=1 // pred_check_branch
      %67 = sbr.rel (0) target = $region25
    $region24: #{_lambda_.1} parent=1 // pred_region
      _
    $region25: #{_lambda_.1} parent=1 // pred_fallthru
      _
    // Predicated region
    $region26: #{_lambda_.1} parent=1 // pred_check
      _
    $region27: #{_lambda_.1} parent=1 // pred_check_branch
      %69 = sbr.rel (0) target = $region29
    $region28: #{_lambda_.1} parent=1 // pred_region
      %s71 = ssub.s32 2048, 2048
      %72 = vsyncadd [#allocation8], %s71
      %s73 = sshll.u32 [#allocation9], 4
      %s74 = int_to_ptr.vmem [resolvable:$true] %s73
      %79 = dma.hbm_to_vmem [thread:$0]  %s6, 2048, %s74, [#allocation8], 64, 64, 4
    $region29: #{_lambda_.1} parent=1 // pred_fallthru
      _
    // Predicated region
    $region30: #{_lambda_.1} parent=1 // pred_check
      _
    $region31: #{_lambda_.1} parent=1 // pred_check_branch
      %81 = sbr.rel (0) target = $region33
    $region32: #{_lambda_.1} parent=1 // pred_region
      _
    $region33: #{_lambda_.1} parent=1 // pred_fallthru
      _
    // Predicated region
    $region34: #{_lambda_.1} parent=1 // pred_check
      _
    $region35: #{_lambda_.1} parent=1 // pred_check_branch
      %83 = sbr.rel (0) target = $region37
    $region36: #{_lambda_.1} parent=1 // pred_region
      %84 = dma.done [#allocation3], 5120
    $region37: #{_lambda_.1} parent=1 // pred_fallthru
      _
    // Predicated region
    $region38: #{_lambda_.1} parent=1 // pred_check
      _
    $region39: #{_lambda_.1} parent=1 // pred_check_branch
      %86 = sbr.rel (0) target = $region41
    $region40: #{_lambda_.1} parent=1 // pred_region
      %87 = dma.done [#allocation5], 4096
    $region41: #{_lambda_.1} parent=1 // pred_fallthru
      _
    // Predicated region
    $region42: #{_lambda_.1} parent=1 // pred_check
      _
    $region43: #{_lambda_.1} parent=1 // pred_check_branch
      %89 = sbr.rel (0) target = $region45
    $region44: #{_lambda_.1} parent=1 // pred_region
      %90 = dma.done [#allocation5], 16384
    $region45: #{_lambda_.1} parent=1 // pred_fallthru
      _
    // Predicated region
    $region46: #{_lambda_.1} parent=1 // pred_check
      _
    $region47: #{_lambda_.1} parent=1 // pred_check_branch
      %92 = sbr.rel (0) target = $region49
    $region48: #{_lambda_.1} parent=1 // pred_region
      %93 = dma.done [#allocation8], 6144
    $region49: #{_lambda_.1} parent=1 // pred_fallthru
      _
    // Predicated region
    $region50: #{_lambda_.1} parent=1 // pred_check
      _
    $region51: #{_lambda_.1} parent=1 // pred_check_branch
      %95 = sbr.rel (0) target = $region53
    $region52: #{_lambda_.1} parent=1 // pred_region
      %96 = dma.done [#allocation8], 2048
    $region53: #{_lambda_.1} parent=1 // pred_fallthru
      _
    %v98 = vld [vmem:[%s0] sm:$0xf]
    %v99 = vld [vmem:[%s0 + $0x4] sm:$0xf]
    %v100 = vld [vmem:[%s0 + $0x8] sm:$0xf]
    %v101 = vld [vmem:[%s0 + $0xc] sm:$0xf]
    %v102 = vld [vmem:[%s0 + $0x10] sm:$0xf]
    %v103 = vld [vmem:[%s0 + $0x14] sm:$0xf]
    %v104 = vld [vmem:[%s0 + $0x18] sm:$0xf]
    %v105 = vld [vmem:[%s0 + $0x1c] sm:$0xf]
    %v106 = vld [vmem:[%s0 + $0x20] sm:$0xf]
    %v107 = vld [vmem:[%s0 + $0x24] sm:$0xf]
    %v108 = vld [vmem:[%s0 + $0x28] sm:$0xf]
    %v109 = vld [vmem:[%s0 + $0x2c] sm:$0xf]
    %v110 = vld [vmem:[%s0 + $0x30] sm:$0xf]
    %v111 = vld [vmem:[%s0 + $0x34] sm:$0xf]
    %v112 = vld [vmem:[%s0 + $0x38] sm:$0xf]
    %v113 = vld [vmem:[%s0 + $0x3c] sm:$0xf]
    %v114 = vld [vmem:[#allocation2] sm:$0xff]
    %v115 = vld [vmem:[#allocation2 + $0x8] sm:$0xff]
    %v116 = vld [vmem:[#allocation2 + $0x10] sm:$0xff]
    %v117 = vld [vmem:[#allocation2 + $0x18] sm:$0xff]
    %v118 = vld [vmem:[#allocation2 + $0x20] sm:$0xff]
    %v119 = vld [vmem:[#allocation2 + $0x28] sm:$0xff]
    %v120 = vld [vmem:[#allocation2 + $0x30] sm:$0xff]
    %v121 = vld [vmem:[#allocation2 + $0x38] sm:$0xff]
    %v122 = vld [vmem:[#allocation2 + $0x40] sm:$0xff]
    %v123 = vld [vmem:[#allocation2 + $0x48] sm:$0xff]
    %v124 = vld [vmem:[#allocation2 + $0x50] sm:$0xff]
    %v125 = vld [vmem:[#allocation2 + $0x58] sm:$0xff]
    %v126 = vld [vmem:[#allocation2 + $0x60] sm:$0xff]
    %v127 = vld [vmem:[#allocation2 + $0x68] sm:$0xff]
    %v128 = vld [vmem:[#allocation2 + $0x70] sm:$0xff]
    %v129 = vld [vmem:[#allocation2 + $0x78] sm:$0xff]
    %v130 = vld [vmem:[#allocation2 + $0x80] sm:$0xff]
    %v131 = vld [vmem:[#allocation2 + $0x88] sm:$0xff]
    %v132 = vld [vmem:[#allocation2 + $0x90] sm:$0xff]
    %v133 = vld [vmem:[#allocation2 + $0x98] sm:$0xff]
    %v134 = vld [vmem:[#allocation2 + $0xa0] sm:$0xff]
    %v135 = vld [vmem:[#allocation2 + $0xa8] sm:$0xff]
    %v136 = vld [vmem:[#allocation2 + $0xb0] sm:$0xff]
    %v137 = vld [vmem:[#allocation2 + $0xb8] sm:$0xff]
    %v138 = vld [vmem:[#allocation2 + $0xc0] sm:$0xff]
    %v139 = vld [vmem:[#allocation2 + $0xc8] sm:$0xff]
    %v140 = vld [vmem:[#allocation2 + $0xd0] sm:$0xff]
    %v141 = vld [vmem:[#allocation2 + $0xd8] sm:$0xff]
    %v142 = vld [vmem:[#allocation2 + $0xe0] sm:$0xff]
    %v143 = vld [vmem:[#allocation2 + $0xe8] sm:$0xff]
    %v144 = vld [vmem:[#allocation2 + $0xf0] sm:$0xff]
    %v145 = vld [vmem:[#allocation2 + $0xf8] sm:$0xff]
    %v146 = vld [vmem:[#allocation2 + $0x100] sm:$0xff]
    %v147 = vld [vmem:[#allocation2 + $0x108] sm:$0xff]
    %v148 = vld [vmem:[#allocation2 + $0x110] sm:$0xff]
    %v149 = vld [vmem:[#allocation2 + $0x118] sm:$0xff]
    %v150 = vld [vmem:[#allocation2 + $0x120] sm:$0xff]
    %v151 = vld [vmem:[#allocation2 + $0x128] sm:$0xff]
    %v152 = vld [vmem:[#allocation2 + $0x130] sm:$0xff]
    %v153 = vld [vmem:[#allocation2 + $0x138] sm:$0xff]
    %v154 = vld [vmem:[%s7] sm:$0xff]
    %v155 = vld [vmem:[%s7 + $0x8] sm:$0x3]
    %v158 = vlaneseq
    %v159 = vshrl.u32 %v158, 7
    %v160 = vsub.s32 0, %v159
    %v161 = vrot.slane %v154, %v160
    %v162 = vlaneseq
    %v163 = vshrl.u32 %v162, 7
    %v164 = vsub.s32 1, %v163
    %v165 = vrot.slane %v154, %v164
    %v166 = vlaneseq
    %v167 = vshrl.u32 %v166, 7
    %v168 = vsub.s32 2, %v167
    %v169 = vrot.slane %v154, %v168
    %v170 = vlaneseq
    %v171 = vshrl.u32 %v170, 7
    %v172 = vsub.s32 3, %v171
    %v173 = vrot.slane %v154, %v172
    %v174 = vlaneseq
    %v175 = vshrl.u32 %v174, 7
    %v176 = vsub.s32 4, %v175
    %v177 = vrot.slane %v154, %v176
    %v178 = vlaneseq
    %v179 = vshrl.u32 %v178, 7
    %v180 = vsub.s32 5, %v179
    %v181 = vrot.slane %v154, %v180
    %v182 = vlaneseq
    %v183 = vshrl.u32 %v182, 7
    %v184 = vsub.s32 6, %v183
    %v185 = vrot.slane %v154, %v184
    %v186 = vlaneseq
    %v187 = vshrl.u32 %v186, 7
    %v188 = vsub.s32 7, %v187
    %v189 = vrot.slane %v154, %v188
    %v190 = vlaneseq
    %v191 = vshrl.u32 %v190, 7
    %v192 = vsub.s32 0, %v191
    %v193 = vrot.slane %v155, %v192
    %v194 = vlaneseq
    %v195 = vshrl.u32 %v194, 7
    %v196 = vsub.s32 1, %v195
    %v197 = vrot.slane %v155, %v196
    %v224 = vunpack.c.l.b16 %v98
    %v225 = vunpack.c.l.b16 %v99
    %v226 = vunpack.c.l.b16 %v100
    %v227 = vunpack.c.l.b16 %v101
    %v228 = vunpack.c.l.b16 %v102
    %v229 = vunpack.c.l.b16 %v103
    %v230 = vunpack.c.l.b16 %v104
    %v231 = vunpack.c.l.b16 %v105
    %v232 = vunpack.c.l.b16 %v106
    %v233 = vunpack.c.l.b16 %v107
    %v234 = vunpack.c.l.b16 %v108
    %v235 = vunpack.c.l.b16 %v109
    %v236 = vunpack.c.l.b16 %v110
    %v237 = vunpack.c.l.b16 %v111
    %v238 = vunpack.c.l.b16 %v112
    %v239 = vunpack.c.l.b16 %v113
    %v240 = vpack.c.b16 %v225, %v224
    %v241 = vpack.c.b16 %v227, %v226
    %v242 = vpack.c.b16 %v229, %v228
    %v243 = vpack.c.b16 %v231, %v230
    %v244 = vpack.c.b16 %v233, %v232
    %v245 = vpack.c.b16 %v235, %v234
    %v246 = vpack.c.b16 %v237, %v236
    %v247 = vpack.c.b16 %v239, %v238
    %v288 = vunpack.c.l.b16 %v114
    %v289 = vunpack.c.h.b16 %v114
    %v290 = vunpack.c.l.b16 %v115
    %v291 = vunpack.c.h.b16 %v115
    %v292 = vunpack.c.l.b16 %v116
    %v293 = vunpack.c.h.b16 %v116
    %v294 = vunpack.c.l.b16 %v117
    %v295 = vunpack.c.h.b16 %v117
    %v296 = vunpack.c.l.b16 %v118
    %v297 = vunpack.c.h.b16 %v118
    %v298 = vunpack.c.l.b16 %v119
    %v299 = vunpack.c.h.b16 %v119
    %v300 = vunpack.c.l.b16 %v120
    %v301 = vunpack.c.h.b16 %v120
    %v302 = vunpack.c.l.b16 %v121
    %v303 = vunpack.c.h.b16 %v121
    %v304 = vunpack.c.l.b16 %v122
    %v305 = vunpack.c.h.b16 %v122
    %v306 = vunpack.c.l.b16 %v123
    %v307 = vunpack.c.h.b16 %v123
    %v308 = vunpack.c.l.b16 %v124
    %v309 = vunpack.c.h.b16 %v124
    %v310 = vunpack.c.l.b16 %v125
    %v311 = vunpack.c.h.b16 %v125
    %v312 = vunpack.c.l.b16 %v126
    %v313 = vunpack.c.h.b16 %v126
    %v314 = vunpack.c.l.b16 %v127
    %v315 = vunpack.c.h.b16 %v127
    %v316 = vunpack.c.l.b16 %v128
    %v317 = vunpack.c.h.b16 %v128
    %v318 = vunpack.c.l.b16 %v129
    %v319 = vunpack.c.h.b16 %v129
    %v320 = vunpack.c.l.b16 %v130
    %v321 = vunpack.c.h.b16 %v130
    %v322 = vunpack.c.l.b16 %v131
    %v323 = vunpack.c.h.b16 %v131
    %v324 = vunpack.c.l.b16 %v132
    %v325 = vunpack.c.h.b16 %v132
    %v326 = vunpack.c.l.b16 %v133
    %v327 = vunpack.c.h.b16 %v133
    %v328 = vunpack.c.l.b16 %v134
    %v329 = vunpack.c.h.b16 %v134
    %v330 = vunpack.c.l.b16 %v135
    %v331 = vunpack.c.h.b16 %v135
    %v332 = vunpack.c.l.b16 %v136
    %v333 = vunpack.c.h.b16 %v136
    %v334 = vunpack.c.l.b16 %v137
    %v335 = vunpack.c.h.b16 %v137
    %v336 = vunpack.c.l.b16 %v138
    %v337 = vunpack.c.h.b16 %v138
    %v338 = vunpack.c.l.b16 %v139
    %v339 = vunpack.c.h.b16 %v139
    %v340 = vunpack.c.l.b16 %v140
    %v341 = vunpack.c.h.b16 %v140
    %v342 = vunpack.c.l.b16 %v141
    %v343 = vunpack.c.h.b16 %v141
    %v344 = vunpack.c.l.b16 %v142
    %v345 = vunpack.c.h.b16 %v142
    %v346 = vunpack.c.l.b16 %v143
    %v347 = vunpack.c.h.b16 %v143
    %v348 = vunpack.c.l.b16 %v144
    %v349 = vunpack.c.h.b16 %v144
    %v350 = vunpack.c.l.b16 %v145
    %v351 = vunpack.c.h.b16 %v145
    %v352 = vunpack.c.l.b16 %v146
    %v353 = vunpack.c.h.b16 %v146
    %v354 = vunpack.c.l.b16 %v147
    %v355 = vunpack.c.h.b16 %v147
    %v356 = vunpack.c.l.b16 %v148
    %v357 = vunpack.c.h.b16 %v148
    %v358 = vunpack.c.l.b16 %v149
    %v359 = vunpack.c.h.b16 %v149
    %v360 = vunpack.c.l.b16 %v150
    %v361 = vunpack.c.h.b16 %v150
    %v362 = vunpack.c.l.b16 %v151
    %v363 = vunpack.c.h.b16 %v151
    %v364 = vunpack.c.l.b16 %v152
    %v365 = vunpack.c.h.b16 %v152
    %v366 = vunpack.c.l.b16 %v153
    %v367 = vunpack.c.h.b16 %v153
    %v368 = vpack.c.b16 %v298, %v288
    %v369 = vpack.c.b16 %v299, %v289
    %v370 = vpack.c.b16 %v300, %v290
    %v371 = vpack.c.b16 %v301, %v291
    %v372 = vpack.c.b16 %v302, %v292
    %v373 = vpack.c.b16 %v303, %v293
    %v374 = vpack.c.b16 %v304, %v294
    %v375 = vpack.c.b16 %v305, %v295
    %v376 = vpack.c.b16 %v306, %v296
    %v377 = vpack.c.b16 %v307, %v297
    %v378 = vpack.c.b16 %v318, %v308
    %v379 = vpack.c.b16 %v319, %v309
    %v380 = vpack.c.b16 %v320, %v310
    %v381 = vpack.c.b16 %v321, %v311
    %v382 = vpack.c.b16 %v322, %v312
    %v383 = vpack.c.b16 %v323, %v313
    %v384 = vpack.c.b16 %v324, %v314
    %v385 = vpack.c.b16 %v325, %v315
    %v386 = vpack.c.b16 %v326, %v316
    %v387 = vpack.c.b16 %v327, %v317
    %v388 = vpack.c.b16 %v338, %v328
    %v389 = vpack.c.b16 %v339, %v329
    %v390 = vpack.c.b16 %v340, %v330
    %v391 = vpack.c.b16 %v341, %v331
    %v392 = vpack.c.b16 %v342, %v332
    %v393 = vpack.c.b16 %v343, %v333
    %v394 = vpack.c.b16 %v344, %v334
    %v395 = vpack.c.b16 %v345, %v335
    %v396 = vpack.c.b16 %v346, %v336
    %v397 = vpack.c.b16 %v347, %v337
    %v398 = vpack.c.b16 %v358, %v348
    %v399 = vpack.c.b16 %v359, %v349
    %v400 = vpack.c.b16 %v360, %v350
    %v401 = vpack.c.b16 %v361, %v351
    %v402 = vpack.c.b16 %v362, %v352
    %v403 = vpack.c.b16 %v363, %v353
    %v404 = vpack.c.b16 %v364, %v354
    %v405 = vpack.c.b16 %v365, %v355
    %v406 = vpack.c.b16 %v366, %v356
    %v407 = vpack.c.b16 %v367, %v357
    %vm448 = vcmask 523264
    %v450 = vsel %vm448, %v240, 0
    %v453 = vsel %vm448, %v241, 0
    %v456 = vsel %vm448, %v242, 0
    %v459 = vsel %vm448, %v243, 0
    %v462 = vsel %vm448, %v244, 0
    %v465 = vsel %vm448, %v245, 0
    %v468 = vsel %vm448, %v246, 0
    %v471 = vsel %vm448, %v247, 0
    %473 = vmatprep.subr.bf16.mxu0 %v369
    %474 = vmatpush1.bf16.msra.mxu0 %v368
    %475 = vmatprep.subr.bf16.mxu0 %v379
    %476 = vmatpush1.bf16.msra.mxu0 %v378
    %477 = vmatprep.subr.bf16.mxu0 %v389
    %478 = vmatpush1.bf16.msra.mxu0 %v388
    %479 = vmatprep.subr.bf16.mxu0 %v399
    %480 = vmatpush1.bf16.msra.mxu0 %v398
    %481 = vmatprep.subr.bf16.mxu0 0
    %482 = vmatpush1.bf16.msra.mxu0 0
    %483 = vmatprep.subr.bf16.mxu0 0
    %484 = vmatpush1.bf16.msra.mxu0 0
    %485 = vmatprep.subr.bf16.mxu0 0
    %486 = vmatpush1.bf16.msra.mxu0 0
    %487 = vmatprep.subr.bf16.mxu0 0
    %488 = vmatpush1.bf16.msra.mxu0 0
    %489 = vmatprep.subr.bf16.mxu0 0
    %490 = vmatpush1.bf16.msra.mxu0 0
    %491 = vmatprep.subr.bf16.mxu0 0
    %492 = vmatpush1.bf16.msra.mxu0 0
    %493 = vmatprep.subr.bf16.mxu0 0
    %494 = vmatpush1.bf16.msra.mxu0 0
    %495 = vmatprep.subr.bf16.mxu0 0
    %496 = vmatpush1.bf16.msra.mxu0 0
    %497 = vmatprep.subr.bf16.mxu0 0
    %498 = vmatpush1.bf16.msra.mxu0 0
    %499 = vmatprep.subr.bf16.mxu0 0
    %500 = vmatpush1.bf16.msra.mxu0 0
    %501 = vmatprep.subr.bf16.mxu0 0
    %502 = vmatpush1.bf16.msra.mxu0 0
    %503 = vmatprep.subr.bf16.mxu0 0
    %504 = vmatpush1.bf16.msra.mxu0 0
    %505 = vmatprep.mubr.bf16.mxu0 0
    %506 = vmatmul.mubr.bf16.gmra.mrb[0].mxu0 %v450
    %v507 = vpop.f32.mrb[0].mxu0
    %v508 = vadd.f32 %v161, %v507
    %v509 = vpop.f32.mrb[0].mxu0
    %v510 = vadd.f32 %v165, %v509
    %v511 = vpop.f32.mrb[0].mxu0
    %v512 = vadd.f32 %v161, %v511
    %v513 = vpop.f32.mrb[0].mxu0
    %v514 = vadd.f32 %v165, %v513
    %515 = vmatprep.mubr.bf16.mxu0 0
    %516 = vmatmul.mubr.bf16.gmra.mrb[0].mxu0 %v453
    %v517 = vpop.f32.mrb[0].mxu0
    %v518 = vadd.f32 %v161, %v517
    %v519 = vpop.f32.mrb[0].mxu0
    %v520 = vadd.f32 %v165, %v519
    %v521 = vpop.f32.mrb[0].mxu0
    %v522 = vadd.f32 %v161, %v521
    %v523 = vpop.f32.mrb[0].mxu0
    %v524 = vadd.f32 %v165, %v523
    %525 = vmatprep.mubr.bf16.mxu0 0
    %526 = vmatmul.mubr.bf16.gmra.mrb[0].mxu0 %v456
    %v527 = vpop.f32.mrb[0].mxu0
    %v528 = vadd.f32 %v161, %v527
    %v529 = vpop.f32.mrb[0].mxu0
    %v530 = vadd.f32 %v165, %v529
    %v531 = vpop.f32.mrb[0].mxu0
    %v532 = vadd.f32 %v161, %v531
    %v533 = vpop.f32.mrb[0].mxu0
    %v534 = vadd.f32 %v165, %v533
    %535 = vmatprep.mubr.bf16.mxu0 0
    %536 = vmatmul.mubr.bf16.gmra.mrb[0].mxu0 %v459
    %v537 = vpop.f32.mrb[0].mxu0
    %v538 = vadd.f32 %v161, %v537
    %v539 = vpop.f32.mrb[0].mxu0
    %v540 = vadd.f32 %v165, %v539
    %v541 = vpop.f32.mrb[0].mxu0
    %v542 = vadd.f32 %v161, %v541
    %v543 = vpop.f32.mrb[0].mxu0
    %v544 = vadd.f32 %v165, %v543
    %545 = vmatprep.mubr.bf16.mxu0 0
    %546 = vmatmul.mubr.bf16.gmra.mrb[0].mxu0 %v462
    %v547 = vpop.f32.mrb[0].mxu0
    %v548 = vadd.f32 %v161, %v547
    %v549 = vpop.f32.mrb[0].mxu0
    %v550 = vadd.f32 %v165, %v549
    %v551 = vpop.f32.mrb[0].mxu0
    %v552 = vadd.f32 %v161, %v551
    %v553 = vpop.f32.mrb[0].mxu0
    %v554 = vadd.f32 %v165, %v553
    %555 = vmatprep.mubr.bf16.mxu0 0
    %556 = vmatmul.mubr.bf16.gmra.mrb[0].mxu0 %v465
    %v557 = vpop.f32.mrb[0].mxu0
    %v558 = vadd.f32 %v161, %v557
    %v559 = vpop.f32.mrb[0].mxu0
    %v560 = vadd.f32 %v165, %v559
    %v561 = vpop.f32.mrb[0].mxu0
    %v562 = vadd.f32 %v161, %v561
    %v563 = vpop.f32.mrb[0].mxu0
    %v564 = vadd.f32 %v165, %v563
    %565 = vmatprep.mubr.bf16.mxu0 0
    %566 = vmatmul.mubr.bf16.gmra.mrb[0].mxu0 %v468
    %v567 = vpop.f32.mrb[0].mxu0
    %v568 = vadd.f32 %v161, %v567
    %v569 = vpop.f32.mrb[0].mxu0
    %v570 = vadd.f32 %v165, %v569
    %v571 = vpop.f32.mrb[0].mxu0
    %v572 = vadd.f32 %v161, %v571
    %v573 = vpop.f32.mrb[0].mxu0
    %v574 = vadd.f32 %v165, %v573
    %575 = vmatprep.mubr.bf16.mxu0 0
    %576 = vmatmul.mubr.bf16.gmra.mrb[0].mxu0 %v471
    %v577 = vpop.f32.mrb[0].mxu0
    %v578 = vadd.f32 %v161, %v577
    %v579 = vpop.f32.mrb[0].mxu0
    %v580 = vadd.f32 %v165, %v579
    %v581 = vpop.f32.mrb[0].mxu0
    %v582 = vadd.f32 %v161, %v581
    %v583 = vpop.f32.mrb[0].mxu0
    %v584 = vadd.f32 %v165, %v583
    %585 = vdwg.mxu0
    %586 = vmatprep.subr.bf16.mxu0 %v371
    %587 = vmatpush1.bf16.msra.mxu0 %v370
    %588 = vmatprep.subr.bf16.mxu0 %v381
    %589 = vmatpush1.bf16.msra.mxu0 %v380
    %590 = vmatprep.subr.bf16.mxu0 %v391
    %591 = vmatpush1.bf16.msra.mxu0 %v390
    %592 = vmatprep.subr.bf16.mxu0 %v401
    %593 = vmatpush1.bf16.msra.mxu0 %v400
    %594 = vmatprep.subr.bf16.mxu0 0
    %595 = vmatpush1.bf16.msra.mxu0 0
    %596 = vmatprep.subr.bf16.mxu0 0
    %597 = vmatpush1.bf16.msra.mxu0 0
    %598 = vmatprep.subr.bf16.mxu0 0
    %599 = vmatpush1.bf16.msra.mxu0 0
    %600 = vmatprep.subr.bf16.mxu0 0
    %601 = vmatpush1.bf16.msra.mxu0 0
    %602 = vmatprep.subr.bf16.mxu0 0
    %603 = vmatpush1.bf16.msra.mxu0 0
    %604 = vmatprep.subr.bf16.mxu0 0
    %605 = vmatpush1.bf16.msra.mxu0 0
    %606 = vmatprep.subr.bf16.mxu0 0
    %607 = vmatpush1.bf16.msra.mxu0 0
    %608 = vmatprep.subr.bf16.mxu0 0
    %609 = vmatpush1.bf16.msra.mxu0 0
    %610 = vmatprep.subr.bf16.mxu0 0
    %611 = vmatpush1.bf16.msra.mxu0 0
    %612 = vmatprep.subr.bf16.mxu0 0
    %613 = vmatpush1.bf16.msra.mxu0 0
    %614 = vmatprep.subr.bf16.mxu0 0
    %615 = vmatpush1.bf16.msra.mxu0 0
    %616 = vmatprep.subr.bf16.mxu0 0
    %617 = vmatpush1.bf16.msra.mxu0 0
    %618 = vmatprep.mubr.bf16.mxu0 0
    %619 = vmatmul.mubr.bf16.gmra.mrb[0].mxu0 %v450
    %v620 = vpop.f32.mrb[0].mxu0
    %v621 = vadd.f32 %v169, %v620
    %v622 = vpop.f32.mrb[0].mxu0
    %v623 = vadd.f32 %v173, %v622
    %v624 = vpop.f32.mrb[0].mxu0
    %v625 = vadd.f32 %v169, %v624
    %v626 = vpop.f32.mrb[0].mxu0
    %v627 = vadd.f32 %v173, %v626
    %628 = vmatprep.mubr.bf16.mxu0 0
    %629 = vmatmul.mubr.bf16.gmra.mrb[0].mxu0 %v453
    %v630 = vpop.f32.mrb[0].mxu0
    %v631 = vadd.f32 %v169, %v630
    %v632 = vpop.f32.mrb[0].mxu0
    %v633 = vadd.f32 %v173, %v632
    %v634 = vpop.f32.mrb[0].mxu0
    %v635 = vadd.f32 %v169, %v634
    %v636 = vpop.f32.mrb[0].mxu0
    %v637 = vadd.f32 %v173, %v636
    %638 = vmatprep.mubr.bf16.mxu0 0
    %639 = vmatmul.mubr.bf16.gmra.mrb[0].mxu0 %v456
    %v640 = vpop.f32.mrb[0].mxu0
    %v641 = vadd.f32 %v169, %v640
    %v642 = vpop.f32.mrb[0].mxu0
    %v643 = vadd.f32 %v173, %v642
    %v644 = vpop.f32.mrb[0].mxu0
    %v645 = vadd.f32 %v169, %v644
    %v646 = vpop.f32.mrb[0].mxu0
    %v647 = vadd.f32 %v173, %v646
    %648 = vmatprep.mubr.bf16.mxu0 0
    %649 = vmatmul.mubr.bf16.gmra.mrb[0].mxu0 %v459
    %v650 = vpop.f32.mrb[0].mxu0
    %v651 = vadd.f32 %v169, %v650
    %v652 = vpop.f32.mrb[0].mxu0
    %v653 = vadd.f32 %v173, %v652
    %v654 = vpop.f32.mrb[0].mxu0
    %v655 = vadd.f32 %v169, %v654
    %v656 = vpop.f32.mrb[0].mxu0
    %v657 = vadd.f32 %v173, %v656
    %658 = vmatprep.mubr.bf16.mxu0 0
    %659 = vmatmul.mubr.bf16.gmra.mrb[0].mxu0 %v462
    %v660 = vpop.f32.mrb[0].mxu0
    %v661 = vadd.f32 %v169, %v660
    %v662 = vpop.f32.mrb[0].mxu0
    %v663 = vadd.f32 %v173, %v662
    %v664 = vpop.f32.mrb[0].mxu0
    %v665 = vadd.f32 %v169, %v664
    %v666 = vpop.f32.mrb[0].mxu0
    %v667 = vadd.f32 %v173, %v666
    %668 = vmatprep.mubr.bf16.mxu0 0
    %669 = vmatmul.mubr.bf16.gmra.mrb[0].mxu0 %v465
    %v670 = vpop.f32.mrb[0].mxu0
    %v671 = vadd.f32 %v169, %v670
    %v672 = vpop.f32.mrb[0].mxu0
    %v673 = vadd.f32 %v173, %v672
    %v674 = vpop.f32.mrb[0].mxu0
    %v675 = vadd.f32 %v169, %v674
    %v676 = vpop.f32.mrb[0].mxu0
    %v677 = vadd.f32 %v173, %v676
    %678 = vmatprep.mubr.bf16.mxu0 0
    %679 = vmatmul.mubr.bf16.gmra.mrb[0].mxu0 %v468
    %v680 = vpop.f32.mrb[0].mxu0
    %v681 = vadd.f32 %v169, %v680
    %v682 = vpop.f32.mrb[0].mxu0
    %v683 = vadd.f32 %v173, %v682
    %v684 = vpop.f32.mrb[0].mxu0
    %v685 = vadd.f32 %v169, %v684
    %v686 = vpop.f32.mrb[0].mxu0
    %v687 = vadd.f32 %v173, %v686
    %688 = vmatprep.mubr.bf16.mxu0 0
    %689 = vmatmul.mubr.bf16.gmra.mrb[0].mxu0 %v471
    %v690 = vpop.f32.mrb[0].mxu0
    %v691 = vadd.f32 %v169, %v690
    %v692 = vpop.f32.mrb[0].mxu0
    %v693 = vadd.f32 %v173, %v692
    %v694 = vpop.f32.mrb[0].mxu0
    %v695 = vadd.f32 %v169, %v694
    %v696 = vpop.f32.mrb[0].mxu0
    %v697 = vadd.f32 %v173, %v696
    %698 = vdwg.mxu0
    %699 = vmatprep.subr.bf16.mxu0 %v373
    %700 = vmatpush1.bf16.msra.mxu0 %v372
    %701 = vmatprep.subr.bf16.mxu0 %v383
    %702 = vmatpush1.bf16.msra.mxu0 %v382
    %703 = vmatprep.subr.bf16.mxu0 %v393
    %704 = vmatpush1.bf16.msra.mxu0 %v392
    %705 = vmatprep.subr.bf16.mxu0 %v403
    %706 = vmatpush1.bf16.msra.mxu0 %v402
    %707 = vmatprep.subr.bf16.mxu0 0
    %708 = vmatpush1.bf16.msra.mxu0 0
    %709 = vmatprep.subr.bf16.mxu0 0
    %710 = vmatpush1.bf16.msra.mxu0 0
    %711 = vmatprep.subr.bf16.mxu0 0
    %712 = vmatpush1.bf16.msra.mxu0 0
    %713 = vmatprep.subr.bf16.mxu0 0
    %714 = vmatpush1.bf16.msra.mxu0 0
    %715 = vmatprep.subr.bf16.mxu0 0
    %716 = vmatpush1.bf16.msra.mxu0 0
    %717 = vmatprep.subr.bf16.mxu0 0
    %718 = vmatpush1.bf16.msra.mxu0 0
    %719 = vmatprep.subr.bf16.mxu0 0
    %720 = vmatpush1.bf16.msra.mxu0 0
    %721 = vmatprep.subr.bf16.mxu0 0
    %722 = vmatpush1.bf16.msra.mxu0 0
    %723 = vmatprep.subr.bf16.mxu0 0
    %724 = vmatpush1.bf16.msra.mxu0 0
    %725 = vmatprep.subr.bf16.mxu0 0
    %726 = vmatpush1.bf16.msra.mxu0 0
    %727 = vmatprep.subr.bf16.mxu0 0
    %728 = vmatpush1.bf16.msra.mxu0 0
    %729 = vmatprep.subr.bf16.mxu0 0
    %730 = vmatpush1.bf16.msra.mxu0 0
    %731 = vmatprep.mubr.bf16.mxu0 0
    %732 = vmatmul.mubr.bf16.gmra.mrb[0].mxu0 %v450
    %v733 = vpop.f32.mrb[0].mxu0
    %v734 = vadd.f32 %v177, %v733
    %v735 = vpop.f32.mrb[0].mxu0
    %v736 = vadd.f32 %v181, %v735
    %v737 = vpop.f32.mrb[0].mxu0
    %v738 = vadd.f32 %v177, %v737
    %v739 = vpop.f32.mrb[0].mxu0
    %v740 = vadd.f32 %v181, %v739
    %741 = vmatprep.mubr.bf16.mxu0 0
    %742 = vmatmul.mubr.bf16.gmra.mrb[0].mxu0 %v453
    %v743 = vpop.f32.mrb[0].mxu0
    %v744 = vadd.f32 %v177, %v743
    %v745 = vpop.f32.mrb[0].mxu0
    %v746 = vadd.f32 %v181, %v745
    %v747 = vpop.f32.mrb[0].mxu0
    %v748 = vadd.f32 %v177, %v747
    %v749 = vpop.f32.mrb[0].mxu0
    %v750 = vadd.f32 %v181, %v749
    %751 = vmatprep.mubr.bf16.mxu0 0
    %752 = vmatmul.mubr.bf16.gmra.mrb[0].mxu0 %v456
    %v753 = vpop.f32.mrb[0].mxu0
    %v754 = vadd.f32 %v177, %v753
    %v755 = vpop.f32.mrb[0].mxu0
    %v756 = vadd.f32 %v181, %v755
    %v757 = vpop.f32.mrb[0].mxu0
    %v758 = vadd.f32 %v177, %v757
    %v759 = vpop.f32.mrb[0].mxu0
    %v760 = vadd.f32 %v181, %v759
    %761 = vmatprep.mubr.bf16.mxu0 0
    %762 = vmatmul.mubr.bf16.gmra.mrb[0].mxu0 %v459
    %v763 = vpop.f32.mrb[0].mxu0
    %v764 = vadd.f32 %v177, %v763
    %v765 = vpop.f32.mrb[0].mxu0
    %v766 = vadd.f32 %v181, %v765
    %v767 = vpop.f32.mrb[0].mxu0
    %v768 = vadd.f32 %v177, %v767
    %v769 = vpop.f32.mrb[0].mxu0
    %v770 = vadd.f32 %v181, %v769
    %771 = vmatprep.mubr.bf16.mxu0 0
    %772 = vmatmul.mubr.bf16.gmra.mrb[0].mxu0 %v462
    %v773 = vpop.f32.mrb[0].mxu0
    %v774 = vadd.f32 %v177, %v773
    %v775 = vpop.f32.mrb[0].mxu0
    %v776 = vadd.f32 %v181, %v775
    %v777 = vpop.f32.mrb[0].mxu0
    %v778 = vadd.f32 %v177, %v777
    %v779 = vpop.f32.mrb[0].mxu0
    %v780 = vadd.f32 %v181, %v779
    %781 = vmatprep.mubr.bf16.mxu0 0
    %782 = vmatmul.mubr.bf16.gmra.mrb[0].mxu0 %v465
    %v783 = vpop.f32.mrb[0].mxu0
    %v784 = vadd.f32 %v177, %v783
    %v785 = vpop.f32.mrb[0].mxu0
    %v786 = vadd.f32 %v181, %v785
    %v787 = vpop.f32.mrb[0].mxu0
    %v788 = vadd.f32 %v177, %v787
    %v789 = vpop.f32.mrb[0].mxu0
    %v790 = vadd.f32 %v181, %v789
    %791 = vmatprep.mubr.bf16.mxu0 0
    %792 = vmatmul.mubr.bf16.gmra.mrb[0].mxu0 %v468
    %v793 = vpop.f32.mrb[0].mxu0
    %v794 = vadd.f32 %v177, %v793
    %v795 = vpop.f32.mrb[0].mxu0
    %v796 = vadd.f32 %v181, %v795
    %v797 = vpop.f32.mrb[0].mxu0
    %v798 = vadd.f32 %v177, %v797
    %v799 = vpop.f32.mrb[0].mxu0
    %v800 = vadd.f32 %v181, %v799
    %801 = vmatprep.mubr.bf16.mxu0 0
    %802 = vmatmul.mubr.bf16.gmra.mrb[0].mxu0 %v471
    %v803 = vpop.f32.mrb[0].mxu0
    %v804 = vadd.f32 %v177, %v803
    %v805 = vpop.f32.mrb[0].mxu0
    %v806 = vadd.f32 %v181, %v805
    %v807 = vpop.f32.mrb[0].mxu0
    %v808 = vadd.f32 %v177, %v807
    %v809 = vpop.f32.mrb[0].mxu0
    %v810 = vadd.f32 %v181, %v809
    %811 = vdwg.mxu0
    %812 = vmatprep.subr.bf16.mxu0 %v375
    %813 = vmatpush1.bf16.msra.mxu0 %v374
    %814 = vmatprep.subr.bf16.mxu0 %v385
    %815 = vmatpush1.bf16.msra.mxu0 %v384
    %816 = vmatprep.subr.bf16.mxu0 %v395
    %817 = vmatpush1.bf16.msra.mxu0 %v394
    %818 = vmatprep.subr.bf16.mxu0 %v405
    %819 = vmatpush1.bf16.msra.mxu0 %v404
    %820 = vmatprep.subr.bf16.mxu0 0
    %821 = vmatpush1.bf16.msra.mxu0 0
    %822 = vmatprep.subr.bf16.mxu0 0
    %823 = vmatpush1.bf16.msra.mxu0 0
    %824 = vmatprep.subr.bf16.mxu0 0
    %825 = vmatpush1.bf16.msra.mxu0 0
    %826 = vmatprep.subr.bf16.mxu0 0
    %827 = vmatpush1.bf16.msra.mxu0 0
    %828 = vmatprep.subr.bf16.mxu0 0
    %829 = vmatpush1.bf16.msra.mxu0 0
    %830 = vmatprep.subr.bf16.mxu0 0
    %831 = vmatpush1.bf16.msra.mxu0 0
    %832 = vmatprep.subr.bf16.mxu0 0
    %833 = vmatpush1.bf16.msra.mxu0 0
    %834 = vmatprep.subr.bf16.mxu0 0
    %835 = vmatpush1.bf16.msra.mxu0 0
    %836 = vmatprep.subr.bf16.mxu0 0
    %837 = vmatpush1.bf16.msra.mxu0 0
    %838 = vmatprep.subr.bf16.mxu0 0
    %839 = vmatpush1.bf16.msra.mxu0 0
    %840 = vmatprep.subr.bf16.mxu0 0
    %841 = vmatpush1.bf16.msra.mxu0 0
    %842 = vmatprep.subr.bf16.mxu0 0
    %843 = vmatpush1.bf16.msra.mxu0 0
    %844 = vmatprep.mubr.bf16.mxu0 0
    %845 = vmatmul.mubr.bf16.gmra.mrb[0].mxu0 %v450
    %v846 = vpop.f32.mrb[0].mxu0
    %v847 = vadd.f32 %v185, %v846
    %v848 = vpop.f32.mrb[0].mxu0
    %v849 = vadd.f32 %v189, %v848
    %v850 = vpop.f32.mrb[0].mxu0
    %v851 = vadd.f32 %v185, %v850
    %v852 = vpop.f32.mrb[0].mxu0
    %v853 = vadd.f32 %v189, %v852
    %854 = vmatprep.mubr.bf16.mxu0 0
    %855 = vmatmul.mubr.bf16.gmra.mrb[0].mxu0 %v453
    %v856 = vpop.f32.mrb[0].mxu0
    %v857 = vadd.f32 %v185, %v856
    %v858 = vpop.f32.mrb[0].mxu0
    %v859 = vadd.f32 %v189, %v858
    %v860 = vpop.f32.mrb[0].mxu0
    %v861 = vadd.f32 %v185, %v860
    %v862 = vpop.f32.mrb[0].mxu0
    %v863 = vadd.f32 %v189, %v862
    %864 = vmatprep.mubr.bf16.mxu0 0
    %865 = vmatmul.mubr.bf16.gmra.mrb[0].mxu0 %v456
    %v866 = vpop.f32.mrb[0].mxu0
    %v867 = vadd.f32 %v185, %v866
    %v868 = vpop.f32.mrb[0].mxu0
    %v869 = vadd.f32 %v189, %v868
    %v870 = vpop.f32.mrb[0].mxu0
    %v871 = vadd.f32 %v185, %v870
    %v872 = vpop.f32.mrb[0].mxu0
    %v873 = vadd.f32 %v189, %v872
    %874 = vmatprep.mubr.bf16.mxu0 0
    %875 = vmatmul.mubr.bf16.gmra.mrb[0].mxu0 %v459
    %v876 = vpop.f32.mrb[0].mxu0
    %v877 = vadd.f32 %v185, %v876
    %v878 = vpop.f32.mrb[0].mxu0
    %v879 = vadd.f32 %v189, %v878
    %v880 = vpop.f32.mrb[0].mxu0
    %v881 = vadd.f32 %v185, %v880
    %v882 = vpop.f32.mrb[0].mxu0
    %v883 = vadd.f32 %v189, %v882
    %884 = vmatprep.mubr.bf16.mxu0 0
    %885 = vmatmul.mubr.bf16.gmra.mrb[0].mxu0 %v462
    %v886 = vpop.f32.mrb[0].mxu0
    %v887 = vadd.f32 %v185, %v886
    %v888 = vpop.f32.mrb[0].mxu0
    %v889 = vadd.f32 %v189, %v888
    %v890 = vpop.f32.mrb[0].mxu0
    %v891 = vadd.f32 %v185, %v890
    %v892 = vpop.f32.mrb[0].mxu0
    %v893 = vadd.f32 %v189, %v892
    %894 = vmatprep.mubr.bf16.mxu0 0
    %895 = vmatmul.mubr.bf16.gmra.mrb[0].mxu0 %v465
    %v896 = vpop.f32.mrb[0].mxu0
    %v897 = vadd.f32 %v185, %v896
    %v898 = vpop.f32.mrb[0].mxu0
    %v899 = vadd.f32 %v189, %v898
    %v900 = vpop.f32.mrb[0].mxu0
    %v901 = vadd.f32 %v185, %v900
    %v902 = vpop.f32.mrb[0].mxu0
    %v903 = vadd.f32 %v189, %v902
    %904 = vmatprep.mubr.bf16.mxu0 0
    %905 = vmatmul.mubr.bf16.gmra.mrb[0].mxu0 %v468
    %v906 = vpop.f32.mrb[0].mxu0
    %v907 = vadd.f32 %v185, %v906
    %v908 = vpop.f32.mrb[0].mxu0
    %v909 = vadd.f32 %v189, %v908
    %v910 = vpop.f32.mrb[0].mxu0
    %v911 = vadd.f32 %v185, %v910
    %v912 = vpop.f32.mrb[0].mxu0
    %v913 = vadd.f32 %v189, %v912
    %914 = vmatprep.mubr.bf16.mxu0 0
    %915 = vmatmul.mubr.bf16.gmra.mrb[0].mxu0 %v471
    %v916 = vpop.f32.mrb[0].mxu0
    %v917 = vadd.f32 %v185, %v916
    %v918 = vpop.f32.mrb[0].mxu0
    %v919 = vadd.f32 %v189, %v918
    %v920 = vpop.f32.mrb[0].mxu0
    %v921 = vadd.f32 %v185, %v920
    %v922 = vpop.f32.mrb[0].mxu0
    %v923 = vadd.f32 %v189, %v922
    %924 = vdwg.mxu0
    %925 = vmatprep.subr.bf16.mxu0 %v377
    %926 = vmatpush1.bf16.msra.mxu0 %v376
    %927 = vmatprep.subr.bf16.mxu0 %v387
    %928 = vmatpush1.bf16.msra.mxu0 %v386
    %929 = vmatprep.subr.bf16.mxu0 %v397
    %930 = vmatpush1.bf16.msra.mxu0 %v396
    %931 = vmatprep.subr.bf16.mxu0 %v407
    %932 = vmatpush1.bf16.msra.mxu0 %v406
    %933 = vmatprep.subr.bf16.mxu0 0
    %934 = vmatpush1.bf16.msra.mxu0 0
    %935 = vmatprep.subr.bf16.mxu0 0
    %936 = vmatpush1.bf16.msra.mxu0 0
    %937 = vmatprep.subr.bf16.mxu0 0
    %938 = vmatpush1.bf16.msra.mxu0 0
    %939 = vmatprep.subr.bf16.mxu0 0
    %940 = vmatpush1.bf16.msra.mxu0 0
    %941 = vmatprep.subr.bf16.mxu0 0
    %942 = vmatpush1.bf16.msra.mxu0 0
    %943 = vmatprep.subr.bf16.mxu0 0
    %944 = vmatpush1.bf16.msra.mxu0 0
    %945 = vmatprep.subr.bf16.mxu0 0
    %946 = vmatpush1.bf16.msra.mxu0 0
    %947 = vmatprep.subr.bf16.mxu0 0
    %948 = vmatpush1.bf16.msra.mxu0 0
    %949 = vmatprep.subr.bf16.mxu0 0
    %950 = vmatpush1.bf16.msra.mxu0 0
    %951 = vmatprep.subr.bf16.mxu0 0
    %952 = vmatpush1.bf16.msra.mxu0 0
    %953 = vmatprep.subr.bf16.mxu0 0
    %954 = vmatpush1.bf16.msra.mxu0 0
    %955 = vmatprep.subr.bf16.mxu0 0
    %956 = vmatpush1.bf16.msra.mxu0 0
    %957 = vmatprep.mubr.bf16.mxu0 0
    %958 = vmatmul.mubr.bf16.gmra.mrb[0].mxu0 %v450
    %v959 = vpop.f32.mrb[0].mxu0
    %v960 = vadd.f32 %v193, %v959
    %v961 = vpop.f32.mrb[0].mxu0
    %v962 = vadd.f32 %v197, %v961
    %v963 = vpop.f32.mrb[0].mxu0
    %v964 = vadd.f32 %v193, %v963
    %v965 = vpop.f32.mrb[0].mxu0
    %v966 = vadd.f32 %v197, %v965
    %967 = vmatprep.mubr.bf16.mxu0 0
    %968 = vmatmul.mubr.bf16.gmra.mrb[0].mxu0 %v453
    %v969 = vpop.f32.mrb[0].mxu0
    %v970 = vadd.f32 %v193, %v969
    %v971 = vpop.f32.mrb[0].mxu0
    %v972 = vadd.f32 %v197, %v971
    %v973 = vpop.f32.mrb[0].mxu0
    %v974 = vadd.f32 %v193, %v973
    %v975 = vpop.f32.mrb[0].mxu0
    %v976 = vadd.f32 %v197, %v975
    %977 = vmatprep.mubr.bf16.mxu0 0
    %978 = vmatmul.mubr.bf16.gmra.mrb[0].mxu0 %v456
    %v979 = vpop.f32.mrb[0].mxu0
    %v980 = vadd.f32 %v193, %v979
    %v981 = vpop.f32.mrb[0].mxu0
    %v982 = vadd.f32 %v197, %v981
    %v983 = vpop.f32.mrb[0].mxu0
    %v984 = vadd.f32 %v193, %v983
    %v985 = vpop.f32.mrb[0].mxu0
    %v986 = vadd.f32 %v197, %v985
    %987 = vmatprep.mubr.bf16.mxu0 0
    %988 = vmatmul.mubr.bf16.gmra.mrb[0].mxu0 %v459
    %v989 = vpop.f32.mrb[0].mxu0
    %v990 = vadd.f32 %v193, %v989
    %v991 = vpop.f32.mrb[0].mxu0
    %v992 = vadd.f32 %v197, %v991
    %v993 = vpop.f32.mrb[0].mxu0
    %v994 = vadd.f32 %v193, %v993
    %v995 = vpop.f32.mrb[0].mxu0
    %v996 = vadd.f32 %v197, %v995
    %997 = vmatprep.mubr.bf16.mxu0 0
    %998 = vmatmul.mubr.bf16.gmra.mrb[0].mxu0 %v462
    %v999 = vpop.f32.mrb[0].mxu0
    %v1000 = vadd.f32 %v193, %v999
    %v1001 = vpop.f32.mrb[0].mxu0
    %v1002 = vadd.f32 %v197, %v1001
    %v1003 = vpop.f32.mrb[0].mxu0
    %v1004 = vadd.f32 %v193, %v1003
    %v1005 = vpop.f32.mrb[0].mxu0
    %v1006 = vadd.f32 %v197, %v1005
    %1007 = vmatprep.mubr.bf16.mxu0 0
    %1008 = vmatmul.mubr.bf16.gmra.mrb[0].mxu0 %v465
    %v1009 = vpop.f32.mrb[0].mxu0
    %v1010 = vadd.f32 %v193, %v1009
    %v1011 = vpop.f32.mrb[0].mxu0
    %v1012 = vadd.f32 %v197, %v1011
    %v1013 = vpop.f32.mrb[0].mxu0
    %v1014 = vadd.f32 %v193, %v1013
    %v1015 = vpop.f32.mrb[0].mxu0
    %v1016 = vadd.f32 %v197, %v1015
    %1017 = vmatprep.mubr.bf16.mxu0 0
    %1018 = vmatmul.mubr.bf16.gmra.mrb[0].mxu0 %v468
    %v1019 = vpop.f32.mrb[0].mxu0
    %v1020 = vadd.f32 %v193, %v1019
    %v1021 = vpop.f32.mrb[0].mxu0
    %v1022 = vadd.f32 %v197, %v1021
    %v1023 = vpop.f32.mrb[0].mxu0
    %v1024 = vadd.f32 %v193, %v1023
    %v1025 = vpop.f32.mrb[0].mxu0
    %v1026 = vadd.f32 %v197, %v1025
    %1027 = vmatprep.mubr.bf16.mxu0 0
    %1028 = vmatmul.mubr.bf16.gmra.mrb[0].mxu0 %v471
    %v1029 = vpop.f32.mrb[0].mxu0
    %v1030 = vadd.f32 %v193, %v1029
    %v1031 = vpop.f32.mrb[0].mxu0
    %v1032 = vadd.f32 %v197, %v1031
    %v1033 = vpop.f32.mrb[0].mxu0
    %v1034 = vadd.f32 %v193, %v1033
    %v1035 = vpop.f32.mrb[0].mxu0
    %v1036 = vadd.f32 %v197, %v1035
    %1037 = vdwg.mxu0
    %vm1038 = vcmp.gt.f32.partialorder %v508, 0.0
    %vm1039 = vcmp.gt.f32.partialorder %v510, 0.0
    %vm1040 = vcmp.gt.f32.partialorder %v512, 0.0
    %vm1041 = vcmp.gt.f32.partialorder %v514, 0.0
    %vm1042 = vcmp.gt.f32.partialorder %v518, 0.0
    %vm1043 = vcmp.gt.f32.partialorder %v520, 0.0
    %vm1044 = vcmp.gt.f32.partialorder %v522, 0.0
    %vm1045 = vcmp.gt.f32.partialorder %v524, 0.0
    %vm1046 = vcmp.gt.f32.partialorder %v528, 0.0
    %vm1047 = vcmp.gt.f32.partialorder %v530, 0.0
    %vm1048 = vcmp.gt.f32.partialorder %v532, 0.0
    %vm1049 = vcmp.gt.f32.partialorder %v534, 0.0
    %vm1050 = vcmp.gt.f32.partialorder %v538, 0.0
    %vm1051 = vcmp.gt.f32.partialorder %v540, 0.0
    %vm1052 = vcmp.gt.f32.partialorder %v542, 0.0
    %vm1053 = vcmp.gt.f32.partialorder %v544, 0.0
    %vm1054 = vcmp.gt.f32.partialorder %v548, 0.0
    %vm1055 = vcmp.gt.f32.partialorder %v550, 0.0
    %vm1056 = vcmp.gt.f32.partialorder %v552, 0.0
    %vm1057 = vcmp.gt.f32.partialorder %v554, 0.0
    %vm1058 = vcmp.gt.f32.partialorder %v558, 0.0
    %vm1059 = vcmp.gt.f32.partialorder %v560, 0.0
    %vm1060 = vcmp.gt.f32.partialorder %v562, 0.0
    %vm1061 = vcmp.gt.f32.partialorder %v564, 0.0
    %vm1062 = vcmp.gt.f32.partialorder %v568, 0.0
    %vm1063 = vcmp.gt.f32.partialorder %v570, 0.0
    %vm1064 = vcmp.gt.f32.partialorder %v572, 0.0
    %vm1065 = vcmp.gt.f32.partialorder %v574, 0.0
    %vm1066 = vcmp.gt.f32.partialorder %v578, 0.0
    %vm1067 = vcmp.gt.f32.partialorder %v580, 0.0
    %vm1068 = vcmp.gt.f32.partialorder %v582, 0.0
    %vm1069 = vcmp.gt.f32.partialorder %v584, 0.0
    %v1070 = vmin.f32 %v508, 0.0
    %v1071 = vmin.f32 %v510, 0.0
    %v1072 = vmin.f32 %v512, 0.0
    %v1073 = vmin.f32 %v514, 0.0
    %v1074 = vmin.f32 %v518, 0.0
    %v1075 = vmin.f32 %v520, 0.0
    %v1076 = vmin.f32 %v522, 0.0
    %v1077 = vmin.f32 %v524, 0.0
    %v1078 = vmin.f32 %v528, 0.0
    %v1079 = vmin.f32 %v530, 0.0
    %v1080 = vmin.f32 %v532, 0.0
    %v1081 = vmin.f32 %v534, 0.0
    %v1082 = vmin.f32 %v538, 0.0
    %v1083 = vmin.f32 %v540, 0.0
    %v1084 = vmin.f32 %v542, 0.0
    %v1085 = vmin.f32 %v544, 0.0
    %v1086 = vmin.f32 %v548, 0.0
    %v1087 = vmin.f32 %v550, 0.0
    %v1088 = vmin.f32 %v552, 0.0
    %v1089 = vmin.f32 %v554, 0.0
    %v1090 = vmin.f32 %v558, 0.0
    %v1091 = vmin.f32 %v560, 0.0
    %v1092 = vmin.f32 %v562, 0.0
    %v1093 = vmin.f32 %v564, 0.0
    %v1094 = vmin.f32 %v568, 0.0
    %v1095 = vmin.f32 %v570, 0.0
    %v1096 = vmin.f32 %v572, 0.0
    %v1097 = vmin.f32 %v574, 0.0
    %v1098 = vmin.f32 %v578, 0.0
    %v1099 = vmin.f32 %v580, 0.0
    %v1100 = vmin.f32 %v582, 0.0
    %v1101 = vmin.f32 %v584, 0.0
    %v1102 = vmul.f32 %v1070, 1.442695
    %v1103 = vpow.pop %v1102
    %v1104 = vmul.f32 %v1071, 1.442695
    %v1105 = vpow.pop %v1104
    %v1106 = vmul.f32 %v1072, 1.442695
    %v1107 = vpow.pop %v1106
    %v1108 = vmul.f32 %v1073, 1.442695
    %v1109 = vpow.pop %v1108
    %v1110 = vmul.f32 %v1074, 1.442695
    %v1111 = vpow.pop %v1110
    %v1112 = vmul.f32 %v1075, 1.442695
    %v1113 = vpow.pop %v1112
    %v1114 = vmul.f32 %v1076, 1.442695
    %v1115 = vpow.pop %v1114
    %v1116 = vmul.f32 %v1077, 1.442695
    %v1117 = vpow.pop %v1116
    %v1118 = vmul.f32 %v1078, 1.442695
    %v1119 = vpow.pop %v1118
    %v1120 = vmul.f32 %v1079, 1.442695
    %v1121 = vpow.pop %v1120
    %v1122 = vmul.f32 %v1080, 1.442695
    %v1123 = vpow.pop %v1122
    %v1124 = vmul.f32 %v1081, 1.442695
    %v1125 = vpow.pop %v1124
    %v1126 = vmul.f32 %v1082, 1.442695
    %v1127 = vpow.pop %v1126
    %v1128 = vmul.f32 %v1083, 1.442695
    %v1129 = vpow.pop %v1128
    %v1130 = vmul.f32 %v1084, 1.442695
    %v1131 = vpow.pop %v1130
    %v1132 = vmul.f32 %v1085, 1.442695
    %v1133 = vpow.pop %v1132
    %v1134 = vmul.f32 %v1086, 1.442695
    %v1135 = vpow.pop %v1134
    %v1136 = vmul.f32 %v1087, 1.442695
    %v1137 = vpow.pop %v1136
    %v1138 = vmul.f32 %v1088, 1.442695
    %v1139 = vpow.pop %v1138
    %v1140 = vmul.f32 %v1089, 1.442695
    %v1141 = vpow.pop %v1140
    %v1142 = vmul.f32 %v1090, 1.442695
    %v1143 = vpow.pop %v1142
    %v1144 = vmul.f32 %v1091, 1.442695
    %v1145 = vpow.pop %v1144
    %v1146 = vmul.f32 %v1092, 1.442695
    %v1147 = vpow.pop %v1146
    %v1148 = vmul.f32 %v1093, 1.442695
    %v1149 = vpow.pop %v1148
    %v1150 = vmul.f32 %v1094, 1.442695
    %v1151 = vpow.pop %v1150
    %v1152 = vmul.f32 %v1095, 1.442695
    %v1153 = vpow.pop %v1152
    %v1154 = vmul.f32 %v1096, 1.442695
    %v1155 = vpow.pop %v1154
    %v1156 = vmul.f32 %v1097, 1.442695
    %v1157 = vpow.pop %v1156
    %v1158 = vmul.f32 %v1098, 1.442695
    %v1159 = vpow.pop %v1158
    %v1160 = vmul.f32 %v1099, 1.442695
    %v1161 = vpow.pop %v1160
    %v1162 = vmul.f32 %v1100, 1.442695
    %v1163 = vpow.pop %v1162
    %v1164 = vmul.f32 %v1101, 1.442695
    %v1165 = vpow.pop %v1164
    %v1166 = vsub.f32 %v1103, 1.0
    %v1167 = vsub.f32 %v1105, 1.0
    %v1168 = vsub.f32 %v1107, 1.0
    %v1169 = vsub.f32 %v1109, 1.0
    %v1170 = vsub.f32 %v1111, 1.0
    %v1171 = vsub.f32 %v1113, 1.0
    %v1172 = vsub.f32 %v1115, 1.0
    %v1173 = vsub.f32 %v1117, 1.0
    %v1174 = vsub.f32 %v1119, 1.0
    %v1175 = vsub.f32 %v1121, 1.0
    %v1176 = vsub.f32 %v1123, 1.0
    %v1177 = vsub.f32 %v1125, 1.0
    %v1178 = vsub.f32 %v1127, 1.0
    %v1179 = vsub.f32 %v1129, 1.0
    %v1180 = vsub.f32 %v1131, 1.0
    %v1181 = vsub.f32 %v1133, 1.0
    %v1182 = vsub.f32 %v1135, 1.0
    %v1183 = vsub.f32 %v1137, 1.0
    %v1184 = vsub.f32 %v1139, 1.0
    %v1185 = vsub.f32 %v1141, 1.0
    %v1186 = vsub.f32 %v1143, 1.0
    %v1187 = vsub.f32 %v1145, 1.0
    %v1188 = vsub.f32 %v1147, 1.0
    %v1189 = vsub.f32 %v1149, 1.0
    %v1190 = vsub.f32 %v1151, 1.0
    %v1191 = vsub.f32 %v1153, 1.0
    %v1192 = vsub.f32 %v1155, 1.0
    %v1193 = vsub.f32 %v1157, 1.0
    %v1194 = vsub.f32 %v1159, 1.0
    %v1195 = vsub.f32 %v1161, 1.0
    %v1196 = vsub.f32 %v1163, 1.0
    %v1197 = vsub.f32 %v1165, 1.0
    %v1198 = vsel %vm1038, %v508, %v1166
    %v1199 = vsel %vm1039, %v510, %v1167
    %v1200 = vsel %vm1040, %v512, %v1168
    %v1201 = vsel %vm1041, %v514, %v1169
    %v1202 = vsel %vm1042, %v518, %v1170
    %v1203 = vsel %vm1043, %v520, %v1171
    %v1204 = vsel %vm1044, %v522, %v1172
    %v1205 = vsel %vm1045, %v524, %v1173
    %v1206 = vsel %vm1046, %v528, %v1174
    %v1207 = vsel %vm1047, %v530, %v1175
    %v1208 = vsel %vm1048, %v532, %v1176
    %v1209 = vsel %vm1049, %v534, %v1177
    %v1210 = vsel %vm1050, %v538, %v1178
    %v1211 = vsel %vm1051, %v540, %v1179
    %v1212 = vsel %vm1052, %v542, %v1180
    %v1213 = vsel %vm1053, %v544, %v1181
    %v1214 = vsel %vm1054, %v548, %v1182
    %v1215 = vsel %vm1055, %v550, %v1183
    %v1216 = vsel %vm1056, %v552, %v1184
    %v1217 = vsel %vm1057, %v554, %v1185
    %v1218 = vsel %vm1058, %v558, %v1186
    %v1219 = vsel %vm1059, %v560, %v1187
    %v1220 = vsel %vm1060, %v562, %v1188
    %v1221 = vsel %vm1061, %v564, %v1189
    %v1222 = vsel %vm1062, %v568, %v1190
    %v1223 = vsel %vm1063, %v570, %v1191
    %v1224 = vsel %vm1064, %v572, %v1192
    %v1225 = vsel %vm1065, %v574, %v1193
    %v1226 = vsel %vm1066, %v578, %v1194
    %v1227 = vsel %vm1067, %v580, %v1195
    %v1228 = vsel %vm1068, %v582, %v1196
    %v1229 = vsel %vm1069, %v584, %v1197
    %v1230 = vpack.c.bf16 %v1200, %v1198
    %v1231 = vpack.c.bf16 %v1201, %v1199
    %v1232 = vpack.c.bf16 %v1204, %v1202
    %v1233 = vpack.c.bf16 %v1205, %v1203
    %v1234 = vpack.c.bf16 %v1208, %v1206
    %v1235 = vpack.c.bf16 %v1209, %v1207
    %v1236 = vpack.c.bf16 %v1212, %v1210
    %v1237 = vpack.c.bf16 %v1213, %v1211
    %v1238 = vpack.c.bf16 %v1216, %v1214
    %v1239 = vpack.c.bf16 %v1217, %v1215
    %v1240 = vpack.c.bf16 %v1220, %v1218
    %v1241 = vpack.c.bf16 %v1221, %v1219
    %v1242 = vpack.c.bf16 %v1224, %v1222
    %v1243 = vpack.c.bf16 %v1225, %v1223
    %v1244 = vpack.c.bf16 %v1228, %v1226
    %v1245 = vpack.c.bf16 %v1229, %v1227
    %v1246 = vld [vmem:[#allocation7] sm:$0xf]
    %v1247 = vld [vmem:[#allocation7 + $0x4] sm:$0xf]
    %v1248 = vld [vmem:[#allocation7 + $0x8] sm:$0xf]
    %v1249 = vld [vmem:[#allocation7 + $0xc] sm:$0xf]
    %v1250 = vld [vmem:[#allocation7 + $0x10] sm:$0xf]
    %v1251 = vld [vmem:[#allocation7 + $0x14] sm:$0xf]
    %v1252 = vld [vmem:[#allocation7 + $0x18] sm:$0xf]
    %v1253 = vld [vmem:[#allocation7 + $0x1c] sm:$0xf]
    %v1254 = vld [vmem:[#allocation7 + $0x20] sm:$0xf]
    %v1255 = vld [vmem:[#allocation7 + $0x24] sm:$0xf]
    %v1256 = vld [vmem:[#allocation7 + $0x28] sm:$0xf]
    %v1257 = vld [vmem:[#allocation7 + $0x2c] sm:$0xf]
    %v1258 = vld [vmem:[#allocation7 + $0x30] sm:$0xf]
    %v1259 = vld [vmem:[#allocation7 + $0x34] sm:$0xf]
    %v1260 = vld [vmem:[#allocation7 + $0x38] sm:$0xf]
    %v1261 = vld [vmem:[#allocation7 + $0x3c] sm:$0xf]
    %v1262 = vld [vmem:[#allocation7 + $0x40] sm:$0xf]
    %v1263 = vld [vmem:[#allocation7 + $0x44] sm:$0xf]
    %v1264 = vld [vmem:[#allocation7 + $0x48] sm:$0xf]
    %v1265 = vld [vmem:[#allocation7 + $0x4c] sm:$0xf]
    %v1266 = vld [vmem:[#allocation7 + $0x50] sm:$0xf]
    %v1267 = vld [vmem:[#allocation7 + $0x54] sm:$0xf]
    %v1268 = vld [vmem:[#allocation7 + $0x58] sm:$0xf]
    %v1269 = vld [vmem:[#allocation7 + $0x5c] sm:$0xf]
    %v1270 = vld [vmem:[#allocation7 + $0x60] sm:$0xf]
    %v1271 = vld [vmem:[#allocation7 + $0x64] sm:$0xf]
    %v1272 = vld [vmem:[#allocation7 + $0x68] sm:$0xf]
    %v1273 = vld [vmem:[#allocation7 + $0x6c] sm:$0xf]
    %v1274 = vld [vmem:[#allocation7 + $0x70] sm:$0xf]
    %v1275 = vld [vmem:[#allocation7 + $0x74] sm:$0xf]
    %v1276 = vld [vmem:[#allocation7 + $0x78] sm:$0xf]
    %v1277 = vld [vmem:[#allocation7 + $0x7c] sm:$0xf]
    %v1278 = vld [vmem:[%s7 + $0xa] sm:$0x1]
    %v1280 = vlaneseq
    %v1281 = vshrl.u32 %v1280, 7
    %v1282 = vsub.s32 0, %v1281
    %v1283 = vrot.slane %v1278, %v1282
    %v1317 = vunpack.c.l.b16 %v1246
    %v1318 = vunpack.c.l.b16 %v1247
    %v1319 = vunpack.c.l.b16 %v1248
    %v1320 = vunpack.c.l.b16 %v1249
    %v1321 = vunpack.c.l.b16 %v1250
    %v1322 = vunpack.c.l.b16 %v1251
    %v1323 = vunpack.c.l.b16 %v1252
    %v1324 = vunpack.c.l.b16 %v1253
    %v1325 = vunpack.c.l.b16 %v1254
    %v1326 = vunpack.c.l.b16 %v1255
    %v1327 = vunpack.c.l.b16 %v1256
    %v1328 = vunpack.c.l.b16 %v1257
    %v1329 = vunpack.c.l.b16 %v1258
    %v1330 = vunpack.c.l.b16 %v1259
    %v1331 = vunpack.c.l.b16 %v1260
    %v1332 = vunpack.c.l.b16 %v1261
    %v1333 = vunpack.c.l.b16 %v1262
    %v1334 = vunpack.c.l.b16 %v1263
    %v1335 = vunpack.c.l.b16 %v1264
    %v1336 = vunpack.c.l.b16 %v1265
    %v1337 = vunpack.c.l.b16 %v1266
    %v1338 = vunpack.c.l.b16 %v1267
    %v1339 = vunpack.c.l.b16 %v1268
    %v1340 = vunpack.c.l.b16 %v1269
    %v1341 = vunpack.c.l.b16 %v1270
    %v1342 = vunpack.c.l.b16 %v1271
    %v1343 = vunpack.c.l.b16 %v1272
    %v1344 = vunpack.c.l.b16 %v1273
    %v1345 = vunpack.c.l.b16 %v1274
    %v1346 = vunpack.c.l.b16 %v1275
    %v1347 = vunpack.c.l.b16 %v1276
    %v1348 = vunpack.c.l.b16 %v1277
    %v1349 = vpack.c.b16 %v1318, %v1317
    %v1350 = vpack.c.b16 %v1320, %v1319
    %v1351 = vpack.c.b16 %v1322, %v1321
    %v1352 = vpack.c.b16 %v1324, %v1323
    %v1353 = vpack.c.b16 %v1326, %v1325
    %v1354 = vpack.c.b16 %v1328, %v1327
    %v1355 = vpack.c.b16 %v1330, %v1329
    %v1356 = vpack.c.b16 %v1332, %v1331
    %v1357 = vpack.c.b16 %v1334, %v1333
    %v1358 = vpack.c.b16 %v1336, %v1335
    %v1359 = vpack.c.b16 %v1338, %v1337
    %v1360 = vpack.c.b16 %v1340, %v1339
    %v1361 = vpack.c.b16 %v1342, %v1341
    %v1362 = vpack.c.b16 %v1344, %v1343
    %v1363 = vpack.c.b16 %v1346, %v1345
    %v1364 = vpack.c.b16 %v1348, %v1347
    %1381 = vmatprep.subr.bf16.mxu0 0
    %1382 = vmatpush1.bf16.msra.mxu0 %v1349
    %1383 = vmatprep.subr.bf16.mxu0 0
    %1384 = vmatpush1.bf16.msra.mxu0 %v1350
    %1385 = vmatprep.subr.bf16.mxu0 0
    %1386 = vmatpush1.bf16.msra.mxu0 %v1351
    %1387 = vmatprep.subr.bf16.mxu0 0
    %1388 = vmatpush1.bf16.msra.mxu0 %v1352
    %1389 = vmatprep.subr.bf16.mxu0 0
    %1390 = vmatpush1.bf16.msra.mxu0 %v1353
    %1391 = vmatprep.subr.bf16.mxu0 0
    %1392 = vmatpush1.bf16.msra.mxu0 %v1354
    %1393 = vmatprep.subr.bf16.mxu0 0
    %1394 = vmatpush1.bf16.msra.mxu0 %v1355
    %1395 = vmatprep.subr.bf16.mxu0 0
    %1396 = vmatpush1.bf16.msra.mxu0 %v1356
    %1397 = vmatprep.subr.bf16.mxu0 0
    %1398 = vmatpush1.bf16.msra.mxu0 %v1357
    %1399 = vmatprep.subr.bf16.mxu0 0
    %1400 = vmatpush1.bf16.msra.mxu0 %v1358
    %1401 = vmatprep.subr.bf16.mxu0 0
    %1402 = vmatpush1.bf16.msra.mxu0 %v1359
    %1403 = vmatprep.subr.bf16.mxu0 0
    %1404 = vmatpush1.bf16.msra.mxu0 %v1360
    %1405 = vmatprep.subr.bf16.mxu0 0
    %1406 = vmatpush1.bf16.msra.mxu0 %v1361
    %1407 = vmatprep.subr.bf16.mxu0 0
    %1408 = vmatpush1.bf16.msra.mxu0 %v1362
    %1409 = vmatprep.subr.bf16.mxu0 0
    %1410 = vmatpush1.bf16.msra.mxu0 %v1363
    %1411 = vmatprep.subr.bf16.mxu0 0
    %1412 = vmatpush1.bf16.msra.mxu0 %v1364
    %1413 = vmatprep.mubr.bf16.mxu0 %v1231
    %1414 = vmatmul.mubr.bf16.gmra.mrb[0].mxu0 %v1230
    %v1415 = vpop.f32.mrb[0].mxu0
    %v1416 = vadd.f32 %v1283, %v1415
    %v1417 = vpop.f32.mrb[0].mxu0
    %v1418 = vpop.f32.mrb[0].mxu0
    %v1419 = vadd.f32 %v1283, %v1418
    %v1420 = vpop.f32.mrb[0].mxu0
    %1421 = vmatprep.mubr.bf16.mxu0 %v1233
    %1422 = vmatmul.mubr.bf16.gmra.mrb[0].mxu0 %v1232
    %v1423 = vpop.f32.mrb[0].mxu0
    %v1424 = vadd.f32 %v1283, %v1423
    %v1425 = vpop.f32.mrb[0].mxu0
    %v1426 = vpop.f32.mrb[0].mxu0
    %v1427 = vadd.f32 %v1283, %v1426
    %v1428 = vpop.f32.mrb[0].mxu0
    %1429 = vmatprep.mubr.bf16.mxu0 %v1235
    %1430 = vmatmul.mubr.bf16.gmra.mrb[0].mxu0 %v1234
    %v1431 = vpop.f32.mrb[0].mxu0
    %v1432 = vadd.f32 %v1283, %v1431
    %v1433 = vpop.f32.mrb[0].mxu0
    %v1434 = vpop.f32.mrb[0].mxu0
    %v1435 = vadd.f32 %v1283, %v1434
    %v1436 = vpop.f32.mrb[0].mxu0
    %1437 = vmatprep.mubr.bf16.mxu0 %v1237
    %1438 = vmatmul.mubr.bf16.gmra.mrb[0].mxu0 %v1236
    %v1439 = vpop.f32.mrb[0].mxu0
    %v1440 = vadd.f32 %v1283, %v1439
    %v1441 = vpop.f32.mrb[0].mxu0
    %v1442 = vpop.f32.mrb[0].mxu0
    %v1443 = vadd.f32 %v1283, %v1442
    %v1444 = vpop.f32.mrb[0].mxu0
    %1445 = vmatprep.mubr.bf16.mxu0 %v1239
    %1446 = vmatmul.mubr.bf16.gmra.mrb[0].mxu0 %v1238
    %v1447 = vpop.f32.mrb[0].mxu0
    %v1448 = vadd.f32 %v1283, %v1447
    %v1449 = vpop.f32.mrb[0].mxu0
    %v1450 = vpop.f32.mrb[0].mxu0
    %v1451 = vadd.f32 %v1283, %v1450
    %v1452 = vpop.f32.mrb[0].mxu0
    %1453 = vmatprep.mubr.bf16.mxu0 %v1241
    %1454 = vmatmul.mubr.bf16.gmra.mrb[0].mxu0 %v1240
    %v1455 = vpop.f32.mrb[0].mxu0
    %v1456 = vadd.f32 %v1283, %v1455
    %v1457 = vpop.f32.mrb[0].mxu0
    %v1458 = vpop.f32.mrb[0].mxu0
    %v1459 = vadd.f32 %v1283, %v1458
    %v1460 = vpop.f32.mrb[0].mxu0
    %1461 = vmatprep.mubr.bf16.mxu0 %v1243
    %1462 = vmatmul.mubr.bf16.gmra.mrb[0].mxu0 %v1242
    %v1463 = vpop.f32.mrb[0].mxu0
    %v1464 = vadd.f32 %v1283, %v1463
    %v1465 = vpop.f32.mrb[0].mxu0
    %v1466 = vpop.f32.mrb[0].mxu0
    %v1467 = vadd.f32 %v1283, %v1466
    %v1468 = vpop.f32.mrb[0].mxu0
    %1469 = vmatprep.mubr.bf16.mxu0 %v1245
    %1470 = vmatmul.mubr.bf16.gmra.mrb[0].mxu0 %v1244
    %v1471 = vpop.f32.mrb[0].mxu0
    %v1472 = vadd.f32 %v1283, %v1471
    %v1473 = vpop.f32.mrb[0].mxu0
    %v1474 = vpop.f32.mrb[0].mxu0
    %v1475 = vadd.f32 %v1283, %v1474
    %v1476 = vpop.f32.mrb[0].mxu0
    %1477 = vdwg.mxu0
    %vm1478 = vcmp.gt.f32.partialorder %v1416, 0.0
    %vm1479 = vcmp.gt.f32.partialorder %v1419, 0.0
    %vm1480 = vcmp.gt.f32.partialorder %v1424, 0.0
    %vm1481 = vcmp.gt.f32.partialorder %v1427, 0.0
    %vm1482 = vcmp.gt.f32.partialorder %v1432, 0.0
    %vm1483 = vcmp.gt.f32.partialorder %v1435, 0.0
    %vm1484 = vcmp.gt.f32.partialorder %v1440, 0.0
    %vm1485 = vcmp.gt.f32.partialorder %v1443, 0.0
    %vm1486 = vcmp.gt.f32.partialorder %v1448, 0.0
    %vm1487 = vcmp.gt.f32.partialorder %v1451, 0.0
    %vm1488 = vcmp.gt.f32.partialorder %v1456, 0.0
    %vm1489 = vcmp.gt.f32.partialorder %v1459, 0.0
    %vm1490 = vcmp.gt.f32.partialorder %v1464, 0.0
    %vm1491 = vcmp.gt.f32.partialorder %v1467, 0.0
    %vm1492 = vcmp.gt.f32.partialorder %v1472, 0.0
    %vm1493 = vcmp.gt.f32.partialorder %v1475, 0.0
    %v1494 = vmin.f32 %v1416, 0.0
    %v1495 = vmin.f32 %v1419, 0.0
    %v1496 = vmin.f32 %v1424, 0.0
    %v1497 = vmin.f32 %v1427, 0.0
    %v1498 = vmin.f32 %v1432, 0.0
    %v1499 = vmin.f32 %v1435, 0.0
    %v1500 = vmin.f32 %v1440, 0.0
    %v1501 = vmin.f32 %v1443, 0.0
    %v1502 = vmin.f32 %v1448, 0.0
    %v1503 = vmin.f32 %v1451, 0.0
    %v1504 = vmin.f32 %v1456, 0.0
    %v1505 = vmin.f32 %v1459, 0.0
    %v1506 = vmin.f32 %v1464, 0.0
    %v1507 = vmin.f32 %v1467, 0.0
    %v1508 = vmin.f32 %v1472, 0.0
    %v1509 = vmin.f32 %v1475, 0.0
    %v1510 = vmul.f32 %v1494, 1.442695
    %v1511 = vpow.pop %v1510
    %v1512 = vmul.f32 %v1495, 1.442695
    %v1513 = vpow.pop %v1512
    %v1514 = vmul.f32 %v1496, 1.442695
    %v1515 = vpow.pop %v1514
    %v1516 = vmul.f32 %v1497, 1.442695
    %v1517 = vpow.pop %v1516
    %v1518 = vmul.f32 %v1498, 1.442695
    %v1519 = vpow.pop %v1518
    %v1520 = vmul.f32 %v1499, 1.442695
    %v1521 = vpow.pop %v1520
    %v1522 = vmul.f32 %v1500, 1.442695
    %v1523 = vpow.pop %v1522
    %v1524 = vmul.f32 %v1501, 1.442695
    %v1525 = vpow.pop %v1524
    %v1526 = vmul.f32 %v1502, 1.442695
    %v1527 = vpow.pop %v1526
    %v1528 = vmul.f32 %v1503, 1.442695
    %v1529 = vpow.pop %v1528
    %v1530 = vmul.f32 %v1504, 1.442695
    %v1531 = vpow.pop %v1530
    %v1532 = vmul.f32 %v1505, 1.442695
    %v1533 = vpow.pop %v1532
    %v1534 = vmul.f32 %v1506, 1.442695
    %v1535 = vpow.pop %v1534
    %v1536 = vmul.f32 %v1507, 1.442695
    %v1537 = vpow.pop %v1536
    %v1538 = vmul.f32 %v1508, 1.442695
    %v1539 = vpow.pop %v1538
    %v1540 = vmul.f32 %v1509, 1.442695
    %v1541 = vpow.pop %v1540
    %v1542 = vsub.f32 %v1511, 1.0
    %v1543 = vsub.f32 %v1513, 1.0
    %v1544 = vsub.f32 %v1515, 1.0
    %v1545 = vsub.f32 %v1517, 1.0
    %v1546 = vsub.f32 %v1519, 1.0
    %v1547 = vsub.f32 %v1521, 1.0
    %v1548 = vsub.f32 %v1523, 1.0
    %v1549 = vsub.f32 %v1525, 1.0
    %v1550 = vsub.f32 %v1527, 1.0
    %v1551 = vsub.f32 %v1529, 1.0
    %v1552 = vsub.f32 %v1531, 1.0
    %v1553 = vsub.f32 %v1533, 1.0
    %v1554 = vsub.f32 %v1535, 1.0
    %v1555 = vsub.f32 %v1537, 1.0
    %v1556 = vsub.f32 %v1539, 1.0
    %v1557 = vsub.f32 %v1541, 1.0
    %v1558 = vsel %vm1478, %v1416, %v1542
    %v1559 = vsel %vm1479, %v1419, %v1543
    %v1560 = vsel %vm1480, %v1424, %v1544
    %v1561 = vsel %vm1481, %v1427, %v1545
    %v1562 = vsel %vm1482, %v1432, %v1546
    %v1563 = vsel %vm1483, %v1435, %v1547
    %v1564 = vsel %vm1484, %v1440, %v1548
    %v1565 = vsel %vm1485, %v1443, %v1549
    %v1566 = vsel %vm1486, %v1448, %v1550
    %v1567 = vsel %vm1487, %v1451, %v1551
    %v1568 = vsel %vm1488, %v1456, %v1552
    %v1569 = vsel %vm1489, %v1459, %v1553
    %v1570 = vsel %vm1490, %v1464, %v1554
    %v1571 = vsel %vm1491, %v1467, %v1555
    %v1572 = vsel %vm1492, %v1472, %v1556
    %v1573 = vsel %vm1493, %v1475, %v1557
    %v1574 = vpack.c.bf16 %v1559, %v1558
    %v1575 = vpack.c.bf16 %v1561, %v1560
    %v1576 = vpack.c.bf16 %v1563, %v1562
    %v1577 = vpack.c.bf16 %v1565, %v1564
    %v1578 = vpack.c.bf16 %v1567, %v1566
    %v1579 = vpack.c.bf16 %v1569, %v1568
    %v1580 = vpack.c.bf16 %v1571, %v1570
    %v1581 = vpack.c.bf16 %v1573, %v1572
    %v1582 = vld [vmem:[%s5] sm:$0xf]
    %v1583 = vld [vmem:[%s5 + $0x4] sm:$0xf]
    %v1584 = vld [vmem:[%s5 + $0x8] sm:$0xf]
    %v1585 = vld [vmem:[%s5 + $0xc] sm:$0xf]
    %v1586 = vld [vmem:[%s5 + $0x10] sm:$0xf]
    %v1587 = vld [vmem:[%s5 + $0x14] sm:$0xf]
    %v1588 = vld [vmem:[%s5 + $0x18] sm:$0xf]
    %v1589 = vld [vmem:[%s5 + $0x1c] sm:$0xf]
    %v1590 = vld [vmem:[%s5 + $0x20] sm:$0xf]
    %v1591 = vld [vmem:[%s5 + $0x24] sm:$0xf]
    %v1592 = vld [vmem:[%s5 + $0x28] sm:$0xf]
    %v1593 = vld [vmem:[%s5 + $0x2c] sm:$0xf]
    %v1594 = vld [vmem:[%s5 + $0x30] sm:$0xf]
    %v1595 = vld [vmem:[%s5 + $0x34] sm:$0xf]
    %v1596 = vld [vmem:[%s5 + $0x38] sm:$0xf]
    %v1597 = vld [vmem:[%s5 + $0x3c] sm:$0xf]
    %v1598 = vld [vmem:[%s7 + $0x11] sm:$0x1]
    %v1600 = vlaneseq
    %v1601 = vshrl.u32 %v1600, 7
    %v1602 = vsub.s32 0, %v1601
    %v1603 = vrot.slane %v1598, %v1602
    %v1621 = vunpack.c.l.b16 %v1582
    %v1622 = vunpack.c.l.b16 %v1583
    %v1623 = vunpack.c.l.b16 %v1584
    %v1624 = vunpack.c.l.b16 %v1585
    %v1625 = vunpack.c.l.b16 %v1586
    %v1626 = vunpack.c.l.b16 %v1587
    %v1627 = vunpack.c.l.b16 %v1588
    %v1628 = vunpack.c.l.b16 %v1589
    %v1629 = vunpack.c.l.b16 %v1590
    %v1630 = vunpack.c.l.b16 %v1591
    %v1631 = vunpack.c.l.b16 %v1592
    %v1632 = vunpack.c.l.b16 %v1593
    %v1633 = vunpack.c.l.b16 %v1594
    %v1634 = vunpack.c.l.b16 %v1595
    %v1635 = vunpack.c.l.b16 %v1596
    %v1636 = vunpack.c.l.b16 %v1597
    %v1637 = vpack.c.b16 %v1622, %v1621
    %v1638 = vpack.c.b16 %v1624, %v1623
    %v1639 = vpack.c.b16 %v1626, %v1625
    %v1640 = vpack.c.b16 %v1628, %v1627
    %v1641 = vpack.c.b16 %v1630, %v1629
    %v1642 = vpack.c.b16 %v1632, %v1631
    %v1643 = vpack.c.b16 %v1634, %v1633
    %v1644 = vpack.c.b16 %v1636, %v1635
    %1653 = vmatprep.subr.bf16.mxu0 0
    %1654 = vmatpush1.bf16.msra.mxu0 %v1637
    %1655 = vmatprep.subr.bf16.mxu0 0
    %1656 = vmatpush1.bf16.msra.mxu0 %v1638
    %1657 = vmatprep.subr.bf16.mxu0 0
    %1658 = vmatpush1.bf16.msra.mxu0 %v1639
    %1659 = vmatprep.subr.bf16.mxu0 0
    %1660 = vmatpush1.bf16.msra.mxu0 %v1640
    %1661 = vmatprep.subr.bf16.mxu0 0
    %1662 = vmatpush1.bf16.msra.mxu0 %v1641
    %1663 = vmatprep.subr.bf16.mxu0 0
    %1664 = vmatpush1.bf16.msra.mxu0 %v1642
    %1665 = vmatprep.subr.bf16.mxu0 0
    %1666 = vmatpush1.bf16.msra.mxu0 %v1643
    %1667 = vmatprep.subr.bf16.mxu0 0
    %1668 = vmatpush1.bf16.msra.mxu0 %v1644
    %1669 = vmatprep.subr.bf16.mxu0 0
    %1670 = vmatpush1.bf16.msra.mxu0 0
    %1671 = vmatprep.subr.bf16.mxu0 0
    %1672 = vmatpush1.bf16.msra.mxu0 0
    %1673 = vmatprep.subr.bf16.mxu0 0
    %1674 = vmatpush1.bf16.msra.mxu0 0
    %1675 = vmatprep.subr.bf16.mxu0 0
    %1676 = vmatpush1.bf16.msra.mxu0 0
    %1677 = vmatprep.subr.bf16.mxu0 0
    %1678 = vmatpush1.bf16.msra.mxu0 0
    %1679 = vmatprep.subr.bf16.mxu0 0
    %1680 = vmatpush1.bf16.msra.mxu0 0
    %1681 = vmatprep.subr.bf16.mxu0 0
    %1682 = vmatpush1.bf16.msra.mxu0 0
    %1683 = vmatprep.subr.bf16.mxu0 0
    %1684 = vmatpush1.bf16.msra.mxu0 0
    %1685 = vmatprep.mubr.bf16.mxu0 0
    %1686 = vmatmul.mubr.bf16.gmra.mrb[0].mxu0 %v1574
    %v1687 = vpop.f32.mrb[0].mxu0
    %v1688 = vadd.f32 %v1603, %v1687
    %v1689 = vpop.f32.mrb[0].mxu0
    %v1690 = vpop.f32.mrb[0].mxu0
    %v1691 = vadd.f32 %v1603, %v1690
    %v1692 = vpop.f32.mrb[0].mxu0
    %1693 = vmatprep.mubr.bf16.mxu0 0
    %1694 = vmatmul.mubr.bf16.gmra.mrb[0].mxu0 %v1575
    %v1695 = vpop.f32.mrb[0].mxu0
    %v1696 = vadd.f32 %v1603, %v1695
    %v1697 = vpop.f32.mrb[0].mxu0
    %v1698 = vpop.f32.mrb[0].mxu0
    %v1699 = vadd.f32 %v1603, %v1698
    %v1700 = vpop.f32.mrb[0].mxu0
    %1701 = vmatprep.mubr.bf16.mxu0 0
    %1702 = vmatmul.mubr.bf16.gmra.mrb[0].mxu0 %v1576
    %v1703 = vpop.f32.mrb[0].mxu0
    %v1704 = vadd.f32 %v1603, %v1703
    %v1705 = vpop.f32.mrb[0].mxu0
    %v1706 = vpop.f32.mrb[0].mxu0
    %v1707 = vadd.f32 %v1603, %v1706
    %v1708 = vpop.f32.mrb[0].mxu0
    %1709 = vmatprep.mubr.bf16.mxu0 0
    %1710 = vmatmul.mubr.bf16.gmra.mrb[0].mxu0 %v1577
    %v1711 = vpop.f32.mrb[0].mxu0
    %v1712 = vadd.f32 %v1603, %v1711
    %v1713 = vpop.f32.mrb[0].mxu0
    %v1714 = vpop.f32.mrb[0].mxu0
    %v1715 = vadd.f32 %v1603, %v1714
    %v1716 = vpop.f32.mrb[0].mxu0
    %1717 = vmatprep.mubr.bf16.mxu0 0
    %1718 = vmatmul.mubr.bf16.gmra.mrb[0].mxu0 %v1578
    %v1719 = vpop.f32.mrb[0].mxu0
    %v1720 = vadd.f32 %v1603, %v1719
    %v1721 = vpop.f32.mrb[0].mxu0
    %v1722 = vpop.f32.mrb[0].mxu0
    %v1723 = vadd.f32 %v1603, %v1722
    %v1724 = vpop.f32.mrb[0].mxu0
    %1725 = vmatprep.mubr.bf16.mxu0 0
    %1726 = vmatmul.mubr.bf16.gmra.mrb[0].mxu0 %v1579
    %v1727 = vpop.f32.mrb[0].mxu0
    %v1728 = vadd.f32 %v1603, %v1727
    %v1729 = vpop.f32.mrb[0].mxu0
    %v1730 = vpop.f32.mrb[0].mxu0
    %v1731 = vadd.f32 %v1603, %v1730
    %v1732 = vpop.f32.mrb[0].mxu0
    %1733 = vmatprep.mubr.bf16.mxu0 0
    %1734 = vmatmul.mubr.bf16.gmra.mrb[0].mxu0 %v1580
    %v1735 = vpop.f32.mrb[0].mxu0
    %v1736 = vadd.f32 %v1603, %v1735
    %v1737 = vpop.f32.mrb[0].mxu0
    %v1738 = vpop.f32.mrb[0].mxu0
    %v1739 = vadd.f32 %v1603, %v1738
    %v1740 = vpop.f32.mrb[0].mxu0
    %1741 = vmatprep.mubr.bf16.mxu0 0
    %1742 = vmatmul.mubr.bf16.gmra.mrb[0].mxu0 %v1581
    %v1743 = vpop.f32.mrb[0].mxu0
    %v1744 = vadd.f32 %v1603, %v1743
    %v1745 = vpop.f32.mrb[0].mxu0
    %v1746 = vpop.f32.mrb[0].mxu0
    %v1747 = vadd.f32 %v1603, %v1746
    %v1748 = vpop.f32.mrb[0].mxu0
    %1749 = vdwg.mxu0
    %v1750 = vpack.c.bf16 %v1691, %v1688
    %v1751 = vpack.c.bf16 %v1699, %v1696
    %v1752 = vpack.c.bf16 %v1707, %v1704
    %v1753 = vpack.c.bf16 %v1715, %v1712
    %v1754 = vpack.c.bf16 %v1723, %v1720
    %v1755 = vpack.c.bf16 %v1731, %v1728
    %v1756 = vpack.c.bf16 %v1739, %v1736
    %v1757 = vpack.c.bf16 %v1747, %v1744
    %v1758 = vld [vmem:[#allocation4] sm:$0xff]
    %v1759 = vld [vmem:[#allocation4 + $0x8] sm:$0xff]
    %v1760 = vld [vmem:[#allocation4 + $0x10] sm:$0xff]
    %v1761 = vld [vmem:[#allocation4 + $0x18] sm:$0xff]
    %v1762 = vld [vmem:[#allocation4 + $0x20] sm:$0xff]
    %v1763 = vld [vmem:[#allocation4 + $0x28] sm:$0xff]
    %v1764 = vld [vmem:[#allocation4 + $0x30] sm:$0xff]
    %v1765 = vld [vmem:[#allocation4 + $0x38] sm:$0xff]
    %v1766 = vld [vmem:[#allocation4 + $0x40] sm:$0xff]
    %v1767 = vld [vmem:[#allocation4 + $0x48] sm:$0xff]
    %v1768 = vld [vmem:[#allocation4 + $0x50] sm:$0xff]
    %v1769 = vld [vmem:[#allocation4 + $0x58] sm:$0xff]
    %v1770 = vld [vmem:[#allocation4 + $0x60] sm:$0xff]
    %v1771 = vld [vmem:[#allocation4 + $0x68] sm:$0xff]
    %v1772 = vld [vmem:[#allocation4 + $0x70] sm:$0xff]
    %v1773 = vld [vmem:[#allocation4 + $0x78] sm:$0xff]
    %v1774 = vld [vmem:[#allocation4 + $0x80] sm:$0xff]
    %v1775 = vld [vmem:[#allocation4 + $0x88] sm:$0xff]
    %v1776 = vld [vmem:[#allocation4 + $0x90] sm:$0xff]
    %v1777 = vld [vmem:[#allocation4 + $0x98] sm:$0xff]
    %v1778 = vld [vmem:[#allocation4 + $0xa0] sm:$0xff]
    %v1779 = vld [vmem:[#allocation4 + $0xa8] sm:$0xff]
    %v1780 = vld [vmem:[#allocation4 + $0xb0] sm:$0xff]
    %v1781 = vld [vmem:[#allocation4 + $0xb8] sm:$0xff]
    %v1782 = vld [vmem:[#allocation4 + $0xc0] sm:$0xff]
    %v1783 = vld [vmem:[#allocation4 + $0xc8] sm:$0xff]
    %v1784 = vld [vmem:[#allocation4 + $0xd0] sm:$0xff]
    %v1785 = vld [vmem:[#allocation4 + $0xd8] sm:$0xff]
    %v1786 = vld [vmem:[#allocation4 + $0xe0] sm:$0xff]
    %v1787 = vld [vmem:[#allocation4 + $0xe8] sm:$0xff]
    %v1788 = vld [vmem:[#allocation4 + $0xf0] sm:$0xff]
    %v1789 = vld [vmem:[#allocation4 + $0xf8] sm:$0xff]
    %v1822 = vunpack.c.l.b16 %v1758
    %v1823 = vunpack.c.h.b16 %v1758
    %v1824 = vunpack.c.l.b16 %v1759
    %v1825 = vunpack.c.h.b16 %v1759
    %v1826 = vunpack.c.l.b16 %v1760
    %v1827 = vunpack.c.h.b16 %v1760
    %v1828 = vunpack.c.l.b16 %v1761
    %v1829 = vunpack.c.h.b16 %v1761
    %v1830 = vunpack.c.l.b16 %v1762
    %v1831 = vunpack.c.h.b16 %v1762
    %v1832 = vunpack.c.l.b16 %v1763
    %v1833 = vunpack.c.h.b16 %v1763
    %v1834 = vunpack.c.l.b16 %v1764
    %v1835 = vunpack.c.h.b16 %v1764
    %v1836 = vunpack.c.l.b16 %v1765
    %v1837 = vunpack.c.h.b16 %v1765
    %v1838 = vunpack.c.l.b16 %v1766
    %v1839 = vunpack.c.h.b16 %v1766
    %v1840 = vunpack.c.l.b16 %v1767
    %v1841 = vunpack.c.h.b16 %v1767
    %v1842 = vunpack.c.l.b16 %v1768
    %v1843 = vunpack.c.h.b16 %v1768
    %v1844 = vunpack.c.l.b16 %v1769
    %v1845 = vunpack.c.h.b16 %v1769
    %v1846 = vunpack.c.l.b16 %v1770
    %v1847 = vunpack.c.h.b16 %v1770
    %v1848 = vunpack.c.l.b16 %v1771
    %v1849 = vunpack.c.h.b16 %v1771
    %v1850 = vunpack.c.l.b16 %v1772
    %v1851 = vunpack.c.h.b16 %v1772
    %v1852 = vunpack.c.l.b16 %v1773
    %v1853 = vunpack.c.h.b16 %v1773
    %v1854 = vunpack.c.l.b16 %v1774
    %v1855 = vunpack.c.h.b16 %v1774
    %v1856 = vunpack.c.l.b16 %v1775
    %v1857 = vunpack.c.h.b16 %v1775
    %v1858 = vunpack.c.l.b16 %v1776
    %v1859 = vunpack.c.h.b16 %v1776
    %v1860 = vunpack.c.l.b16 %v1777
    %v1861 = vunpack.c.h.b16 %v1777
    %v1862 = vunpack.c.l.b16 %v1778
    %v1863 = vunpack.c.h.b16 %v1778
    %v1864 = vunpack.c.l.b16 %v1779
    %v1865 = vunpack.c.h.b16 %v1779
    %v1866 = vunpack.c.l.b16 %v1780
    %v1867 = vunpack.c.h.b16 %v1780
    %v1868 = vunpack.c.l.b16 %v1781
    %v1869 = vunpack.c.h.b16 %v1781
    %v1870 = vunpack.c.l.b16 %v1782
    %v1871 = vunpack.c.h.b16 %v1782
    %v1872 = vunpack.c.l.b16 %v1783
    %v1873 = vunpack.c.h.b16 %v1783
    %v1874 = vunpack.c.l.b16 %v1784
    %v1875 = vunpack.c.h.b16 %v1784
    %v1876 = vunpack.c.l.b16 %v1785
    %v1877 = vunpack.c.h.b16 %v1785
    %v1878 = vunpack.c.l.b16 %v1786
    %v1879 = vunpack.c.h.b16 %v1786
    %v1880 = vunpack.c.l.b16 %v1787
    %v1881 = vunpack.c.h.b16 %v1787
    %v1882 = vunpack.c.l.b16 %v1788
    %v1883 = vunpack.c.h.b16 %v1788
    %v1884 = vunpack.c.l.b16 %v1789
    %v1885 = vunpack.c.h.b16 %v1789
    %v1886 = vpack.c.b16 %v1826, %v1822
    %v1887 = vpack.c.b16 %v1827, %v1823
    %v1888 = vpack.c.b16 %v1828, %v1824
    %v1889 = vpack.c.b16 %v1829, %v1825
    %v1890 = vpack.c.b16 %v1834, %v1830
    %v1891 = vpack.c.b16 %v1835, %v1831
    %v1892 = vpack.c.b16 %v1836, %v1832
    %v1893 = vpack.c.b16 %v1837, %v1833
    %v1894 = vpack.c.b16 %v1842, %v1838
    %v1895 = vpack.c.b16 %v1843, %v1839
    %v1896 = vpack.c.b16 %v1844, %v1840
    %v1897 = vpack.c.b16 %v1845, %v1841
    %v1898 = vpack.c.b16 %v1850, %v1846
    %v1899 = vpack.c.b16 %v1851, %v1847
    %v1900 = vpack.c.b16 %v1852, %v1848
    %v1901 = vpack.c.b16 %v1853, %v1849
    %v1902 = vpack.c.b16 %v1858, %v1854
    %v1903 = vpack.c.b16 %v1859, %v1855
    %v1904 = vpack.c.b16 %v1860, %v1856
    %v1905 = vpack.c.b16 %v1861, %v1857
    %v1906 = vpack.c.b16 %v1866, %v1862
    %v1907 = vpack.c.b16 %v1867, %v1863
    %v1908 = vpack.c.b16 %v1868, %v1864
    %v1909 = vpack.c.b16 %v1869, %v1865
    %v1910 = vpack.c.b16 %v1874, %v1870
    %v1911 = vpack.c.b16 %v1875, %v1871
    %v1912 = vpack.c.b16 %v1876, %v1872
    %v1913 = vpack.c.b16 %v1877, %v1873
    %v1914 = vpack.c.b16 %v1882, %v1878
    %v1915 = vpack.c.b16 %v1883, %v1879
    %v1916 = vpack.c.b16 %v1884, %v1880
    %v1917 = vpack.c.b16 %v1885, %v1881
    %1950 = vmatprep.subr.bf16.mxu0 %v1887
    %1951 = vmatpush1.bf16.msra.mxu0 %v1886
    %1952 = vmatprep.subr.bf16.mxu0 %v1891
    %1953 = vmatpush1.bf16.msra.mxu0 %v1890
    %1954 = vmatprep.subr.bf16.mxu0 %v1895
    %1955 = vmatpush1.bf16.msra.mxu0 %v1894
    %1956 = vmatprep.subr.bf16.mxu0 %v1899
    %1957 = vmatpush1.bf16.msra.mxu0 %v1898
    %1958 = vmatprep.subr.bf16.mxu0 %v1903
    %1959 = vmatpush1.bf16.msra.mxu0 %v1902
    %1960 = vmatprep.subr.bf16.mxu0 %v1907
    %1961 = vmatpush1.bf16.msra.mxu0 %v1906
    %1962 = vmatprep.subr.bf16.mxu0 %v1911
    %1963 = vmatpush1.bf16.msra.mxu0 %v1910
    %1964 = vmatprep.subr.bf16.mxu0 %v1915
    %1965 = vmatpush1.bf16.msra.mxu0 %v1914
    %1966 = vmatprep.subr.bf16.mxu0 0
    %1967 = vmatpush1.bf16.msra.mxu0 0
    %1968 = vmatprep.subr.bf16.mxu0 0
    %1969 = vmatpush1.bf16.msra.mxu0 0
    %1970 = vmatprep.subr.bf16.mxu0 0
    %1971 = vmatpush1.bf16.msra.mxu0 0
    %1972 = vmatprep.subr.bf16.mxu0 0
    %1973 = vmatpush1.bf16.msra.mxu0 0
    %1974 = vmatprep.subr.bf16.mxu0 0
    %1975 = vmatpush1.bf16.msra.mxu0 0
    %1976 = vmatprep.subr.bf16.mxu0 0
    %1977 = vmatpush1.bf16.msra.mxu0 0
    %1978 = vmatprep.subr.bf16.mxu0 0
    %1979 = vmatpush1.bf16.msra.mxu0 0
    %1980 = vmatprep.subr.bf16.mxu0 0
    %1981 = vmatpush1.bf16.msra.mxu0 0
    %1982 = vmatprep.mubr.bf16.mxu0 0
    %1983 = vmatmul.mubr.bf16.gmra.mrb[0].mxu0 %v1750
    %v1984 = vpop.f32.mrb[0].mxu0
    %v1985 = vadd.f32 0.0, %v1984
    %v1986 = vpop.f32.mrb[0].mxu0
    %v1987 = vadd.f32 0.0, %v1986
    %v1988 = vpop.f32.mrb[0].mxu0
    %v1989 = vadd.f32 0.0, %v1988
    %v1990 = vpop.f32.mrb[0].mxu0
    %v1991 = vadd.f32 0.0, %v1990
    %1992 = vmatprep.mubr.bf16.mxu0 0
    %1993 = vmatmul.mubr.bf16.gmra.mrb[0].mxu0 %v1751
    %v1994 = vpop.f32.mrb[0].mxu0
    %v1995 = vadd.f32 0.0, %v1994
    %v1996 = vpop.f32.mrb[0].mxu0
    %v1997 = vadd.f32 0.0, %v1996
    %v1998 = vpop.f32.mrb[0].mxu0
    %v1999 = vadd.f32 0.0, %v1998
    %v2000 = vpop.f32.mrb[0].mxu0
    %v2001 = vadd.f32 0.0, %v2000
    %2002 = vmatprep.mubr.bf16.mxu0 0
    %2003 = vmatmul.mubr.bf16.gmra.mrb[0].mxu0 %v1752
    %v2004 = vpop.f32.mrb[0].mxu0
    %v2005 = vadd.f32 0.0, %v2004
    %v2006 = vpop.f32.mrb[0].mxu0
    %v2007 = vadd.f32 0.0, %v2006
    %v2008 = vpop.f32.mrb[0].mxu0
    %v2009 = vadd.f32 0.0, %v2008
    %v2010 = vpop.f32.mrb[0].mxu0
    %v2011 = vadd.f32 0.0, %v2010
    %2012 = vmatprep.mubr.bf16.mxu0 0
    %2013 = vmatmul.mubr.bf16.gmra.mrb[0].mxu0 %v1753
    %v2014 = vpop.f32.mrb[0].mxu0
    %v2015 = vadd.f32 0.0, %v2014
    %v2016 = vpop.f32.mrb[0].mxu0
    %v2017 = vadd.f32 0.0, %v2016
    %v2018 = vpop.f32.mrb[0].mxu0
    %v2019 = vadd.f32 0.0, %v2018
    %v2020 = vpop.f32.mrb[0].mxu0
    %v2021 = vadd.f32 0.0, %v2020
    %2022 = vmatprep.mubr.bf16.mxu0 0
    %2023 = vmatmul.mubr.bf16.gmra.mrb[0].mxu0 %v1754
    %v2024 = vpop.f32.mrb[0].mxu0
    %v2025 = vadd.f32 0.0, %v2024
    %v2026 = vpop.f32.mrb[0].mxu0
    %v2027 = vadd.f32 0.0, %v2026
    %v2028 = vpop.f32.mrb[0].mxu0
    %v2029 = vadd.f32 0.0, %v2028
    %v2030 = vpop.f32.mrb[0].mxu0
    %v2031 = vadd.f32 0.0, %v2030
    %2032 = vmatprep.mubr.bf16.mxu0 0
    %2033 = vmatmul.mubr.bf16.gmra.mrb[0].mxu0 %v1755
    %v2034 = vpop.f32.mrb[0].mxu0
    %v2035 = vadd.f32 0.0, %v2034
    %v2036 = vpop.f32.mrb[0].mxu0
    %v2037 = vadd.f32 0.0, %v2036
    %v2038 = vpop.f32.mrb[0].mxu0
    %v2039 = vadd.f32 0.0, %v2038
    %v2040 = vpop.f32.mrb[0].mxu0
    %v2041 = vadd.f32 0.0, %v2040
    %2042 = vmatprep.mubr.bf16.mxu0 0
    %2043 = vmatmul.mubr.bf16.gmra.mrb[0].mxu0 %v1756
    %v2044 = vpop.f32.mrb[0].mxu0
    %v2045 = vadd.f32 0.0, %v2044
    %v2046 = vpop.f32.mrb[0].mxu0
    %v2047 = vadd.f32 0.0, %v2046
    %v2048 = vpop.f32.mrb[0].mxu0
    %v2049 = vadd.f32 0.0, %v2048
    %v2050 = vpop.f32.mrb[0].mxu0
    %v2051 = vadd.f32 0.0, %v2050
    %2052 = vmatprep.mubr.bf16.mxu0 0
    %2053 = vmatmul.mubr.bf16.gmra.mrb[0].mxu0 %v1757
    %v2054 = vpop.f32.mrb[0].mxu0
    %v2055 = vadd.f32 0.0, %v2054
    %v2056 = vpop.f32.mrb[0].mxu0
    %v2057 = vadd.f32 0.0, %v2056
    %v2058 = vpop.f32.mrb[0].mxu0
    %v2059 = vadd.f32 0.0, %v2058
    %v2060 = vpop.f32.mrb[0].mxu0
    %v2061 = vadd.f32 0.0, %v2060
    %2062 = vdwg.mxu0
    %2063 = vmatprep.subr.bf16.mxu0 %v1889
    %2064 = vmatpush1.bf16.msra.mxu0 %v1888
    %2065 = vmatprep.subr.bf16.mxu0 %v1893
    %2066 = vmatpush1.bf16.msra.mxu0 %v1892
    %2067 = vmatprep.subr.bf16.mxu0 %v1897
    %2068 = vmatpush1.bf16.msra.mxu0 %v1896
    %2069 = vmatprep.subr.bf16.mxu0 %v1901
    %2070 = vmatpush1.bf16.msra.mxu0 %v1900
    %2071 = vmatprep.subr.bf16.mxu0 %v1905
    %2072 = vmatpush1.bf16.msra.mxu0 %v1904
    %2073 = vmatprep.subr.bf16.mxu0 %v1909
    %2074 = vmatpush1.bf16.msra.mxu0 %v1908
    %2075 = vmatprep.subr.bf16.mxu0 %v1913
    %2076 = vmatpush1.bf16.msra.mxu0 %v1912
    %2077 = vmatprep.subr.bf16.mxu0 %v1917
    %2078 = vmatpush1.bf16.msra.mxu0 %v1916
    %2079 = vmatprep.subr.bf16.mxu0 0
    %2080 = vmatpush1.bf16.msra.mxu0 0
    %2081 = vmatprep.subr.bf16.mxu0 0
    %2082 = vmatpush1.bf16.msra.mxu0 0
    %2083 = vmatprep.subr.bf16.mxu0 0
    %2084 = vmatpush1.bf16.msra.mxu0 0
    %2085 = vmatprep.subr.bf16.mxu0 0
    %2086 = vmatpush1.bf16.msra.mxu0 0
    %2087 = vmatprep.subr.bf16.mxu0 0
    %2088 = vmatpush1.bf16.msra.mxu0 0
    %2089 = vmatprep.subr.bf16.mxu0 0
    %2090 = vmatpush1.bf16.msra.mxu0 0
    %2091 = vmatprep.subr.bf16.mxu0 0
    %2092 = vmatpush1.bf16.msra.mxu0 0
    %2093 = vmatprep.subr.bf16.mxu0 0
    %2094 = vmatpush1.bf16.msra.mxu0 0
    %2095 = vmatprep.mubr.bf16.mxu0 0
    %2096 = vmatmul.mubr.bf16.gmra.mrb[0].mxu0 %v1750
    %v2097 = vpop.f32.mrb[0].mxu0
    %v2098 = vadd.f32 0.0, %v2097
    %v2099 = vpop.f32.mrb[0].mxu0
    %v2100 = vadd.f32 0.0, %v2099
    %v2101 = vpop.f32.mrb[0].mxu0
    %v2102 = vadd.f32 0.0, %v2101
    %v2103 = vpop.f32.mrb[0].mxu0
    %v2104 = vadd.f32 0.0, %v2103
    %2105 = vmatprep.mubr.bf16.mxu0 0
    %2106 = vmatmul.mubr.bf16.gmra.mrb[0].mxu0 %v1751
    %v2107 = vpop.f32.mrb[0].mxu0
    %v2108 = vadd.f32 0.0, %v2107
    %v2109 = vpop.f32.mrb[0].mxu0
    %v2110 = vadd.f32 0.0, %v2109
    %v2111 = vpop.f32.mrb[0].mxu0
    %v2112 = vadd.f32 0.0, %v2111
    %v2113 = vpop.f32.mrb[0].mxu0
    %v2114 = vadd.f32 0.0, %v2113
    %2115 = vmatprep.mubr.bf16.mxu0 0
    %2116 = vmatmul.mubr.bf16.gmra.mrb[0].mxu0 %v1752
    %v2117 = vpop.f32.mrb[0].mxu0
    %v2118 = vadd.f32 0.0, %v2117
    %v2119 = vpop.f32.mrb[0].mxu0
    %v2120 = vadd.f32 0.0, %v2119
    %v2121 = vpop.f32.mrb[0].mxu0
    %v2122 = vadd.f32 0.0, %v2121
    %v2123 = vpop.f32.mrb[0].mxu0
    %v2124 = vadd.f32 0.0, %v2123
    %2125 = vmatprep.mubr.bf16.mxu0 0
    %2126 = vmatmul.mubr.bf16.gmra.mrb[0].mxu0 %v1753
    %v2127 = vpop.f32.mrb[0].mxu0
    %v2128 = vadd.f32 0.0, %v2127
    %v2129 = vpop.f32.mrb[0].mxu0
    %v2130 = vadd.f32 0.0, %v2129
    %v2131 = vpop.f32.mrb[0].mxu0
    %v2132 = vadd.f32 0.0, %v2131
    %v2133 = vpop.f32.mrb[0].mxu0
    %v2134 = vadd.f32 0.0, %v2133
    %2135 = vmatprep.mubr.bf16.mxu0 0
    %2136 = vmatmul.mubr.bf16.gmra.mrb[0].mxu0 %v1754
    %v2137 = vpop.f32.mrb[0].mxu0
    %v2138 = vadd.f32 0.0, %v2137
    %v2139 = vpop.f32.mrb[0].mxu0
    %v2140 = vadd.f32 0.0, %v2139
    %v2141 = vpop.f32.mrb[0].mxu0
    %v2142 = vadd.f32 0.0, %v2141
    %v2143 = vpop.f32.mrb[0].mxu0
    %v2144 = vadd.f32 0.0, %v2143
    %2145 = vmatprep.mubr.bf16.mxu0 0
    %2146 = vmatmul.mubr.bf16.gmra.mrb[0].mxu0 %v1755
    %v2147 = vpop.f32.mrb[0].mxu0
    %v2148 = vadd.f32 0.0, %v2147
    %v2149 = vpop.f32.mrb[0].mxu0
    %v2150 = vadd.f32 0.0, %v2149
    %v2151 = vpop.f32.mrb[0].mxu0
    %v2152 = vadd.f32 0.0, %v2151
    %v2153 = vpop.f32.mrb[0].mxu0
    %v2154 = vadd.f32 0.0, %v2153
    %2155 = vmatprep.mubr.bf16.mxu0 0
    %2156 = vmatmul.mubr.bf16.gmra.mrb[0].mxu0 %v1756
    %v2157 = vpop.f32.mrb[0].mxu0
    %v2158 = vadd.f32 0.0, %v2157
    %v2159 = vpop.f32.mrb[0].mxu0
    %v2160 = vadd.f32 0.0, %v2159
    %v2161 = vpop.f32.mrb[0].mxu0
    %v2162 = vadd.f32 0.0, %v2161
    %v2163 = vpop.f32.mrb[0].mxu0
    %v2164 = vadd.f32 0.0, %v2163
    %2165 = vmatprep.mubr.bf16.mxu0 0
    %2166 = vmatmul.mubr.bf16.gmra.mrb[0].mxu0 %v1757
    %v2167 = vpop.f32.mrb[0].mxu0
    %v2168 = vadd.f32 0.0, %v2167
    %v2169 = vpop.f32.mrb[0].mxu0
    %v2170 = vadd.f32 0.0, %v2169
    %v2171 = vpop.f32.mrb[0].mxu0
    %v2172 = vadd.f32 0.0, %v2171
    %v2173 = vpop.f32.mrb[0].mxu0
    %v2174 = vadd.f32 0.0, %v2173
    %2175 = vdwg.mxu0
    %v2176 = vadd.f32 %v621, %v1985
    %v2177 = vadd.f32 %v623, %v1987
    %v2178 = vadd.f32 %v734, %v2098
    %v2179 = vadd.f32 %v736, %v2100
    %v2180 = vadd.f32 %v625, %v1989
    %v2181 = vadd.f32 %v627, %v1991
    %v2182 = vadd.f32 %v738, %v2102
    %v2183 = vadd.f32 %v740, %v2104
    %v2184 = vadd.f32 %v631, %v1995
    %v2185 = vadd.f32 %v633, %v1997
    %v2186 = vadd.f32 %v744, %v2108
    %v2187 = vadd.f32 %v746, %v2110
    %v2188 = vadd.f32 %v635, %v1999
    %v2189 = vadd.f32 %v637, %v2001
    %v2190 = vadd.f32 %v748, %v2112
    %v2191 = vadd.f32 %v750, %v2114
    %v2192 = vadd.f32 %v641, %v2005
    %v2193 = vadd.f32 %v643, %v2007
    %v2194 = vadd.f32 %v754, %v2118
    %v2195 = vadd.f32 %v756, %v2120
    %v2196 = vadd.f32 %v645, %v2009
    %v2197 = vadd.f32 %v647, %v2011
    %v2198 = vadd.f32 %v758, %v2122
    %v2199 = vadd.f32 %v760, %v2124
    %v2200 = vadd.f32 %v651, %v2015
    %v2201 = vadd.f32 %v653, %v2017
    %v2202 = vadd.f32 %v764, %v2128
    %v2203 = vadd.f32 %v766, %v2130
    %v2204 = vadd.f32 %v655, %v2019
    %v2205 = vadd.f32 %v657, %v2021
    %v2206 = vadd.f32 %v768, %v2132
    %v2207 = vadd.f32 %v770, %v2134
    %v2208 = vadd.f32 %v661, %v2025
    %v2209 = vadd.f32 %v663, %v2027
    %v2210 = vadd.f32 %v774, %v2138
    %v2211 = vadd.f32 %v776, %v2140
    %v2212 = vadd.f32 %v665, %v2029
    %v2213 = vadd.f32 %v667, %v2031
    %v2214 = vadd.f32 %v778, %v2142
    %v2215 = vadd.f32 %v780, %v2144
    %v2216 = vadd.f32 %v671, %v2035
    %v2217 = vadd.f32 %v673, %v2037
    %v2218 = vadd.f32 %v784, %v2148
    %v2219 = vadd.f32 %v786, %v2150
    %v2220 = vadd.f32 %v675, %v2039
    %v2221 = vadd.f32 %v677, %v2041
    %v2222 = vadd.f32 %v788, %v2152
    %v2223 = vadd.f32 %v790, %v2154
    %v2224 = vadd.f32 %v681, %v2045
    %v2225 = vadd.f32 %v683, %v2047
    %v2226 = vadd.f32 %v794, %v2158
    %v2227 = vadd.f32 %v796, %v2160
    %v2228 = vadd.f32 %v685, %v2049
    %v2229 = vadd.f32 %v687, %v2051
    %v2230 = vadd.f32 %v798, %v2162
    %v2231 = vadd.f32 %v800, %v2164
    %v2232 = vadd.f32 %v691, %v2055
    %v2233 = vadd.f32 %v693, %v2057
    %v2234 = vadd.f32 %v804, %v2168
    %v2235 = vadd.f32 %v806, %v2170
    %v2236 = vadd.f32 %v695, %v2059
    %v2237 = vadd.f32 %v697, %v2061
    %v2238 = vadd.f32 %v808, %v2172
    %v2239 = vadd.f32 %v810, %v2174
    %vm2240 = vcmp.gt.f32.partialorder %v2176, 0.0
    %vm2241 = vcmp.gt.f32.partialorder %v2177, 0.0
    %vm2242 = vcmp.gt.f32.partialorder %v2178, 0.0
    %vm2243 = vcmp.gt.f32.partialorder %v2179, 0.0
    %vm2244 = vcmp.gt.f32.partialorder %v2180, 0.0
    %vm2245 = vcmp.gt.f32.partialorder %v2181, 0.0
    %vm2246 = vcmp.gt.f32.partialorder %v2182, 0.0
    %vm2247 = vcmp.gt.f32.partialorder %v2183, 0.0
    %vm2248 = vcmp.gt.f32.partialorder %v2184, 0.0
    %vm2249 = vcmp.gt.f32.partialorder %v2185, 0.0
    %vm2250 = vcmp.gt.f32.partialorder %v2186, 0.0
    %vm2251 = vcmp.gt.f32.partialorder %v2187, 0.0
    %vm2252 = vcmp.gt.f32.partialorder %v2188, 0.0
    %vm2253 = vcmp.gt.f32.partialorder %v2189, 0.0
    %vm2254 = vcmp.gt.f32.partialorder %v2190, 0.0
    %vm2255 = vcmp.gt.f32.partialorder %v2191, 0.0
    %vm2256 = vcmp.gt.f32.partialorder %v2192, 0.0
    %vm2257 = vcmp.gt.f32.partialorder %v2193, 0.0
    %vm2258 = vcmp.gt.f32.partialorder %v2194, 0.0
    %vm2259 = vcmp.gt.f32.partialorder %v2195, 0.0
    %vm2260 = vcmp.gt.f32.partialorder %v2196, 0.0
    %vm2261 = vcmp.gt.f32.partialorder %v2197, 0.0
    %vm2262 = vcmp.gt.f32.partialorder %v2198, 0.0
    %vm2263 = vcmp.gt.f32.partialorder %v2199, 0.0
    %vm2264 = vcmp.gt.f32.partialorder %v2200, 0.0
    %vm2265 = vcmp.gt.f32.partialorder %v2201, 0.0
    %vm2266 = vcmp.gt.f32.partialorder %v2202, 0.0
    %vm2267 = vcmp.gt.f32.partialorder %v2203, 0.0
    %vm2268 = vcmp.gt.f32.partialorder %v2204, 0.0
    %vm2269 = vcmp.gt.f32.partialorder %v2205, 0.0
    %vm2270 = vcmp.gt.f32.partialorder %v2206, 0.0
    %vm2271 = vcmp.gt.f32.partialorder %v2207, 0.0
    %vm2272 = vcmp.gt.f32.partialorder %v2208, 0.0
    %vm2273 = vcmp.gt.f32.partialorder %v2209, 0.0
    %vm2274 = vcmp.gt.f32.partialorder %v2210, 0.0
    %vm2275 = vcmp.gt.f32.partialorder %v2211, 0.0
    %vm2276 = vcmp.gt.f32.partialorder %v2212, 0.0
    %vm2277 = vcmp.gt.f32.partialorder %v2213, 0.0
    %vm2278 = vcmp.gt.f32.partialorder %v2214, 0.0
    %vm2279 = vcmp.gt.f32.partialorder %v2215, 0.0
    %vm2280 = vcmp.gt.f32.partialorder %v2216, 0.0
    %vm2281 = vcmp.gt.f32.partialorder %v2217, 0.0
    %vm2282 = vcmp.gt.f32.partialorder %v2218, 0.0
    %vm2283 = vcmp.gt.f32.partialorder %v2219, 0.0
    %vm2284 = vcmp.gt.f32.partialorder %v2220, 0.0
    %vm2285 = vcmp.gt.f32.partialorder %v2221, 0.0
    %vm2286 = vcmp.gt.f32.partialorder %v2222, 0.0
    %vm2287 = vcmp.gt.f32.partialorder %v2223, 0.0
    %vm2288 = vcmp.gt.f32.partialorder %v2224, 0.0
    %vm2289 = vcmp.gt.f32.partialorder %v2225, 0.0
    %vm2290 = vcmp.gt.f32.partialorder %v2226, 0.0
    %vm2291 = vcmp.gt.f32.partialorder %v2227, 0.0
    %vm2292 = vcmp.gt.f32.partialorder %v2228, 0.0
    %vm2293 = vcmp.gt.f32.partialorder %v2229, 0.0
    %vm2294 = vcmp.gt.f32.partialorder %v2230, 0.0
    %vm2295 = vcmp.gt.f32.partialorder %v2231, 0.0
    %vm2296 = vcmp.gt.f32.partialorder %v2232, 0.0
    %vm2297 = vcmp.gt.f32.partialorder %v2233, 0.0
    %vm2298 = vcmp.gt.f32.partialorder %v2234, 0.0
    %vm2299 = vcmp.gt.f32.partialorder %v2235, 0.0
    %vm2300 = vcmp.gt.f32.partialorder %v2236, 0.0
    %vm2301 = vcmp.gt.f32.partialorder %v2237, 0.0
    %vm2302 = vcmp.gt.f32.partialorder %v2238, 0.0
    %vm2303 = vcmp.gt.f32.partialorder %v2239, 0.0
    %v2304 = vmin.f32 %v2176, 0.0
    %v2305 = vmin.f32 %v2177, 0.0
    %v2306 = vmin.f32 %v2178, 0.0
    %v2307 = vmin.f32 %v2179, 0.0
    %v2308 = vmin.f32 %v2180, 0.0
    %v2309 = vmin.f32 %v2181, 0.0
    %v2310 = vmin.f32 %v2182, 0.0
    %v2311 = vmin.f32 %v2183, 0.0
    %v2312 = vmin.f32 %v2184, 0.0
    %v2313 = vmin.f32 %v2185, 0.0
    %v2314 = vmin.f32 %v2186, 0.0
    %v2315 = vmin.f32 %v2187, 0.0
    %v2316 = vmin.f32 %v2188, 0.0
    %v2317 = vmin.f32 %v2189, 0.0
    %v2318 = vmin.f32 %v2190, 0.0
    %v2319 = vmin.f32 %v2191, 0.0
    %v2320 = vmin.f32 %v2192, 0.0
    %v2321 = vmin.f32 %v2193, 0.0
    %v2322 = vmin.f32 %v2194, 0.0
    %v2323 = vmin.f32 %v2195, 0.0
    %v2324 = vmin.f32 %v2196, 0.0
    %v2325 = vmin.f32 %v2197, 0.0
    %v2326 = vmin.f32 %v2198, 0.0
    %v2327 = vmin.f32 %v2199, 0.0
    %v2328 = vmin.f32 %v2200, 0.0
    %v2329 = vmin.f32 %v2201, 0.0
    %v2330 = vmin.f32 %v2202, 0.0
    %v2331 = vmin.f32 %v2203, 0.0
    %v2332 = vmin.f32 %v2204, 0.0
    %v2333 = vmin.f32 %v2205, 0.0
    %v2334 = vmin.f32 %v2206, 0.0
    %v2335 = vmin.f32 %v2207, 0.0
    %v2336 = vmin.f32 %v2208, 0.0
    %v2337 = vmin.f32 %v2209, 0.0
    %v2338 = vmin.f32 %v2210, 0.0
    %v2339 = vmin.f32 %v2211, 0.0
    %v2340 = vmin.f32 %v2212, 0.0
    %v2341 = vmin.f32 %v2213, 0.0
    %v2342 = vmin.f32 %v2214, 0.0
    %v2343 = vmin.f32 %v2215, 0.0
    %v2344 = vmin.f32 %v2216, 0.0
    %v2345 = vmin.f32 %v2217, 0.0
    %v2346 = vmin.f32 %v2218, 0.0
    %v2347 = vmin.f32 %v2219, 0.0
    %v2348 = vmin.f32 %v2220, 0.0
    %v2349 = vmin.f32 %v2221, 0.0
    %v2350 = vmin.f32 %v2222, 0.0
    %v2351 = vmin.f32 %v2223, 0.0
    %v2352 = vmin.f32 %v2224, 0.0
    %v2353 = vmin.f32 %v2225, 0.0
    %v2354 = vmin.f32 %v2226, 0.0
    %v2355 = vmin.f32 %v2227, 0.0
    %v2356 = vmin.f32 %v2228, 0.0
    %v2357 = vmin.f32 %v2229, 0.0
    %v2358 = vmin.f32 %v2230, 0.0
    %v2359 = vmin.f32 %v2231, 0.0
    %v2360 = vmin.f32 %v2232, 0.0
    %v2361 = vmin.f32 %v2233, 0.0
    %v2362 = vmin.f32 %v2234, 0.0
    %v2363 = vmin.f32 %v2235, 0.0
    %v2364 = vmin.f32 %v2236, 0.0
    %v2365 = vmin.f32 %v2237, 0.0
    %v2366 = vmin.f32 %v2238, 0.0
    %v2367 = vmin.f32 %v2239, 0.0
    %v2368 = vmul.f32 %v2304, 1.442695
    %v2369 = vpow.pop %v2368
    %v2370 = vmul.f32 %v2305, 1.442695
    %v2371 = vpow.pop %v2370
    %v2372 = vmul.f32 %v2306, 1.442695
    %v2373 = vpow.pop %v2372
    %v2374 = vmul.f32 %v2307, 1.442695
    %v2375 = vpow.pop %v2374
    %v2376 = vmul.f32 %v2308, 1.442695
    %v2377 = vpow.pop %v2376
    %v2378 = vmul.f32 %v2309, 1.442695
    %v2379 = vpow.pop %v2378
    %v2380 = vmul.f32 %v2310, 1.442695
    %v2381 = vpow.pop %v2380
    %v2382 = vmul.f32 %v2311, 1.442695
    %v2383 = vpow.pop %v2382
    %v2384 = vmul.f32 %v2312, 1.442695
    %v2385 = vpow.pop %v2384
    %v2386 = vmul.f32 %v2313, 1.442695
    %v2387 = vpow.pop %v2386
    %v2388 = vmul.f32 %v2314, 1.442695
    %v2389 = vpow.pop %v2388
    %v2390 = vmul.f32 %v2315, 1.442695
    %v2391 = vpow.pop %v2390
    %v2392 = vmul.f32 %v2316, 1.442695
    %v2393 = vpow.pop %v2392
    %v2394 = vmul.f32 %v2317, 1.442695
    %v2395 = vpow.pop %v2394
    %v2396 = vmul.f32 %v2318, 1.442695
    %v2397 = vpow.pop %v2396
    %v2398 = vmul.f32 %v2319, 1.442695
    %v2399 = vpow.pop %v2398
    %v2400 = vmul.f32 %v2320, 1.442695
    %v2401 = vpow.pop %v2400
    %v2402 = vmul.f32 %v2321, 1.442695
    %v2403 = vpow.pop %v2402
    %v2404 = vmul.f32 %v2322, 1.442695
    %v2405 = vpow.pop %v2404
    %v2406 = vmul.f32 %v2323, 1.442695
    %v2407 = vpow.pop %v2406
    %v2408 = vmul.f32 %v2324, 1.442695
    %v2409 = vpow.pop %v2408
    %v2410 = vmul.f32 %v2325, 1.442695
    %v2411 = vpow.pop %v2410
    %v2412 = vmul.f32 %v2326, 1.442695
    %v2413 = vpow.pop %v2412
    %v2414 = vmul.f32 %v2327, 1.442695
    %v2415 = vpow.pop %v2414
    %v2416 = vmul.f32 %v2328, 1.442695
    %v2417 = vpow.pop %v2416
    %v2418 = vmul.f32 %v2329, 1.442695
    %v2419 = vpow.pop %v2418
    %v2420 = vmul.f32 %v2330, 1.442695
    %v2421 = vpow.pop %v2420
    %v2422 = vmul.f32 %v2331, 1.442695
    %v2423 = vpow.pop %v2422
    %v2424 = vmul.f32 %v2332, 1.442695
    %v2425 = vpow.pop %v2424
    %v2426 = vmul.f32 %v2333, 1.442695
    %v2427 = vpow.pop %v2426
    %v2428 = vmul.f32 %v2334, 1.442695
    %v2429 = vpow.pop %v2428
    %v2430 = vmul.f32 %v2335, 1.442695
    %v2431 = vpow.pop %v2430
    %v2432 = vmul.f32 %v2336, 1.442695
    %v2433 = vpow.pop %v2432
    %v2434 = vmul.f32 %v2337, 1.442695
    %v2435 = vpow.pop %v2434
    %v2436 = vmul.f32 %v2338, 1.442695
    %v2437 = vpow.pop %v2436
    %v2438 = vmul.f32 %v2339, 1.442695
    %v2439 = vpow.pop %v2438
    %v2440 = vmul.f32 %v2340, 1.442695
    %v2441 = vpow.pop %v2440
    %v2442 = vmul.f32 %v2341, 1.442695
    %v2443 = vpow.pop %v2442
    %v2444 = vmul.f32 %v2342, 1.442695
    %v2445 = vpow.pop %v2444
    %v2446 = vmul.f32 %v2343, 1.442695
    %v2447 = vpow.pop %v2446
    %v2448 = vmul.f32 %v2344, 1.442695
    %v2449 = vpow.pop %v2448
    %v2450 = vmul.f32 %v2345, 1.442695
    %v2451 = vpow.pop %v2450
    %v2452 = vmul.f32 %v2346, 1.442695
    %v2453 = vpow.pop %v2452
    %v2454 = vmul.f32 %v2347, 1.442695
    %v2455 = vpow.pop %v2454
    %v2456 = vmul.f32 %v2348, 1.442695
    %v2457 = vpow.pop %v2456
    %v2458 = vmul.f32 %v2349, 1.442695
    %v2459 = vpow.pop %v2458
    %v2460 = vmul.f32 %v2350, 1.442695
    %v2461 = vpow.pop %v2460
    %v2462 = vmul.f32 %v2351, 1.442695
    %v2463 = vpow.pop %v2462
    %v2464 = vmul.f32 %v2352, 1.442695
    %v2465 = vpow.pop %v2464
    %v2466 = vmul.f32 %v2353, 1.442695
    %v2467 = vpow.pop %v2466
    %v2468 = vmul.f32 %v2354, 1.442695
    %v2469 = vpow.pop %v2468
    %v2470 = vmul.f32 %v2355, 1.442695
    %v2471 = vpow.pop %v2470
    %v2472 = vmul.f32 %v2356, 1.442695
    %v2473 = vpow.pop %v2472
    %v2474 = vmul.f32 %v2357, 1.442695
    %v2475 = vpow.pop %v2474
    %v2476 = vmul.f32 %v2358, 1.442695
    %v2477 = vpow.pop %v2476
    %v2478 = vmul.f32 %v2359, 1.442695
    %v2479 = vpow.pop %v2478
    %v2480 = vmul.f32 %v2360, 1.442695
    %v2481 = vpow.pop %v2480
    %v2482 = vmul.f32 %v2361, 1.442695
    %v2483 = vpow.pop %v2482
    %v2484 = vmul.f32 %v2362, 1.442695
    %v2485 = vpow.pop %v2484
    %v2486 = vmul.f32 %v2363, 1.442695
    %v2487 = vpow.pop %v2486
    %v2488 = vmul.f32 %v2364, 1.442695
    %v2489 = vpow.pop %v2488
    %v2490 = vmul.f32 %v2365, 1.442695
    %v2491 = vpow.pop %v2490
    %v2492 = vmul.f32 %v2366, 1.442695
    %v2493 = vpow.pop %v2492
    %v2494 = vmul.f32 %v2367, 1.442695
    %v2495 = vpow.pop %v2494
    %v2496 = vsub.f32 %v2369, 1.0
    %v2497 = vsub.f32 %v2371, 1.0
    %v2498 = vsub.f32 %v2373, 1.0
    %v2499 = vsub.f32 %v2375, 1.0
    %v2500 = vsub.f32 %v2377, 1.0
    %v2501 = vsub.f32 %v2379, 1.0
    %v2502 = vsub.f32 %v2381, 1.0
    %v2503 = vsub.f32 %v2383, 1.0
    %v2504 = vsub.f32 %v2385, 1.0
    %v2505 = vsub.f32 %v2387, 1.0
    %v2506 = vsub.f32 %v2389, 1.0
    %v2507 = vsub.f32 %v2391, 1.0
    %v2508 = vsub.f32 %v2393, 1.0
    %v2509 = vsub.f32 %v2395, 1.0
    %v2510 = vsub.f32 %v2397, 1.0
    %v2511 = vsub.f32 %v2399, 1.0
    %v2512 = vsub.f32 %v2401, 1.0
    %v2513 = vsub.f32 %v2403, 1.0
    %v2514 = vsub.f32 %v2405, 1.0
    %v2515 = vsub.f32 %v2407, 1.0
    %v2516 = vsub.f32 %v2409, 1.0
    %v2517 = vsub.f32 %v2411, 1.0
    %v2518 = vsub.f32 %v2413, 1.0
    %v2519 = vsub.f32 %v2415, 1.0
    %v2520 = vsub.f32 %v2417, 1.0
    %v2521 = vsub.f32 %v2419, 1.0
    %v2522 = vsub.f32 %v2421, 1.0
    %v2523 = vsub.f32 %v2423, 1.0
    %v2524 = vsub.f32 %v2425, 1.0
    %v2525 = vsub.f32 %v2427, 1.0
    %v2526 = vsub.f32 %v2429, 1.0
    %v2527 = vsub.f32 %v2431, 1.0
    %v2528 = vsub.f32 %v2433, 1.0
    %v2529 = vsub.f32 %v2435, 1.0
    %v2530 = vsub.f32 %v2437, 1.0
    %v2531 = vsub.f32 %v2439, 1.0
    %v2532 = vsub.f32 %v2441, 1.0
    %v2533 = vsub.f32 %v2443, 1.0
    %v2534 = vsub.f32 %v2445, 1.0
    %v2535 = vsub.f32 %v2447, 1.0
    %v2536 = vsub.f32 %v2449, 1.0
    %v2537 = vsub.f32 %v2451, 1.0
    %v2538 = vsub.f32 %v2453, 1.0
    %v2539 = vsub.f32 %v2455, 1.0
    %v2540 = vsub.f32 %v2457, 1.0
    %v2541 = vsub.f32 %v2459, 1.0
    %v2542 = vsub.f32 %v2461, 1.0
    %v2543 = vsub.f32 %v2463, 1.0
    %v2544 = vsub.f32 %v2465, 1.0
    %v2545 = vsub.f32 %v2467, 1.0
    %v2546 = vsub.f32 %v2469, 1.0
    %v2547 = vsub.f32 %v2471, 1.0
    %v2548 = vsub.f32 %v2473, 1.0
    %v2549 = vsub.f32 %v2475, 1.0
    %v2550 = vsub.f32 %v2477, 1.0
    %v2551 = vsub.f32 %v2479, 1.0
    %v2552 = vsub.f32 %v2481, 1.0
    %v2553 = vsub.f32 %v2483, 1.0
    %v2554 = vsub.f32 %v2485, 1.0
    %v2555 = vsub.f32 %v2487, 1.0
    %v2556 = vsub.f32 %v2489, 1.0
    %v2557 = vsub.f32 %v2491, 1.0
    %v2558 = vsub.f32 %v2493, 1.0
    %v2559 = vsub.f32 %v2495, 1.0
    %v2560 = vsel %vm2240, %v2176, %v2496
    %v2561 = vsel %vm2241, %v2177, %v2497
    %v2562 = vsel %vm2242, %v2178, %v2498
    %v2563 = vsel %vm2243, %v2179, %v2499
    %v2564 = vsel %vm2244, %v2180, %v2500
    %v2565 = vsel %vm2245, %v2181, %v2501
    %v2566 = vsel %vm2246, %v2182, %v2502
    %v2567 = vsel %vm2247, %v2183, %v2503
    %v2568 = vsel %vm2248, %v2184, %v2504
    %v2569 = vsel %vm2249, %v2185, %v2505
    %v2570 = vsel %vm2250, %v2186, %v2506
    %v2571 = vsel %vm2251, %v2187, %v2507
    %v2572 = vsel %vm2252, %v2188, %v2508
    %v2573 = vsel %vm2253, %v2189, %v2509
    %v2574 = vsel %vm2254, %v2190, %v2510
    %v2575 = vsel %vm2255, %v2191, %v2511
    %v2576 = vsel %vm2256, %v2192, %v2512
    %v2577 = vsel %vm2257, %v2193, %v2513
    %v2578 = vsel %vm2258, %v2194, %v2514
    %v2579 = vsel %vm2259, %v2195, %v2515
    %v2580 = vsel %vm2260, %v2196, %v2516
    %v2581 = vsel %vm2261, %v2197, %v2517
    %v2582 = vsel %vm2262, %v2198, %v2518
    %v2583 = vsel %vm2263, %v2199, %v2519
    %v2584 = vsel %vm2264, %v2200, %v2520
    %v2585 = vsel %vm2265, %v2201, %v2521
    %v2586 = vsel %vm2266, %v2202, %v2522
    %v2587 = vsel %vm2267, %v2203, %v2523
    %v2588 = vsel %vm2268, %v2204, %v2524
    %v2589 = vsel %vm2269, %v2205, %v2525
    %v2590 = vsel %vm2270, %v2206, %v2526
    %v2591 = vsel %vm2271, %v2207, %v2527
    %v2592 = vsel %vm2272, %v2208, %v2528
    %v2593 = vsel %vm2273, %v2209, %v2529
    %v2594 = vsel %vm2274, %v2210, %v2530
    %v2595 = vsel %vm2275, %v2211, %v2531
    %v2596 = vsel %vm2276, %v2212, %v2532
    %v2597 = vsel %vm2277, %v2213, %v2533
    %v2598 = vsel %vm2278, %v2214, %v2534
    %v2599 = vsel %vm2279, %v2215, %v2535
    %v2600 = vsel %vm2280, %v2216, %v2536
    %v2601 = vsel %vm2281, %v2217, %v2537
    %v2602 = vsel %vm2282, %v2218, %v2538
    %v2603 = vsel %vm2283, %v2219, %v2539
    %v2604 = vsel %vm2284, %v2220, %v2540
    %v2605 = vsel %vm2285, %v2221, %v2541
    %v2606 = vsel %vm2286, %v2222, %v2542
    %v2607 = vsel %vm2287, %v2223, %v2543
    %v2608 = vsel %vm2288, %v2224, %v2544
    %v2609 = vsel %vm2289, %v2225, %v2545
    %v2610 = vsel %vm2290, %v2226, %v2546
    %v2611 = vsel %vm2291, %v2227, %v2547
    %v2612 = vsel %vm2292, %v2228, %v2548
    %v2613 = vsel %vm2293, %v2229, %v2549
    %v2614 = vsel %vm2294, %v2230, %v2550
    %v2615 = vsel %vm2295, %v2231, %v2551
    %v2616 = vsel %vm2296, %v2232, %v2552
    %v2617 = vsel %vm2297, %v2233, %v2553
    %v2618 = vsel %vm2298, %v2234, %v2554
    %v2619 = vsel %vm2299, %v2235, %v2555
    %v2620 = vsel %vm2300, %v2236, %v2556
    %v2621 = vsel %vm2301, %v2237, %v2557
    %v2622 = vsel %vm2302, %v2238, %v2558
    %v2623 = vsel %vm2303, %v2239, %v2559
    %v2624 = vpack.c.bf16 %v2564, %v2560
    %v2625 = vpack.c.bf16 %v2565, %v2561
    %v2626 = vpack.c.bf16 %v2566, %v2562
    %v2627 = vpack.c.bf16 %v2567, %v2563
    %v2628 = vpack.c.bf16 %v2572, %v2568
    %v2629 = vpack.c.bf16 %v2573, %v2569
    %v2630 = vpack.c.bf16 %v2574, %v2570
    %v2631 = vpack.c.bf16 %v2575, %v2571
    %v2632 = vpack.c.bf16 %v2580, %v2576
    %v2633 = vpack.c.bf16 %v2581, %v2577
    %v2634 = vpack.c.bf16 %v2582, %v2578
    %v2635 = vpack.c.bf16 %v2583, %v2579
    %v2636 = vpack.c.bf16 %v2588, %v2584
    %v2637 = vpack.c.bf16 %v2589, %v2585
    %v2638 = vpack.c.bf16 %v2590, %v2586
    %v2639 = vpack.c.bf16 %v2591, %v2587
    %v2640 = vpack.c.bf16 %v2596, %v2592
    %v2641 = vpack.c.bf16 %v2597, %v2593
    %v2642 = vpack.c.bf16 %v2598, %v2594
    %v2643 = vpack.c.bf16 %v2599, %v2595
    %v2644 = vpack.c.bf16 %v2604, %v2600
    %v2645 = vpack.c.bf16 %v2605, %v2601
    %v2646 = vpack.c.bf16 %v2606, %v2602
    %v2647 = vpack.c.bf16 %v2607, %v2603
    %v2648 = vpack.c.bf16 %v2612, %v2608
    %v2649 = vpack.c.bf16 %v2613, %v2609
    %v2650 = vpack.c.bf16 %v2614, %v2610
    %v2651 = vpack.c.bf16 %v2615, %v2611
    %v2652 = vpack.c.bf16 %v2620, %v2616
    %v2653 = vpack.c.bf16 %v2621, %v2617
    %v2654 = vpack.c.bf16 %v2622, %v2618
    %v2655 = vpack.c.bf16 %v2623, %v2619
    %v2656 = vld [vmem:[#allocation6] sm:$0xff]
    %v2657 = vld [vmem:[#allocation6 + $0x8] sm:$0xff]
    %v2658 = vld [vmem:[#allocation6 + $0x10] sm:$0xff]
    %v2659 = vld [vmem:[#allocation6 + $0x18] sm:$0xff]
    %v2660 = vld [vmem:[#allocation6 + $0x20] sm:$0xff]
    %v2661 = vld [vmem:[#allocation6 + $0x28] sm:$0xff]
    %v2662 = vld [vmem:[#allocation6 + $0x30] sm:$0xff]
    %v2663 = vld [vmem:[#allocation6 + $0x38] sm:$0xff]
    %v2664 = vld [vmem:[#allocation6 + $0x40] sm:$0xff]
    %v2665 = vld [vmem:[#allocation6 + $0x48] sm:$0xff]
    %v2666 = vld [vmem:[#allocation6 + $0x50] sm:$0xff]
    %v2667 = vld [vmem:[#allocation6 + $0x58] sm:$0xff]
    %v2668 = vld [vmem:[#allocation6 + $0x60] sm:$0xff]
    %v2669 = vld [vmem:[#allocation6 + $0x68] sm:$0xff]
    %v2670 = vld [vmem:[#allocation6 + $0x70] sm:$0xff]
    %v2671 = vld [vmem:[#allocation6 + $0x78] sm:$0xff]
    %v2672 = vld [vmem:[#allocation6 + $0x80] sm:$0xff]
    %v2673 = vld [vmem:[#allocation6 + $0x88] sm:$0xff]
    %v2674 = vld [vmem:[#allocation6 + $0x90] sm:$0xff]
    %v2675 = vld [vmem:[#allocation6 + $0x98] sm:$0xff]
    %v2676 = vld [vmem:[#allocation6 + $0xa0] sm:$0xff]
    %v2677 = vld [vmem:[#allocation6 + $0xa8] sm:$0xff]
    %v2678 = vld [vmem:[#allocation6 + $0xb0] sm:$0xff]
    %v2679 = vld [vmem:[#allocation6 + $0xb8] sm:$0xff]
    %v2680 = vld [vmem:[#allocation6 + $0xc0] sm:$0xff]
    %v2681 = vld [vmem:[#allocation6 + $0xc8] sm:$0xff]
    %v2682 = vld [vmem:[#allocation6 + $0xd0] sm:$0xff]
    %v2683 = vld [vmem:[#allocation6 + $0xd8] sm:$0xff]
    %v2684 = vld [vmem:[#allocation6 + $0xe0] sm:$0xff]
    %v2685 = vld [vmem:[#allocation6 + $0xe8] sm:$0xff]
    %v2686 = vld [vmem:[#allocation6 + $0xf0] sm:$0xff]
    %v2687 = vld [vmem:[#allocation6 + $0xf8] sm:$0xff]
    %v2688 = vld [vmem:[#allocation6 + $0x100] sm:$0xff]
    %v2689 = vld [vmem:[#allocation6 + $0x108] sm:$0xff]
    %v2690 = vld [vmem:[#allocation6 + $0x110] sm:$0xff]
    %v2691 = vld [vmem:[#allocation6 + $0x118] sm:$0xff]
    %v2692 = vld [vmem:[#allocation6 + $0x120] sm:$0xff]
    %v2693 = vld [vmem:[#allocation6 + $0x128] sm:$0xff]
    %v2694 = vld [vmem:[#allocation6 + $0x130] sm:$0xff]
    %v2695 = vld [vmem:[#allocation6 + $0x138] sm:$0xff]
    %v2696 = vld [vmem:[#allocation6 + $0x140] sm:$0xff]
    %v2697 = vld [vmem:[#allocation6 + $0x148] sm:$0xff]
    %v2698 = vld [vmem:[#allocation6 + $0x150] sm:$0xff]
    %v2699 = vld [vmem:[#allocation6 + $0x158] sm:$0xff]
    %v2700 = vld [vmem:[#allocation6 + $0x160] sm:$0xff]
    %v2701 = vld [vmem:[#allocation6 + $0x168] sm:$0xff]
    %v2702 = vld [vmem:[#allocation6 + $0x170] sm:$0xff]
    %v2703 = vld [vmem:[#allocation6 + $0x178] sm:$0xff]
    %v2704 = vld [vmem:[#allocation6 + $0x180] sm:$0xff]
    %v2705 = vld [vmem:[#allocation6 + $0x188] sm:$0xff]
    %v2706 = vld [vmem:[#allocation6 + $0x190] sm:$0xff]
    %v2707 = vld [vmem:[#allocation6 + $0x198] sm:$0xff]
    %v2708 = vld [vmem:[#allocation6 + $0x1a0] sm:$0xff]
    %v2709 = vld [vmem:[#allocation6 + $0x1a8] sm:$0xff]
    %v2710 = vld [vmem:[#allocation6 + $0x1b0] sm:$0xff]
    %v2711 = vld [vmem:[#allocation6 + $0x1b8] sm:$0xff]
    %v2712 = vld [vmem:[#allocation6 + $0x1c0] sm:$0xff]
    %v2713 = vld [vmem:[#allocation6 + $0x1c8] sm:$0xff]
    %v2714 = vld [vmem:[#allocation6 + $0x1d0] sm:$0xff]
    %v2715 = vld [vmem:[#allocation6 + $0x1d8] sm:$0xff]
    %v2716 = vld [vmem:[#allocation6 + $0x1e0] sm:$0xff]
    %v2717 = vld [vmem:[#allocation6 + $0x1e8] sm:$0xff]
    %v2718 = vld [vmem:[#allocation6 + $0x1f0] sm:$0xff]
    %v2719 = vld [vmem:[#allocation6 + $0x1f8] sm:$0xff]
    %v2720 = vld [vmem:[%s7 + $0xb] sm:$0x3]
    %v2722 = vlaneseq
    %v2723 = vshrl.u32 %v2722, 7
    %v2724 = vsub.s32 0, %v2723
    %v2725 = vrot.slane %v2720, %v2724
    %v2726 = vlaneseq
    %v2727 = vshrl.u32 %v2726, 7
    %v2728 = vsub.s32 1, %v2727
    %v2729 = vrot.slane %v2720, %v2728
    %v2796 = vunpack.c.l.b16 %v2656
    %v2797 = vunpack.c.h.b16 %v2656
    %v2798 = vunpack.c.l.b16 %v2657
    %v2799 = vunpack.c.h.b16 %v2657
    %v2800 = vunpack.c.l.b16 %v2658
    %v2801 = vunpack.c.h.b16 %v2658
    %v2802 = vunpack.c.l.b16 %v2659
    %v2803 = vunpack.c.h.b16 %v2659
    %v2804 = vunpack.c.l.b16 %v2660
    %v2805 = vunpack.c.h.b16 %v2660
    %v2806 = vunpack.c.l.b16 %v2661
    %v2807 = vunpack.c.h.b16 %v2661
    %v2808 = vunpack.c.l.b16 %v2662
    %v2809 = vunpack.c.h.b16 %v2662
    %v2810 = vunpack.c.l.b16 %v2663
    %v2811 = vunpack.c.h.b16 %v2663
    %v2812 = vunpack.c.l.b16 %v2664
    %v2813 = vunpack.c.h.b16 %v2664
    %v2814 = vunpack.c.l.b16 %v2665
    %v2815 = vunpack.c.h.b16 %v2665
    %v2816 = vunpack.c.l.b16 %v2666
    %v2817 = vunpack.c.h.b16 %v2666
    %v2818 = vunpack.c.l.b16 %v2667
    %v2819 = vunpack.c.h.b16 %v2667
    %v2820 = vunpack.c.l.b16 %v2668
    %v2821 = vunpack.c.h.b16 %v2668
    %v2822 = vunpack.c.l.b16 %v2669
    %v2823 = vunpack.c.h.b16 %v2669
    %v2824 = vunpack.c.l.b16 %v2670
    %v2825 = vunpack.c.h.b16 %v2670
    %v2826 = vunpack.c.l.b16 %v2671
    %v2827 = vunpack.c.h.b16 %v2671
    %v2828 = vunpack.c.l.b16 %v2672
    %v2829 = vunpack.c.h.b16 %v2672
    %v2830 = vunpack.c.l.b16 %v2673
    %v2831 = vunpack.c.h.b16 %v2673
    %v2832 = vunpack.c.l.b16 %v2674
    %v2833 = vunpack.c.h.b16 %v2674
    %v2834 = vunpack.c.l.b16 %v2675
    %v2835 = vunpack.c.h.b16 %v2675
    %v2836 = vunpack.c.l.b16 %v2676
    %v2837 = vunpack.c.h.b16 %v2676
    %v2838 = vunpack.c.l.b16 %v2677
    %v2839 = vunpack.c.h.b16 %v2677
    %v2840 = vunpack.c.l.b16 %v2678
    %v2841 = vunpack.c.h.b16 %v2678
    %v2842 = vunpack.c.l.b16 %v2679
    %v2843 = vunpack.c.h.b16 %v2679
    %v2844 = vunpack.c.l.b16 %v2680
    %v2845 = vunpack.c.h.b16 %v2680
    %v2846 = vunpack.c.l.b16 %v2681
    %v2847 = vunpack.c.h.b16 %v2681
    %v2848 = vunpack.c.l.b16 %v2682
    %v2849 = vunpack.c.h.b16 %v2682
    %v2850 = vunpack.c.l.b16 %v2683
    %v2851 = vunpack.c.h.b16 %v2683
    %v2852 = vunpack.c.l.b16 %v2684
    %v2853 = vunpack.c.h.b16 %v2684
    %v2854 = vunpack.c.l.b16 %v2685
    %v2855 = vunpack.c.h.b16 %v2685
    %v2856 = vunpack.c.l.b16 %v2686
    %v2857 = vunpack.c.h.b16 %v2686
    %v2858 = vunpack.c.l.b16 %v2687
    %v2859 = vunpack.c.h.b16 %v2687
    %v2860 = vunpack.c.l.b16 %v2688
    %v2861 = vunpack.c.h.b16 %v2688
    %v2862 = vunpack.c.l.b16 %v2689
    %v2863 = vunpack.c.h.b16 %v2689
    %v2864 = vunpack.c.l.b16 %v2690
    %v2865 = vunpack.c.h.b16 %v2690
    %v2866 = vunpack.c.l.b16 %v2691
    %v2867 = vunpack.c.h.b16 %v2691
    %v2868 = vunpack.c.l.b16 %v2692
    %v2869 = vunpack.c.h.b16 %v2692
    %v2870 = vunpack.c.l.b16 %v2693
    %v2871 = vunpack.c.h.b16 %v2693
    %v2872 = vunpack.c.l.b16 %v2694
    %v2873 = vunpack.c.h.b16 %v2694
    %v2874 = vunpack.c.l.b16 %v2695
    %v2875 = vunpack.c.h.b16 %v2695
    %v2876 = vunpack.c.l.b16 %v2696
    %v2877 = vunpack.c.h.b16 %v2696
    %v2878 = vunpack.c.l.b16 %v2697
    %v2879 = vunpack.c.h.b16 %v2697
    %v2880 = vunpack.c.l.b16 %v2698
    %v2881 = vunpack.c.h.b16 %v2698
    %v2882 = vunpack.c.l.b16 %v2699
    %v2883 = vunpack.c.h.b16 %v2699
    %v2884 = vunpack.c.l.b16 %v2700
    %v2885 = vunpack.c.h.b16 %v2700
    %v2886 = vunpack.c.l.b16 %v2701
    %v2887 = vunpack.c.h.b16 %v2701
    %v2888 = vunpack.c.l.b16 %v2702
    %v2889 = vunpack.c.h.b16 %v2702
    %v2890 = vunpack.c.l.b16 %v2703
    %v2891 = vunpack.c.h.b16 %v2703
    %v2892 = vunpack.c.l.b16 %v2704
    %v2893 = vunpack.c.h.b16 %v2704
    %v2894 = vunpack.c.l.b16 %v2705
    %v2895 = vunpack.c.h.b16 %v2705
    %v2896 = vunpack.c.l.b16 %v2706
    %v2897 = vunpack.c.h.b16 %v2706
    %v2898 = vunpack.c.l.b16 %v2707
    %v2899 = vunpack.c.h.b16 %v2707
    %v2900 = vunpack.c.l.b16 %v2708
    %v2901 = vunpack.c.h.b16 %v2708
    %v2902 = vunpack.c.l.b16 %v2709
    %v2903 = vunpack.c.h.b16 %v2709
    %v2904 = vunpack.c.l.b16 %v2710
    %v2905 = vunpack.c.h.b16 %v2710
    %v2906 = vunpack.c.l.b16 %v2711
    %v2907 = vunpack.c.h.b16 %v2711
    %v2908 = vunpack.c.l.b16 %v2712
    %v2909 = vunpack.c.h.b16 %v2712
    %v2910 = vunpack.c.l.b16 %v2713
    %v2911 = vunpack.c.h.b16 %v2713
    %v2912 = vunpack.c.l.b16 %v2714
    %v2913 = vunpack.c.h.b16 %v2714
    %v2914 = vunpack.c.l.b16 %v2715
    %v2915 = vunpack.c.h.b16 %v2715
    %v2916 = vunpack.c.l.b16 %v2716
    %v2917 = vunpack.c.h.b16 %v2716
    %v2918 = vunpack.c.l.b16 %v2717
    %v2919 = vunpack.c.h.b16 %v2717
    %v2920 = vunpack.c.l.b16 %v2718
    %v2921 = vunpack.c.h.b16 %v2718
    %v2922 = vunpack.c.l.b16 %v2719
    %v2923 = vunpack.c.h.b16 %v2719
    %v2924 = vpack.c.b16 %v2798, %v2796
    %v2925 = vpack.c.b16 %v2799, %v2797
    %v2926 = vpack.c.b16 %v2802, %v2800
    %v2927 = vpack.c.b16 %v2803, %v2801
    %v2928 = vpack.c.b16 %v2806, %v2804
    %v2929 = vpack.c.b16 %v2807, %v2805
    %v2930 = vpack.c.b16 %v2810, %v2808
    %v2931 = vpack.c.b16 %v2811, %v2809
    %v2932 = vpack.c.b16 %v2814, %v2812
    %v2933 = vpack.c.b16 %v2815, %v2813
    %v2934 = vpack.c.b16 %v2818, %v2816
    %v2935 = vpack.c.b16 %v2819, %v2817
    %v2936 = vpack.c.b16 %v2822, %v2820
    %v2937 = vpack.c.b16 %v2823, %v2821
    %v2938 = vpack.c.b16 %v2826, %v2824
    %v2939 = vpack.c.b16 %v2827, %v2825
    %v2940 = vpack.c.b16 %v2830, %v2828
    %v2941 = vpack.c.b16 %v2831, %v2829
    %v2942 = vpack.c.b16 %v2834, %v2832
    %v2943 = vpack.c.b16 %v2835, %v2833
    %v2944 = vpack.c.b16 %v2838, %v2836
    %v2945 = vpack.c.b16 %v2839, %v2837
    %v2946 = vpack.c.b16 %v2842, %v2840
    %v2947 = vpack.c.b16 %v2843, %v2841
    %v2948 = vpack.c.b16 %v2846, %v2844
    %v2949 = vpack.c.b16 %v2847, %v2845
    %v2950 = vpack.c.b16 %v2850, %v2848
    %v2951 = vpack.c.b16 %v2851, %v2849
    %v2952 = vpack.c.b16 %v2854, %v2852
    %v2953 = vpack.c.b16 %v2855, %v2853
    %v2954 = vpack.c.b16 %v2858, %v2856
    %v2955 = vpack.c.b16 %v2859, %v2857
    %v2956 = vpack.c.b16 %v2862, %v2860
    %v2957 = vpack.c.b16 %v2863, %v2861
    %v2958 = vpack.c.b16 %v2866, %v2864
    %v2959 = vpack.c.b16 %v2867, %v2865
    %v2960 = vpack.c.b16 %v2870, %v2868
    %v2961 = vpack.c.b16 %v2871, %v2869
    %v2962 = vpack.c.b16 %v2874, %v2872
    %v2963 = vpack.c.b16 %v2875, %v2873
    %v2964 = vpack.c.b16 %v2878, %v2876
    %v2965 = vpack.c.b16 %v2879, %v2877
    %v2966 = vpack.c.b16 %v2882, %v2880
    %v2967 = vpack.c.b16 %v2883, %v2881
    %v2968 = vpack.c.b16 %v2886, %v2884
    %v2969 = vpack.c.b16 %v2887, %v2885
    %v2970 = vpack.c.b16 %v2890, %v2888
    %v2971 = vpack.c.b16 %v2891, %v2889
    %v2972 = vpack.c.b16 %v2894, %v2892
    %v2973 = vpack.c.b16 %v2895, %v2893
    %v2974 = vpack.c.b16 %v2898, %v2896
    %v2975 = vpack.c.b16 %v2899, %v2897
    %v2976 = vpack.c.b16 %v2902, %v2900
    %v2977 = vpack.c.b16 %v2903, %v2901
    %v2978 = vpack.c.b16 %v2906, %v2904
    %v2979 = vpack.c.b16 %v2907, %v2905
    %v2980 = vpack.c.b16 %v2910, %v2908
    %v2981 = vpack.c.b16 %v2911, %v2909
    %v2982 = vpack.c.b16 %v2914, %v2912
    %v2983 = vpack.c.b16 %v2915, %v2913
    %v2984 = vpack.c.b16 %v2918, %v2916
    %v2985 = vpack.c.b16 %v2919, %v2917
    %v2986 = vpack.c.b16 %v2922, %v2920
    %v2987 = vpack.c.b16 %v2923, %v2921
    %3052 = vmatprep.subr.bf16.mxu0 %v2925
    %3053 = vmatpush1.bf16.msra.mxu0 %v2924
    %3054 = vmatprep.subr.bf16.mxu0 %v2927
    %3055 = vmatpush1.bf16.msra.mxu0 %v2926
    %3056 = vmatprep.subr.bf16.mxu0 %v2929
    %3057 = vmatpush1.bf16.msra.mxu0 %v2928
    %3058 = vmatprep.subr.bf16.mxu0 %v2931
    %3059 = vmatpush1.bf16.msra.mxu0 %v2930
    %3060 = vmatprep.subr.bf16.mxu0 %v2933
    %3061 = vmatpush1.bf16.msra.mxu0 %v2932
    %3062 = vmatprep.subr.bf16.mxu0 %v2935
    %3063 = vmatpush1.bf16.msra.mxu0 %v2934
    %3064 = vmatprep.subr.bf16.mxu0 %v2937
    %3065 = vmatpush1.bf16.msra.mxu0 %v2936
    %3066 = vmatprep.subr.bf16.mxu0 %v2939
    %3067 = vmatpush1.bf16.msra.mxu0 %v2938
    %3068 = vmatprep.subr.bf16.mxu0 %v2941
    %3069 = vmatpush1.bf16.msra.mxu0 %v2940
    %3070 = vmatprep.subr.bf16.mxu0 %v2943
    %3071 = vmatpush1.bf16.msra.mxu0 %v2942
    %3072 = vmatprep.subr.bf16.mxu0 %v2945
    %3073 = vmatpush1.bf16.msra.mxu0 %v2944
    %3074 = vmatprep.subr.bf16.mxu0 %v2947
    %3075 = vmatpush1.bf16.msra.mxu0 %v2946
    %3076 = vmatprep.subr.bf16.mxu0 %v2949
    %3077 = vmatpush1.bf16.msra.mxu0 %v2948
    %3078 = vmatprep.subr.bf16.mxu0 %v2951
    %3079 = vmatpush1.bf16.msra.mxu0 %v2950
    %3080 = vmatprep.subr.bf16.mxu0 %v2953
    %3081 = vmatpush1.bf16.msra.mxu0 %v2952
    %3082 = vmatprep.subr.bf16.mxu0 %v2955
    %3083 = vmatpush1.bf16.msra.mxu0 %v2954
    %3084 = vmatprep.mubr.bf16.mxu0 %v2625
    %3085 = vmatmul.mubr.bf16.gmra.mrb[0].mxu0 %v2624
    %v3086 = vpop.f32.mrb[0].mxu0
    %v3087 = vadd.f32 %v2725, %v3086
    %v3088 = vpop.f32.mrb[0].mxu0
    %v3089 = vadd.f32 %v2729, %v3088
    %v3090 = vpop.f32.mrb[0].mxu0
    %v3091 = vadd.f32 %v2725, %v3090
    %v3092 = vpop.f32.mrb[0].mxu0
    %v3093 = vadd.f32 %v2729, %v3092
    %3094 = vmatprep.mubr.bf16.mxu0 %v2629
    %3095 = vmatmul.mubr.bf16.gmra.mrb[0].mxu0 %v2628
    %v3096 = vpop.f32.mrb[0].mxu0
    %v3097 = vadd.f32 %v2725, %v3096
    %v3098 = vpop.f32.mrb[0].mxu0
    %v3099 = vadd.f32 %v2729, %v3098
    %v3100 = vpop.f32.mrb[0].mxu0
    %v3101 = vadd.f32 %v2725, %v3100
    %v3102 = vpop.f32.mrb[0].mxu0
    %v3103 = vadd.f32 %v2729, %v3102
    %3104 = vmatprep.mubr.bf16.mxu0 %v2633
    %3105 = vmatmul.mubr.bf16.gmra.mrb[0].mxu0 %v2632
    %v3106 = vpop.f32.mrb[0].mxu0
    %v3107 = vadd.f32 %v2725, %v3106
    %v3108 = vpop.f32.mrb[0].mxu0
    %v3109 = vadd.f32 %v2729, %v3108
    %v3110 = vpop.f32.mrb[0].mxu0
    %v3111 = vadd.f32 %v2725, %v3110
    %v3112 = vpop.f32.mrb[0].mxu0
    %v3113 = vadd.f32 %v2729, %v3112
    %3114 = vmatprep.mubr.bf16.mxu0 %v2637
    %3115 = vmatmul.mubr.bf16.gmra.mrb[0].mxu0 %v2636
    %v3116 = vpop.f32.mrb[0].mxu0
    %v3117 = vadd.f32 %v2725, %v3116
    %v3118 = vpop.f32.mrb[0].mxu0
    %v3119 = vadd.f32 %v2729, %v3118
    %v3120 = vpop.f32.mrb[0].mxu0
    %v3121 = vadd.f32 %v2725, %v3120
    %v3122 = vpop.f32.mrb[0].mxu0
    %v3123 = vadd.f32 %v2729, %v3122
    %3124 = vmatprep.mubr.bf16.mxu0 %v2641
    %3125 = vmatmul.mubr.bf16.gmra.mrb[0].mxu0 %v2640
    %v3126 = vpop.f32.mrb[0].mxu0
    %v3127 = vadd.f32 %v2725, %v3126
    %v3128 = vpop.f32.mrb[0].mxu0
    %v3129 = vadd.f32 %v2729, %v3128
    %v3130 = vpop.f32.mrb[0].mxu0
    %v3131 = vadd.f32 %v2725, %v3130
    %v3132 = vpop.f32.mrb[0].mxu0
    %v3133 = vadd.f32 %v2729, %v3132
    %3134 = vmatprep.mubr.bf16.mxu0 %v2645
    %3135 = vmatmul.mubr.bf16.gmra.mrb[0].mxu0 %v2644
    %v3136 = vpop.f32.mrb[0].mxu0
    %v3137 = vadd.f32 %v2725, %v3136
    %v3138 = vpop.f32.mrb[0].mxu0
    %v3139 = vadd.f32 %v2729, %v3138
    %v3140 = vpop.f32.mrb[0].mxu0
    %v3141 = vadd.f32 %v2725, %v3140
    %v3142 = vpop.f32.mrb[0].mxu0
    %v3143 = vadd.f32 %v2729, %v3142
    %3144 = vmatprep.mubr.bf16.mxu0 %v2649
    %3145 = vmatmul.mubr.bf16.gmra.mrb[0].mxu0 %v2648
    %v3146 = vpop.f32.mrb[0].mxu0
    %v3147 = vadd.f32 %v2725, %v3146
    %v3148 = vpop.f32.mrb[0].mxu0
    %v3149 = vadd.f32 %v2729, %v3148
    %v3150 = vpop.f32.mrb[0].mxu0
    %v3151 = vadd.f32 %v2725, %v3150
    %v3152 = vpop.f32.mrb[0].mxu0
    %v3153 = vadd.f32 %v2729, %v3152
    %3154 = vmatprep.mubr.bf16.mxu0 %v2653
    %3155 = vmatmul.mubr.bf16.gmra.mrb[0].mxu0 %v2652
    %v3156 = vpop.f32.mrb[0].mxu0
    %v3157 = vadd.f32 %v2725, %v3156
    %v3158 = vpop.f32.mrb[0].mxu0
    %v3159 = vadd.f32 %v2729, %v3158
    %v3160 = vpop.f32.mrb[0].mxu0
    %v3161 = vadd.f32 %v2725, %v3160
    %v3162 = vpop.f32.mrb[0].mxu0
    %v3163 = vadd.f32 %v2729, %v3162
    %3164 = vdwg.mxu0
    %3165 = vmatprep.subr.bf16.mxu0 %v2957
    %3166 = vmatpush1.bf16.msra.mxu0 %v2956
    %3167 = vmatprep.subr.bf16.mxu0 %v2959
    %3168 = vmatpush1.bf16.msra.mxu0 %v2958
    %3169 = vmatprep.subr.bf16.mxu0 %v2961
    %3170 = vmatpush1.bf16.msra.mxu0 %v2960
    %3171 = vmatprep.subr.bf16.mxu0 %v2963
    %3172 = vmatpush1.bf16.msra.mxu0 %v2962
    %3173 = vmatprep.subr.bf16.mxu0 %v2965
    %3174 = vmatpush1.bf16.msra.mxu0 %v2964
    %3175 = vmatprep.subr.bf16.mxu0 %v2967
    %3176 = vmatpush1.bf16.msra.mxu0 %v2966
    %3177 = vmatprep.subr.bf16.mxu0 %v2969
    %3178 = vmatpush1.bf16.msra.mxu0 %v2968
    %3179 = vmatprep.subr.bf16.mxu0 %v2971
    %3180 = vmatpush1.bf16.msra.mxu0 %v2970
    %3181 = vmatprep.subr.bf16.mxu0 %v2973
    %3182 = vmatpush1.bf16.msra.mxu0 %v2972
    %3183 = vmatprep.subr.bf16.mxu0 %v2975
    %3184 = vmatpush1.bf16.msra.mxu0 %v2974
    %3185 = vmatprep.subr.bf16.mxu0 %v2977
    %3186 = vmatpush1.bf16.msra.mxu0 %v2976
    %3187 = vmatprep.subr.bf16.mxu0 %v2979
    %3188 = vmatpush1.bf16.msra.mxu0 %v2978
    %3189 = vmatprep.subr.bf16.mxu0 %v2981
    %3190 = vmatpush1.bf16.msra.mxu0 %v2980
    %3191 = vmatprep.subr.bf16.mxu0 %v2983
    %3192 = vmatpush1.bf16.msra.mxu0 %v2982
    %3193 = vmatprep.subr.bf16.mxu0 %v2985
    %3194 = vmatpush1.bf16.msra.mxu0 %v2984
    %3195 = vmatprep.subr.bf16.mxu0 %v2987
    %3196 = vmatpush1.bf16.msra.mxu0 %v2986
    %3197 = vmatprep.mubr.bf16.mxu0 %v2627
    %3198 = vmatmul.mubr.bf16.gmra.mrb[0].mxu0 %v2626
    %v3199 = vpop.f32.mrb[0].mxu0
    %v3200 = vadd.f32 %v3087, %v3199
    %v3201 = vpop.f32.mrb[0].mxu0
    %v3202 = vadd.f32 %v3089, %v3201
    %v3203 = vpop.f32.mrb[0].mxu0
    %v3204 = vadd.f32 %v3091, %v3203
    %v3205 = vpop.f32.mrb[0].mxu0
    %v3206 = vadd.f32 %v3093, %v3205
    %3207 = vmatprep.mubr.bf16.mxu0 %v2631
    %3208 = vmatmul.mubr.bf16.gmra.mrb[0].mxu0 %v2630
    %v3209 = vpop.f32.mrb[0].mxu0
    %v3210 = vadd.f32 %v3097, %v3209
    %v3211 = vpop.f32.mrb[0].mxu0
    %v3212 = vadd.f32 %v3099, %v3211
    %v3213 = vpop.f32.mrb[0].mxu0
    %v3214 = vadd.f32 %v3101, %v3213
    %v3215 = vpop.f32.mrb[0].mxu0
    %v3216 = vadd.f32 %v3103, %v3215
    %3217 = vmatprep.mubr.bf16.mxu0 %v2635
    %3218 = vmatmul.mubr.bf16.gmra.mrb[0].mxu0 %v2634
    %v3219 = vpop.f32.mrb[0].mxu0
    %v3220 = vadd.f32 %v3107, %v3219
    %v3221 = vpop.f32.mrb[0].mxu0
    %v3222 = vadd.f32 %v3109, %v3221
    %v3223 = vpop.f32.mrb[0].mxu0
    %v3224 = vadd.f32 %v3111, %v3223
    %v3225 = vpop.f32.mrb[0].mxu0
    %v3226 = vadd.f32 %v3113, %v3225
    %3227 = vmatprep.mubr.bf16.mxu0 %v2639
    %3228 = vmatmul.mubr.bf16.gmra.mrb[0].mxu0 %v2638
    %v3229 = vpop.f32.mrb[0].mxu0
    %v3230 = vadd.f32 %v3117, %v3229
    %v3231 = vpop.f32.mrb[0].mxu0
    %v3232 = vadd.f32 %v3119, %v3231
    %v3233 = vpop.f32.mrb[0].mxu0
    %v3234 = vadd.f32 %v3121, %v3233
    %v3235 = vpop.f32.mrb[0].mxu0
    %v3236 = vadd.f32 %v3123, %v3235
    %3237 = vmatprep.mubr.bf16.mxu0 %v2643
    %3238 = vmatmul.mubr.bf16.gmra.mrb[0].mxu0 %v2642
    %v3239 = vpop.f32.mrb[0].mxu0
    %v3240 = vadd.f32 %v3127, %v3239
    %v3241 = vpop.f32.mrb[0].mxu0
    %v3242 = vadd.f32 %v3129, %v3241
    %v3243 = vpop.f32.mrb[0].mxu0
    %v3244 = vadd.f32 %v3131, %v3243
    %v3245 = vpop.f32.mrb[0].mxu0
    %v3246 = vadd.f32 %v3133, %v3245
    %3247 = vmatprep.mubr.bf16.mxu0 %v2647
    %3248 = vmatmul.mubr.bf16.gmra.mrb[0].mxu0 %v2646
    %v3249 = vpop.f32.mrb[0].mxu0
    %v3250 = vadd.f32 %v3137, %v3249
    %v3251 = vpop.f32.mrb[0].mxu0
    %v3252 = vadd.f32 %v3139, %v3251
    %v3253 = vpop.f32.mrb[0].mxu0
    %v3254 = vadd.f32 %v3141, %v3253
    %v3255 = vpop.f32.mrb[0].mxu0
    %v3256 = vadd.f32 %v3143, %v3255
    %3257 = vmatprep.mubr.bf16.mxu0 %v2651
    %3258 = vmatmul.mubr.bf16.gmra.mrb[0].mxu0 %v2650
    %v3259 = vpop.f32.mrb[0].mxu0
    %v3260 = vadd.f32 %v3147, %v3259
    %v3261 = vpop.f32.mrb[0].mxu0
    %v3262 = vadd.f32 %v3149, %v3261
    %v3263 = vpop.f32.mrb[0].mxu0
    %v3264 = vadd.f32 %v3151, %v3263
    %v3265 = vpop.f32.mrb[0].mxu0
    %v3266 = vadd.f32 %v3153, %v3265
    %3267 = vmatprep.mubr.bf16.mxu0 %v2655
    %3268 = vmatmul.mubr.bf16.gmra.mrb[0].mxu0 %v2654
    %v3269 = vpop.f32.mrb[0].mxu0
    %v3270 = vadd.f32 %v3157, %v3269
    %v3271 = vpop.f32.mrb[0].mxu0
    %v3272 = vadd.f32 %v3159, %v3271
    %v3273 = vpop.f32.mrb[0].mxu0
    %v3274 = vadd.f32 %v3161, %v3273
    %v3275 = vpop.f32.mrb[0].mxu0
    %v3276 = vadd.f32 %v3163, %v3275
    %3277 = vdwg.mxu0
    %vm3278 = vcmp.gt.f32.partialorder %v3200, 0.0
    %vm3279 = vcmp.gt.f32.partialorder %v3202, 0.0
    %vm3280 = vcmp.gt.f32.partialorder %v3204, 0.0
    %vm3281 = vcmp.gt.f32.partialorder %v3206, 0.0
    %vm3282 = vcmp.gt.f32.partialorder %v3210, 0.0
    %vm3283 = vcmp.gt.f32.partialorder %v3212, 0.0
    %vm3284 = vcmp.gt.f32.partialorder %v3214, 0.0
    %vm3285 = vcmp.gt.f32.partialorder %v3216, 0.0
    %vm3286 = vcmp.gt.f32.partialorder %v3220, 0.0
    %vm3287 = vcmp.gt.f32.partialorder %v3222, 0.0
    %vm3288 = vcmp.gt.f32.partialorder %v3224, 0.0
    %vm3289 = vcmp.gt.f32.partialorder %v3226, 0.0
    %vm3290 = vcmp.gt.f32.partialorder %v3230, 0.0
    %vm3291 = vcmp.gt.f32.partialorder %v3232, 0.0
    %vm3292 = vcmp.gt.f32.partialorder %v3234, 0.0
    %vm3293 = vcmp.gt.f32.partialorder %v3236, 0.0
    %vm3294 = vcmp.gt.f32.partialorder %v3240, 0.0
    %vm3295 = vcmp.gt.f32.partialorder %v3242, 0.0
    %vm3296 = vcmp.gt.f32.partialorder %v3244, 0.0
    %vm3297 = vcmp.gt.f32.partialorder %v3246, 0.0
    %vm3298 = vcmp.gt.f32.partialorder %v3250, 0.0
    %vm3299 = vcmp.gt.f32.partialorder %v3252, 0.0
    %vm3300 = vcmp.gt.f32.partialorder %v3254, 0.0
    %vm3301 = vcmp.gt.f32.partialorder %v3256, 0.0
    %vm3302 = vcmp.gt.f32.partialorder %v3260, 0.0
    %vm3303 = vcmp.gt.f32.partialorder %v3262, 0.0
    %vm3304 = vcmp.gt.f32.partialorder %v3264, 0.0
    %vm3305 = vcmp.gt.f32.partialorder %v3266, 0.0
    %vm3306 = vcmp.gt.f32.partialorder %v3270, 0.0
    %vm3307 = vcmp.gt.f32.partialorder %v3272, 0.0
    %vm3308 = vcmp.gt.f32.partialorder %v3274, 0.0
    %vm3309 = vcmp.gt.f32.partialorder %v3276, 0.0
    %v3310 = vmin.f32 %v3200, 0.0
    %v3311 = vmin.f32 %v3202, 0.0
    %v3312 = vmin.f32 %v3204, 0.0
    %v3313 = vmin.f32 %v3206, 0.0
    %v3314 = vmin.f32 %v3210, 0.0
    %v3315 = vmin.f32 %v3212, 0.0
    %v3316 = vmin.f32 %v3214, 0.0
    %v3317 = vmin.f32 %v3216, 0.0
    %v3318 = vmin.f32 %v3220, 0.0
    %v3319 = vmin.f32 %v3222, 0.0
    %v3320 = vmin.f32 %v3224, 0.0
    %v3321 = vmin.f32 %v3226, 0.0
    %v3322 = vmin.f32 %v3230, 0.0
    %v3323 = vmin.f32 %v3232, 0.0
    %v3324 = vmin.f32 %v3234, 0.0
    %v3325 = vmin.f32 %v3236, 0.0
    %v3326 = vmin.f32 %v3240, 0.0
    %v3327 = vmin.f32 %v3242, 0.0
    %v3328 = vmin.f32 %v3244, 0.0
    %v3329 = vmin.f32 %v3246, 0.0
    %v3330 = vmin.f32 %v3250, 0.0
    %v3331 = vmin.f32 %v3252, 0.0
    %v3332 = vmin.f32 %v3254, 0.0
    %v3333 = vmin.f32 %v3256, 0.0
    %v3334 = vmin.f32 %v3260, 0.0
    %v3335 = vmin.f32 %v3262, 0.0
    %v3336 = vmin.f32 %v3264, 0.0
    %v3337 = vmin.f32 %v3266, 0.0
    %v3338 = vmin.f32 %v3270, 0.0
    %v3339 = vmin.f32 %v3272, 0.0
    %v3340 = vmin.f32 %v3274, 0.0
    %v3341 = vmin.f32 %v3276, 0.0
    %v3342 = vmul.f32 %v3310, 1.442695
    %v3343 = vpow.pop %v3342
    %v3344 = vmul.f32 %v3311, 1.442695
    %v3345 = vpow.pop %v3344
    %v3346 = vmul.f32 %v3312, 1.442695
    %v3347 = vpow.pop %v3346
    %v3348 = vmul.f32 %v3313, 1.442695
    %v3349 = vpow.pop %v3348
    %v3350 = vmul.f32 %v3314, 1.442695
    %v3351 = vpow.pop %v3350
    %v3352 = vmul.f32 %v3315, 1.442695
    %v3353 = vpow.pop %v3352
    %v3354 = vmul.f32 %v3316, 1.442695
    %v3355 = vpow.pop %v3354
    %v3356 = vmul.f32 %v3317, 1.442695
    %v3357 = vpow.pop %v3356
    %v3358 = vmul.f32 %v3318, 1.442695
    %v3359 = vpow.pop %v3358
    %v3360 = vmul.f32 %v3319, 1.442695
    %v3361 = vpow.pop %v3360
    %v3362 = vmul.f32 %v3320, 1.442695
    %v3363 = vpow.pop %v3362
    %v3364 = vmul.f32 %v3321, 1.442695
    %v3365 = vpow.pop %v3364
    %v3366 = vmul.f32 %v3322, 1.442695
    %v3367 = vpow.pop %v3366
    %v3368 = vmul.f32 %v3323, 1.442695
    %v3369 = vpow.pop %v3368
    %v3370 = vmul.f32 %v3324, 1.442695
    %v3371 = vpow.pop %v3370
    %v3372 = vmul.f32 %v3325, 1.442695
    %v3373 = vpow.pop %v3372
    %v3374 = vmul.f32 %v3326, 1.442695
    %v3375 = vpow.pop %v3374
    %v3376 = vmul.f32 %v3327, 1.442695
    %v3377 = vpow.pop %v3376
    %v3378 = vmul.f32 %v3328, 1.442695
    %v3379 = vpow.pop %v3378
    %v3380 = vmul.f32 %v3329, 1.442695
    %v3381 = vpow.pop %v3380
    %v3382 = vmul.f32 %v3330, 1.442695
    %v3383 = vpow.pop %v3382
    %v3384 = vmul.f32 %v3331, 1.442695
    %v3385 = vpow.pop %v3384
    %v3386 = vmul.f32 %v3332, 1.442695
    %v3387 = vpow.pop %v3386
    %v3388 = vmul.f32 %v3333, 1.442695
    %v3389 = vpow.pop %v3388
    %v3390 = vmul.f32 %v3334, 1.442695
    %v3391 = vpow.pop %v3390
    %v3392 = vmul.f32 %v3335, 1.442695
    %v3393 = vpow.pop %v3392
    %v3394 = vmul.f32 %v3336, 1.442695
    %v3395 = vpow.pop %v3394
    %v3396 = vmul.f32 %v3337, 1.442695
    %v3397 = vpow.pop %v3396
    %v3398 = vmul.f32 %v3338, 1.442695
    %v3399 = vpow.pop %v3398
    %v3400 = vmul.f32 %v3339, 1.442695
    %v3401 = vpow.pop %v3400
    %v3402 = vmul.f32 %v3340, 1.442695
    %v3403 = vpow.pop %v3402
    %v3404 = vmul.f32 %v3341, 1.442695
    %v3405 = vpow.pop %v3404
    %v3406 = vsub.f32 %v3343, 1.0
    %v3407 = vsub.f32 %v3345, 1.0
    %v3408 = vsub.f32 %v3347, 1.0
    %v3409 = vsub.f32 %v3349, 1.0
    %v3410 = vsub.f32 %v3351, 1.0
    %v3411 = vsub.f32 %v3353, 1.0
    %v3412 = vsub.f32 %v3355, 1.0
    %v3413 = vsub.f32 %v3357, 1.0
    %v3414 = vsub.f32 %v3359, 1.0
    %v3415 = vsub.f32 %v3361, 1.0
    %v3416 = vsub.f32 %v3363, 1.0
    %v3417 = vsub.f32 %v3365, 1.0
    %v3418 = vsub.f32 %v3367, 1.0
    %v3419 = vsub.f32 %v3369, 1.0
    %v3420 = vsub.f32 %v3371, 1.0
    %v3421 = vsub.f32 %v3373, 1.0
    %v3422 = vsub.f32 %v3375, 1.0
    %v3423 = vsub.f32 %v3377, 1.0
    %v3424 = vsub.f32 %v3379, 1.0
    %v3425 = vsub.f32 %v3381, 1.0
    %v3426 = vsub.f32 %v3383, 1.0
    %v3427 = vsub.f32 %v3385, 1.0
    %v3428 = vsub.f32 %v3387, 1.0
    %v3429 = vsub.f32 %v3389, 1.0
    %v3430 = vsub.f32 %v3391, 1.0
    %v3431 = vsub.f32 %v3393, 1.0
    %v3432 = vsub.f32 %v3395, 1.0
    %v3433 = vsub.f32 %v3397, 1.0
    %v3434 = vsub.f32 %v3399, 1.0
    %v3435 = vsub.f32 %v3401, 1.0
    %v3436 = vsub.f32 %v3403, 1.0
    %v3437 = vsub.f32 %v3405, 1.0
    %v3438 = vsel %vm3278, %v3200, %v3406
    %v3439 = vsel %vm3279, %v3202, %v3407
    %v3440 = vsel %vm3280, %v3204, %v3408
    %v3441 = vsel %vm3281, %v3206, %v3409
    %v3442 = vsel %vm3282, %v3210, %v3410
    %v3443 = vsel %vm3283, %v3212, %v3411
    %v3444 = vsel %vm3284, %v3214, %v3412
    %v3445 = vsel %vm3285, %v3216, %v3413
    %v3446 = vsel %vm3286, %v3220, %v3414
    %v3447 = vsel %vm3287, %v3222, %v3415
    %v3448 = vsel %vm3288, %v3224, %v3416
    %v3449 = vsel %vm3289, %v3226, %v3417
    %v3450 = vsel %vm3290, %v3230, %v3418
    %v3451 = vsel %vm3291, %v3232, %v3419
    %v3452 = vsel %vm3292, %v3234, %v3420
    %v3453 = vsel %vm3293, %v3236, %v3421
    %v3454 = vsel %vm3294, %v3240, %v3422
    %v3455 = vsel %vm3295, %v3242, %v3423
    %v3456 = vsel %vm3296, %v3244, %v3424
    %v3457 = vsel %vm3297, %v3246, %v3425
    %v3458 = vsel %vm3298, %v3250, %v3426
    %v3459 = vsel %vm3299, %v3252, %v3427
    %v3460 = vsel %vm3300, %v3254, %v3428
    %v3461 = vsel %vm3301, %v3256, %v3429
    %v3462 = vsel %vm3302, %v3260, %v3430
    %v3463 = vsel %vm3303, %v3262, %v3431
    %v3464 = vsel %vm3304, %v3264, %v3432
    %v3465 = vsel %vm3305, %v3266, %v3433
    %v3466 = vsel %vm3306, %v3270, %v3434
    %v3467 = vsel %vm3307, %v3272, %v3435
    %v3468 = vsel %vm3308, %v3274, %v3436
    %v3469 = vsel %vm3309, %v3276, %v3437
    %v3470 = vpack.c.bf16 %v3440, %v3438
    %v3471 = vpack.c.bf16 %v3441, %v3439
    %v3472 = vpack.c.bf16 %v3444, %v3442
    %v3473 = vpack.c.bf16 %v3445, %v3443
    %v3474 = vpack.c.bf16 %v3448, %v3446
    %v3475 = vpack.c.bf16 %v3449, %v3447
    %v3476 = vpack.c.bf16 %v3452, %v3450
    %v3477 = vpack.c.bf16 %v3453, %v3451
    %v3478 = vpack.c.bf16 %v3456, %v3454
    %v3479 = vpack.c.bf16 %v3457, %v3455
    %v3480 = vpack.c.bf16 %v3460, %v3458
    %v3481 = vpack.c.bf16 %v3461, %v3459
    %v3482 = vpack.c.bf16 %v3464, %v3462
    %v3483 = vpack.c.bf16 %v3465, %v3463
    %v3484 = vpack.c.bf16 %v3468, %v3466
    %v3485 = vpack.c.bf16 %v3469, %v3467
    %s3486 = scalar_lea.vmem [#allocation7], 128
    %v3487 = vld [vmem:[%s3486] sm:$0xf]
    %v3488 = vld [vmem:[%s3486 + $0x4] sm:$0xf]
    %v3489 = vld [vmem:[%s3486 + $0x8] sm:$0xf]
    %v3490 = vld [vmem:[%s3486 + $0xc] sm:$0xf]
    %v3491 = vld [vmem:[%s3486 + $0x10] sm:$0xf]
    %v3492 = vld [vmem:[%s3486 + $0x14] sm:$0xf]
    %v3493 = vld [vmem:[%s3486 + $0x18] sm:$0xf]
    %v3494 = vld [vmem:[%s3486 + $0x1c] sm:$0xf]
    %v3495 = vld [vmem:[%s3486 + $0x20] sm:$0xf]
    %v3496 = vld [vmem:[%s3486 + $0x24] sm:$0xf]
    %v3497 = vld [vmem:[%s3486 + $0x28] sm:$0xf]
    %v3498 = vld [vmem:[%s3486 + $0x2c] sm:$0xf]
    %v3499 = vld [vmem:[%s3486 + $0x30] sm:$0xf]
    %v3500 = vld [vmem:[%s3486 + $0x34] sm:$0xf]
    %v3501 = vld [vmem:[%s3486 + $0x38] sm:$0xf]
    %v3502 = vld [vmem:[%s3486 + $0x3c] sm:$0xf]
    %v3503 = vld [vmem:[%s3486 + $0x40] sm:$0xf]
    %v3504 = vld [vmem:[%s3486 + $0x44] sm:$0xf]
    %v3505 = vld [vmem:[%s3486 + $0x48] sm:$0xf]
    %v3506 = vld [vmem:[%s3486 + $0x4c] sm:$0xf]
    %v3507 = vld [vmem:[%s3486 + $0x50] sm:$0xf]
    %v3508 = vld [vmem:[%s3486 + $0x54] sm:$0xf]
    %v3509 = vld [vmem:[%s3486 + $0x58] sm:$0xf]
    %v3510 = vld [vmem:[%s3486 + $0x5c] sm:$0xf]
    %v3511 = vld [vmem:[%s3486 + $0x60] sm:$0xf]
    %v3512 = vld [vmem:[%s3486 + $0x64] sm:$0xf]
    %v3513 = vld [vmem:[%s3486 + $0x68] sm:$0xf]
    %v3514 = vld [vmem:[%s3486 + $0x6c] sm:$0xf]
    %v3515 = vld [vmem:[%s3486 + $0x70] sm:$0xf]
    %v3516 = vld [vmem:[%s3486 + $0x74] sm:$0xf]
    %v3517 = vld [vmem:[%s3486 + $0x78] sm:$0xf]
    %v3518 = vld [vmem:[%s3486 + $0x7c] sm:$0xf]
    %v3519 = vld [vmem:[%s7 + $0xd] sm:$0x1]
    %v3521 = vlaneseq
    %v3522 = vshrl.u32 %v3521, 7
    %v3523 = vsub.s32 0, %v3522
    %v3524 = vrot.slane %v3519, %v3523
    %v3558 = vunpack.c.l.b16 %v3487
    %v3559 = vunpack.c.l.b16 %v3488
    %v3560 = vunpack.c.l.b16 %v3489
    %v3561 = vunpack.c.l.b16 %v3490
    %v3562 = vunpack.c.l.b16 %v3491
    %v3563 = vunpack.c.l.b16 %v3492
    %v3564 = vunpack.c.l.b16 %v3493
    %v3565 = vunpack.c.l.b16 %v3494
    %v3566 = vunpack.c.l.b16 %v3495
    %v3567 = vunpack.c.l.b16 %v3496
    %v3568 = vunpack.c.l.b16 %v3497
    %v3569 = vunpack.c.l.b16 %v3498
    %v3570 = vunpack.c.l.b16 %v3499
    %v3571 = vunpack.c.l.b16 %v3500
    %v3572 = vunpack.c.l.b16 %v3501
    %v3573 = vunpack.c.l.b16 %v3502
    %v3574 = vunpack.c.l.b16 %v3503
    %v3575 = vunpack.c.l.b16 %v3504
    %v3576 = vunpack.c.l.b16 %v3505
    %v3577 = vunpack.c.l.b16 %v3506
    %v3578 = vunpack.c.l.b16 %v3507
    %v3579 = vunpack.c.l.b16 %v3508
    %v3580 = vunpack.c.l.b16 %v3509
    %v3581 = vunpack.c.l.b16 %v3510
    %v3582 = vunpack.c.l.b16 %v3511
    %v3583 = vunpack.c.l.b16 %v3512
    %v3584 = vunpack.c.l.b16 %v3513
    %v3585 = vunpack.c.l.b16 %v3514
    %v3586 = vunpack.c.l.b16 %v3515
    %v3587 = vunpack.c.l.b16 %v3516
    %v3588 = vunpack.c.l.b16 %v3517
    %v3589 = vunpack.c.l.b16 %v3518
    %v3590 = vpack.c.b16 %v3559, %v3558
    %v3591 = vpack.c.b16 %v3561, %v3560
    %v3592 = vpack.c.b16 %v3563, %v3562
    %v3593 = vpack.c.b16 %v3565, %v3564
    %v3594 = vpack.c.b16 %v3567, %v3566
    %v3595 = vpack.c.b16 %v3569, %v3568
    %v3596 = vpack.c.b16 %v3571, %v3570
    %v3597 = vpack.c.b16 %v3573, %v3572
    %v3598 = vpack.c.b16 %v3575, %v3574
    %v3599 = vpack.c.b16 %v3577, %v3576
    %v3600 = vpack.c.b16 %v3579, %v3578
    %v3601 = vpack.c.b16 %v3581, %v3580
    %v3602 = vpack.c.b16 %v3583, %v3582
    %v3603 = vpack.c.b16 %v3585, %v3584
    %v3604 = vpack.c.b16 %v3587, %v3586
    %v3605 = vpack.c.b16 %v3589, %v3588
    %3622 = vmatprep.subr.bf16.mxu0 0
    %3623 = vmatpush1.bf16.msra.mxu0 %v3590
    %3624 = vmatprep.subr.bf16.mxu0 0
    %3625 = vmatpush1.bf16.msra.mxu0 %v3591
    %3626 = vmatprep.subr.bf16.mxu0 0
    %3627 = vmatpush1.bf16.msra.mxu0 %v3592
    %3628 = vmatprep.subr.bf16.mxu0 0
    %3629 = vmatpush1.bf16.msra.mxu0 %v3593
    %3630 = vmatprep.subr.bf16.mxu0 0
    %3631 = vmatpush1.bf16.msra.mxu0 %v3594
    %3632 = vmatprep.subr.bf16.mxu0 0
    %3633 = vmatpush1.bf16.msra.mxu0 %v3595
    %3634 = vmatprep.subr.bf16.mxu0 0
    %3635 = vmatpush1.bf16.msra.mxu0 %v3596
    %3636 = vmatprep.subr.bf16.mxu0 0
    %3637 = vmatpush1.bf16.msra.mxu0 %v3597
    %3638 = vmatprep.subr.bf16.mxu0 0
    %3639 = vmatpush1.bf16.msra.mxu0 %v3598
    %3640 = vmatprep.subr.bf16.mxu0 0
    %3641 = vmatpush1.bf16.msra.mxu0 %v3599
    %3642 = vmatprep.subr.bf16.mxu0 0
    %3643 = vmatpush1.bf16.msra.mxu0 %v3600
    %3644 = vmatprep.subr.bf16.mxu0 0
    %3645 = vmatpush1.bf16.msra.mxu0 %v3601
    %3646 = vmatprep.subr.bf16.mxu0 0
    %3647 = vmatpush1.bf16.msra.mxu0 %v3602
    %3648 = vmatprep.subr.bf16.mxu0 0
    %3649 = vmatpush1.bf16.msra.mxu0 %v3603
    %3650 = vmatprep.subr.bf16.mxu0 0
    %3651 = vmatpush1.bf16.msra.mxu0 %v3604
    %3652 = vmatprep.subr.bf16.mxu0 0
    %3653 = vmatpush1.bf16.msra.mxu0 %v3605
    %3654 = vmatprep.mubr.bf16.mxu0 %v3471
    %3655 = vmatmul.mubr.bf16.gmra.mrb[0].mxu0 %v3470
    %v3656 = vpop.f32.mrb[0].mxu0
    %v3657 = vadd.f32 %v3524, %v3656
    %v3658 = vpop.f32.mrb[0].mxu0
    %v3659 = vpop.f32.mrb[0].mxu0
    %v3660 = vadd.f32 %v3524, %v3659
    %v3661 = vpop.f32.mrb[0].mxu0
    %3662 = vmatprep.mubr.bf16.mxu0 %v3473
    %3663 = vmatmul.mubr.bf16.gmra.mrb[0].mxu0 %v3472
    %v3664 = vpop.f32.mrb[0].mxu0
    %v3665 = vadd.f32 %v3524, %v3664
    %v3666 = vpop.f32.mrb[0].mxu0
    %v3667 = vpop.f32.mrb[0].mxu0
    %v3668 = vadd.f32 %v3524, %v3667
    %v3669 = vpop.f32.mrb[0].mxu0
    %3670 = vmatprep.mubr.bf16.mxu0 %v3475
    %3671 = vmatmul.mubr.bf16.gmra.mrb[0].mxu0 %v3474
    %v3672 = vpop.f32.mrb[0].mxu0
    %v3673 = vadd.f32 %v3524, %v3672
    %v3674 = vpop.f32.mrb[0].mxu0
    %v3675 = vpop.f32.mrb[0].mxu0
    %v3676 = vadd.f32 %v3524, %v3675
    %v3677 = vpop.f32.mrb[0].mxu0
    %3678 = vmatprep.mubr.bf16.mxu0 %v3477
    %3679 = vmatmul.mubr.bf16.gmra.mrb[0].mxu0 %v3476
    %v3680 = vpop.f32.mrb[0].mxu0
    %v3681 = vadd.f32 %v3524, %v3680
    %v3682 = vpop.f32.mrb[0].mxu0
    %v3683 = vpop.f32.mrb[0].mxu0
    %v3684 = vadd.f32 %v3524, %v3683
    %v3685 = vpop.f32.mrb[0].mxu0
    %3686 = vmatprep.mubr.bf16.mxu0 %v3479
    %3687 = vmatmul.mubr.bf16.gmra.mrb[0].mxu0 %v3478
    %v3688 = vpop.f32.mrb[0].mxu0
    %v3689 = vadd.f32 %v3524, %v3688
    %v3690 = vpop.f32.mrb[0].mxu0
    %v3691 = vpop.f32.mrb[0].mxu0
    %v3692 = vadd.f32 %v3524, %v3691
    %v3693 = vpop.f32.mrb[0].mxu0
    %3694 = vmatprep.mubr.bf16.mxu0 %v3481
    %3695 = vmatmul.mubr.bf16.gmra.mrb[0].mxu0 %v3480
    %v3696 = vpop.f32.mrb[0].mxu0
    %v3697 = vadd.f32 %v3524, %v3696
    %v3698 = vpop.f32.mrb[0].mxu0
    %v3699 = vpop.f32.mrb[0].mxu0
    %v3700 = vadd.f32 %v3524, %v3699
    %v3701 = vpop.f32.mrb[0].mxu0
    %3702 = vmatprep.mubr.bf16.mxu0 %v3483
    %3703 = vmatmul.mubr.bf16.gmra.mrb[0].mxu0 %v3482
    %v3704 = vpop.f32.mrb[0].mxu0
    %v3705 = vadd.f32 %v3524, %v3704
    %v3706 = vpop.f32.mrb[0].mxu0
    %v3707 = vpop.f32.mrb[0].mxu0
    %v3708 = vadd.f32 %v3524, %v3707
    %v3709 = vpop.f32.mrb[0].mxu0
    %3710 = vmatprep.mubr.bf16.mxu0 %v3485
    %3711 = vmatmul.mubr.bf16.gmra.mrb[0].mxu0 %v3484
    %v3712 = vpop.f32.mrb[0].mxu0
    %v3713 = vadd.f32 %v3524, %v3712
    %v3714 = vpop.f32.mrb[0].mxu0
    %v3715 = vpop.f32.mrb[0].mxu0
    %v3716 = vadd.f32 %v3524, %v3715
    %v3717 = vpop.f32.mrb[0].mxu0
    %3718 = vdwg.mxu0
    %vm3719 = vcmp.gt.f32.partialorder %v3657, 0.0
    %vm3720 = vcmp.gt.f32.partialorder %v3660, 0.0
    %vm3721 = vcmp.gt.f32.partialorder %v3665, 0.0
    %vm3722 = vcmp.gt.f32.partialorder %v3668, 0.0
    %vm3723 = vcmp.gt.f32.partialorder %v3673, 0.0
    %vm3724 = vcmp.gt.f32.partialorder %v3676, 0.0
    %vm3725 = vcmp.gt.f32.partialorder %v3681, 0.0
    %vm3726 = vcmp.gt.f32.partialorder %v3684, 0.0
    %vm3727 = vcmp.gt.f32.partialorder %v3689, 0.0
    %vm3728 = vcmp.gt.f32.partialorder %v3692, 0.0
    %vm3729 = vcmp.gt.f32.partialorder %v3697, 0.0
    %vm3730 = vcmp.gt.f32.partialorder %v3700, 0.0
    %vm3731 = vcmp.gt.f32.partialorder %v3705, 0.0
    %vm3732 = vcmp.gt.f32.partialorder %v3708, 0.0
    %vm3733 = vcmp.gt.f32.partialorder %v3713, 0.0
    %vm3734 = vcmp.gt.f32.partialorder %v3716, 0.0
    %v3735 = vmin.f32 %v3657, 0.0
    %v3736 = vmin.f32 %v3660, 0.0
    %v3737 = vmin.f32 %v3665, 0.0
    %v3738 = vmin.f32 %v3668, 0.0
    %v3739 = vmin.f32 %v3673, 0.0
    %v3740 = vmin.f32 %v3676, 0.0
    %v3741 = vmin.f32 %v3681, 0.0
    %v3742 = vmin.f32 %v3684, 0.0
    %v3743 = vmin.f32 %v3689, 0.0
    %v3744 = vmin.f32 %v3692, 0.0
    %v3745 = vmin.f32 %v3697, 0.0
    %v3746 = vmin.f32 %v3700, 0.0
    %v3747 = vmin.f32 %v3705, 0.0
    %v3748 = vmin.f32 %v3708, 0.0
    %v3749 = vmin.f32 %v3713, 0.0
    %v3750 = vmin.f32 %v3716, 0.0
    %v3751 = vmul.f32 %v3735, 1.442695
    %v3752 = vpow.pop %v3751
    %v3753 = vmul.f32 %v3736, 1.442695
    %v3754 = vpow.pop %v3753
    %v3755 = vmul.f32 %v3737, 1.442695
    %v3756 = vpow.pop %v3755
    %v3757 = vmul.f32 %v3738, 1.442695
    %v3758 = vpow.pop %v3757
    %v3759 = vmul.f32 %v3739, 1.442695
    %v3760 = vpow.pop %v3759
    %v3761 = vmul.f32 %v3740, 1.442695
    %v3762 = vpow.pop %v3761
    %v3763 = vmul.f32 %v3741, 1.442695
    %v3764 = vpow.pop %v3763
    %v3765 = vmul.f32 %v3742, 1.442695
    %v3766 = vpow.pop %v3765
    %v3767 = vmul.f32 %v3743, 1.442695
    %v3768 = vpow.pop %v3767
    %v3769 = vmul.f32 %v3744, 1.442695
    %v3770 = vpow.pop %v3769
    %v3771 = vmul.f32 %v3745, 1.442695
    %v3772 = vpow.pop %v3771
    %v3773 = vmul.f32 %v3746, 1.442695
    %v3774 = vpow.pop %v3773
    %v3775 = vmul.f32 %v3747, 1.442695
    %v3776 = vpow.pop %v3775
    %v3777 = vmul.f32 %v3748, 1.442695
    %v3778 = vpow.pop %v3777
    %v3779 = vmul.f32 %v3749, 1.442695
    %v3780 = vpow.pop %v3779
    %v3781 = vmul.f32 %v3750, 1.442695
    %v3782 = vpow.pop %v3781
    %v3783 = vsub.f32 %v3752, 1.0
    %v3784 = vsub.f32 %v3754, 1.0
    %v3785 = vsub.f32 %v3756, 1.0
    %v3786 = vsub.f32 %v3758, 1.0
    %v3787 = vsub.f32 %v3760, 1.0
    %v3788 = vsub.f32 %v3762, 1.0
    %v3789 = vsub.f32 %v3764, 1.0
    %v3790 = vsub.f32 %v3766, 1.0
    %v3791 = vsub.f32 %v3768, 1.0
    %v3792 = vsub.f32 %v3770, 1.0
    %v3793 = vsub.f32 %v3772, 1.0
    %v3794 = vsub.f32 %v3774, 1.0
    %v3795 = vsub.f32 %v3776, 1.0
    %v3796 = vsub.f32 %v3778, 1.0
    %v3797 = vsub.f32 %v3780, 1.0
    %v3798 = vsub.f32 %v3782, 1.0
    %v3799 = vsel %vm3719, %v3657, %v3783
    %v3800 = vsel %vm3720, %v3660, %v3784
    %v3801 = vsel %vm3721, %v3665, %v3785
    %v3802 = vsel %vm3722, %v3668, %v3786
    %v3803 = vsel %vm3723, %v3673, %v3787
    %v3804 = vsel %vm3724, %v3676, %v3788
    %v3805 = vsel %vm3725, %v3681, %v3789
    %v3806 = vsel %vm3726, %v3684, %v3790
    %v3807 = vsel %vm3727, %v3689, %v3791
    %v3808 = vsel %vm3728, %v3692, %v3792
    %v3809 = vsel %vm3729, %v3697, %v3793
    %v3810 = vsel %vm3730, %v3700, %v3794
    %v3811 = vsel %vm3731, %v3705, %v3795
    %v3812 = vsel %vm3732, %v3708, %v3796
    %v3813 = vsel %vm3733, %v3713, %v3797
    %v3814 = vsel %vm3734, %v3716, %v3798
    %v3815 = vpack.c.bf16 %v3800, %v3799
    %v3816 = vpack.c.bf16 %v3802, %v3801
    %v3817 = vpack.c.bf16 %v3804, %v3803
    %v3818 = vpack.c.bf16 %v3806, %v3805
    %v3819 = vpack.c.bf16 %v3808, %v3807
    %v3820 = vpack.c.bf16 %v3810, %v3809
    %v3821 = vpack.c.bf16 %v3812, %v3811
    %v3822 = vpack.c.bf16 %v3814, %v3813
    %vm3823 = vcmp.gt.f32.partialorder %v847, 0.0
    %vm3824 = vcmp.gt.f32.partialorder %v849, 0.0
    %vm3825 = vcmp.gt.f32.partialorder %v960, 0.0
    %vm3826 = vcmp.gt.f32.partialorder %v962, 0.0
    %vm3827 = vcmp.gt.f32.partialorder %v851, 0.0
    %vm3828 = vcmp.gt.f32.partialorder %v853, 0.0
    %vm3829 = vcmp.gt.f32.partialorder %v964, 0.0
    %vm3830 = vcmp.gt.f32.partialorder %v966, 0.0
    %vm3831 = vcmp.gt.f32.partialorder %v857, 0.0
    %vm3832 = vcmp.gt.f32.partialorder %v859, 0.0
    %vm3833 = vcmp.gt.f32.partialorder %v970, 0.0
    %vm3834 = vcmp.gt.f32.partialorder %v972, 0.0
    %vm3835 = vcmp.gt.f32.partialorder %v861, 0.0
    %vm3836 = vcmp.gt.f32.partialorder %v863, 0.0
    %vm3837 = vcmp.gt.f32.partialorder %v974, 0.0
    %vm3838 = vcmp.gt.f32.partialorder %v976, 0.0
    %vm3839 = vcmp.gt.f32.partialorder %v867, 0.0
    %vm3840 = vcmp.gt.f32.partialorder %v869, 0.0
    %vm3841 = vcmp.gt.f32.partialorder %v980, 0.0
    %vm3842 = vcmp.gt.f32.partialorder %v982, 0.0
    %vm3843 = vcmp.gt.f32.partialorder %v871, 0.0
    %vm3844 = vcmp.gt.f32.partialorder %v873, 0.0
    %vm3845 = vcmp.gt.f32.partialorder %v984, 0.0
    %vm3846 = vcmp.gt.f32.partialorder %v986, 0.0
    %vm3847 = vcmp.gt.f32.partialorder %v877, 0.0
    %vm3848 = vcmp.gt.f32.partialorder %v879, 0.0
    %vm3849 = vcmp.gt.f32.partialorder %v990, 0.0
    %vm3850 = vcmp.gt.f32.partialorder %v992, 0.0
    %vm3851 = vcmp.gt.f32.partialorder %v881, 0.0
    %vm3852 = vcmp.gt.f32.partialorder %v883, 0.0
    %vm3853 = vcmp.gt.f32.partialorder %v994, 0.0
    %vm3854 = vcmp.gt.f32.partialorder %v996, 0.0
    %vm3855 = vcmp.gt.f32.partialorder %v887, 0.0
    %vm3856 = vcmp.gt.f32.partialorder %v889, 0.0
    %vm3857 = vcmp.gt.f32.partialorder %v1000, 0.0
    %vm3858 = vcmp.gt.f32.partialorder %v1002, 0.0
    %vm3859 = vcmp.gt.f32.partialorder %v891, 0.0
    %vm3860 = vcmp.gt.f32.partialorder %v893, 0.0
    %vm3861 = vcmp.gt.f32.partialorder %v1004, 0.0
    %vm3862 = vcmp.gt.f32.partialorder %v1006, 0.0
    %vm3863 = vcmp.gt.f32.partialorder %v897, 0.0
    %vm3864 = vcmp.gt.f32.partialorder %v899, 0.0
    %vm3865 = vcmp.gt.f32.partialorder %v1010, 0.0
    %vm3866 = vcmp.gt.f32.partialorder %v1012, 0.0
    %vm3867 = vcmp.gt.f32.partialorder %v901, 0.0
    %vm3868 = vcmp.gt.f32.partialorder %v903, 0.0
    %vm3869 = vcmp.gt.f32.partialorder %v1014, 0.0
    %vm3870 = vcmp.gt.f32.partialorder %v1016, 0.0
    %vm3871 = vcmp.gt.f32.partialorder %v907, 0.0
    %vm3872 = vcmp.gt.f32.partialorder %v909, 0.0
    %vm3873 = vcmp.gt.f32.partialorder %v1020, 0.0
    %vm3874 = vcmp.gt.f32.partialorder %v1022, 0.0
    %vm3875 = vcmp.gt.f32.partialorder %v911, 0.0
    %vm3876 = vcmp.gt.f32.partialorder %v913, 0.0
    %vm3877 = vcmp.gt.f32.partialorder %v1024, 0.0
    %vm3878 = vcmp.gt.f32.partialorder %v1026, 0.0
    %vm3879 = vcmp.gt.f32.partialorder %v917, 0.0
    %vm3880 = vcmp.gt.f32.partialorder %v919, 0.0
    %vm3881 = vcmp.gt.f32.partialorder %v1030, 0.0
    %vm3882 = vcmp.gt.f32.partialorder %v1032, 0.0
    %vm3883 = vcmp.gt.f32.partialorder %v921, 0.0
    %vm3884 = vcmp.gt.f32.partialorder %v923, 0.0
    %vm3885 = vcmp.gt.f32.partialorder %v1034, 0.0
    %vm3886 = vcmp.gt.f32.partialorder %v1036, 0.0
    %v3887 = vmin.f32 %v847, 0.0
    %v3888 = vmin.f32 %v849, 0.0
    %v3889 = vmin.f32 %v960, 0.0
    %v3890 = vmin.f32 %v962, 0.0
    %v3891 = vmin.f32 %v851, 0.0
    %v3892 = vmin.f32 %v853, 0.0
    %v3893 = vmin.f32 %v964, 0.0
    %v3894 = vmin.f32 %v966, 0.0
    %v3895 = vmin.f32 %v857, 0.0
    %v3896 = vmin.f32 %v859, 0.0
    %v3897 = vmin.f32 %v970, 0.0
    %v3898 = vmin.f32 %v972, 0.0
    %v3899 = vmin.f32 %v861, 0.0
    %v3900 = vmin.f32 %v863, 0.0
    %v3901 = vmin.f32 %v974, 0.0
    %v3902 = vmin.f32 %v976, 0.0
    %v3903 = vmin.f32 %v867, 0.0
    %v3904 = vmin.f32 %v869, 0.0
    %v3905 = vmin.f32 %v980, 0.0
    %v3906 = vmin.f32 %v982, 0.0
    %v3907 = vmin.f32 %v871, 0.0
    %v3908 = vmin.f32 %v873, 0.0
    %v3909 = vmin.f32 %v984, 0.0
    %v3910 = vmin.f32 %v986, 0.0
    %v3911 = vmin.f32 %v877, 0.0
    %v3912 = vmin.f32 %v879, 0.0
    %v3913 = vmin.f32 %v990, 0.0
    %v3914 = vmin.f32 %v992, 0.0
    %v3915 = vmin.f32 %v881, 0.0
    %v3916 = vmin.f32 %v883, 0.0
    %v3917 = vmin.f32 %v994, 0.0
    %v3918 = vmin.f32 %v996, 0.0
    %v3919 = vmin.f32 %v887, 0.0
    %v3920 = vmin.f32 %v889, 0.0
    %v3921 = vmin.f32 %v1000, 0.0
    %v3922 = vmin.f32 %v1002, 0.0
    %v3923 = vmin.f32 %v891, 0.0
    %v3924 = vmin.f32 %v893, 0.0
    %v3925 = vmin.f32 %v1004, 0.0
    %v3926 = vmin.f32 %v1006, 0.0
    %v3927 = vmin.f32 %v897, 0.0
    %v3928 = vmin.f32 %v899, 0.0
    %v3929 = vmin.f32 %v1010, 0.0
    %v3930 = vmin.f32 %v1012, 0.0
    %v3931 = vmin.f32 %v901, 0.0
    %v3932 = vmin.f32 %v903, 0.0
    %v3933 = vmin.f32 %v1014, 0.0
    %v3934 = vmin.f32 %v1016, 0.0
    %v3935 = vmin.f32 %v907, 0.0
    %v3936 = vmin.f32 %v909, 0.0
    %v3937 = vmin.f32 %v1020, 0.0
    %v3938 = vmin.f32 %v1022, 0.0
    %v3939 = vmin.f32 %v911, 0.0
    %v3940 = vmin.f32 %v913, 0.0
    %v3941 = vmin.f32 %v1024, 0.0
    %v3942 = vmin.f32 %v1026, 0.0
    %v3943 = vmin.f32 %v917, 0.0
    %v3944 = vmin.f32 %v919, 0.0
    %v3945 = vmin.f32 %v1030, 0.0
    %v3946 = vmin.f32 %v1032, 0.0
    %v3947 = vmin.f32 %v921, 0.0
    %v3948 = vmin.f32 %v923, 0.0
    %v3949 = vmin.f32 %v1034, 0.0
    %v3950 = vmin.f32 %v1036, 0.0
    %v3951 = vmul.f32 %v3887, 1.442695
    %v3952 = vpow.pop %v3951
    %v3953 = vmul.f32 %v3888, 1.442695
    %v3954 = vpow.pop %v3953
    %v3955 = vmul.f32 %v3889, 1.442695
    %v3956 = vpow.pop %v3955
    %v3957 = vmul.f32 %v3890, 1.442695
    %v3958 = vpow.pop %v3957
    %v3959 = vmul.f32 %v3891, 1.442695
    %v3960 = vpow.pop %v3959
    %v3961 = vmul.f32 %v3892, 1.442695
    %v3962 = vpow.pop %v3961
    %v3963 = vmul.f32 %v3893, 1.442695
    %v3964 = vpow.pop %v3963
    %v3965 = vmul.f32 %v3894, 1.442695
    %v3966 = vpow.pop %v3965
    %v3967 = vmul.f32 %v3895, 1.442695
    %v3968 = vpow.pop %v3967
    %v3969 = vmul.f32 %v3896, 1.442695
    %v3970 = vpow.pop %v3969
    %v3971 = vmul.f32 %v3897, 1.442695
    %v3972 = vpow.pop %v3971
    %v3973 = vmul.f32 %v3898, 1.442695
    %v3974 = vpow.pop %v3973
    %v3975 = vmul.f32 %v3899, 1.442695
    %v3976 = vpow.pop %v3975
    %v3977 = vmul.f32 %v3900, 1.442695
    %v3978 = vpow.pop %v3977
    %v3979 = vmul.f32 %v3901, 1.442695
    %v3980 = vpow.pop %v3979
    %v3981 = vmul.f32 %v3902, 1.442695
    %v3982 = vpow.pop %v3981
    %v3983 = vmul.f32 %v3903, 1.442695
    %v3984 = vpow.pop %v3983
    %v3985 = vmul.f32 %v3904, 1.442695
    %v3986 = vpow.pop %v3985
    %v3987 = vmul.f32 %v3905, 1.442695
    %v3988 = vpow.pop %v3987
    %v3989 = vmul.f32 %v3906, 1.442695
    %v3990 = vpow.pop %v3989
    %v3991 = vmul.f32 %v3907, 1.442695
    %v3992 = vpow.pop %v3991
    %v3993 = vmul.f32 %v3908, 1.442695
    %v3994 = vpow.pop %v3993
    %v3995 = vmul.f32 %v3909, 1.442695
    %v3996 = vpow.pop %v3995
    %v3997 = vmul.f32 %v3910, 1.442695
    %v3998 = vpow.pop %v3997
    %v3999 = vmul.f32 %v3911, 1.442695
    %v4000 = vpow.pop %v3999
    %v4001 = vmul.f32 %v3912, 1.442695
    %v4002 = vpow.pop %v4001
    %v4003 = vmul.f32 %v3913, 1.442695
    %v4004 = vpow.pop %v4003
    %v4005 = vmul.f32 %v3914, 1.442695
    %v4006 = vpow.pop %v4005
    %v4007 = vmul.f32 %v3915, 1.442695
    %v4008 = vpow.pop %v4007
    %v4009 = vmul.f32 %v3916, 1.442695
    %v4010 = vpow.pop %v4009
    %v4011 = vmul.f32 %v3917, 1.442695
    %v4012 = vpow.pop %v4011
    %v4013 = vmul.f32 %v3918, 1.442695
    %v4014 = vpow.pop %v4013
    %v4015 = vmul.f32 %v3919, 1.442695
    %v4016 = vpow.pop %v4015
    %v4017 = vmul.f32 %v3920, 1.442695
    %v4018 = vpow.pop %v4017
    %v4019 = vmul.f32 %v3921, 1.442695
    %v4020 = vpow.pop %v4019
    %v4021 = vmul.f32 %v3922, 1.442695
    %v4022 = vpow.pop %v4021
    %v4023 = vmul.f32 %v3923, 1.442695
    %v4024 = vpow.pop %v4023
    %v4025 = vmul.f32 %v3924, 1.442695
    %v4026 = vpow.pop %v4025
    %v4027 = vmul.f32 %v3925, 1.442695
    %v4028 = vpow.pop %v4027
    %v4029 = vmul.f32 %v3926, 1.442695
    %v4030 = vpow.pop %v4029
    %v4031 = vmul.f32 %v3927, 1.442695
    %v4032 = vpow.pop %v4031
    %v4033 = vmul.f32 %v3928, 1.442695
    %v4034 = vpow.pop %v4033
    %v4035 = vmul.f32 %v3929, 1.442695
    %v4036 = vpow.pop %v4035
    %v4037 = vmul.f32 %v3930, 1.442695
    %v4038 = vpow.pop %v4037
    %v4039 = vmul.f32 %v3931, 1.442695
    %v4040 = vpow.pop %v4039
    %v4041 = vmul.f32 %v3932, 1.442695
    %v4042 = vpow.pop %v4041
    %v4043 = vmul.f32 %v3933, 1.442695
    %v4044 = vpow.pop %v4043
    %v4045 = vmul.f32 %v3934, 1.442695
    %v4046 = vpow.pop %v4045
    %v4047 = vmul.f32 %v3935, 1.442695
    %v4048 = vpow.pop %v4047
    %v4049 = vmul.f32 %v3936, 1.442695
    %v4050 = vpow.pop %v4049
    %v4051 = vmul.f32 %v3937, 1.442695
    %v4052 = vpow.pop %v4051
    %v4053 = vmul.f32 %v3938, 1.442695
    %v4054 = vpow.pop %v4053
    %v4055 = vmul.f32 %v3939, 1.442695
    %v4056 = vpow.pop %v4055
    %v4057 = vmul.f32 %v3940, 1.442695
    %v4058 = vpow.pop %v4057
    %v4059 = vmul.f32 %v3941, 1.442695
    %v4060 = vpow.pop %v4059
    %v4061 = vmul.f32 %v3942, 1.442695
    %v4062 = vpow.pop %v4061
    %v4063 = vmul.f32 %v3943, 1.442695
    %v4064 = vpow.pop %v4063
    %v4065 = vmul.f32 %v3944, 1.442695
    %v4066 = vpow.pop %v4065
    %v4067 = vmul.f32 %v3945, 1.442695
    %v4068 = vpow.pop %v4067
    %v4069 = vmul.f32 %v3946, 1.442695
    %v4070 = vpow.pop %v4069
    %v4071 = vmul.f32 %v3947, 1.442695
    %v4072 = vpow.pop %v4071
    %v4073 = vmul.f32 %v3948, 1.442695
    %v4074 = vpow.pop %v4073
    %v4075 = vmul.f32 %v3949, 1.442695
    %v4076 = vpow.pop %v4075
    %v4077 = vmul.f32 %v3950, 1.442695
    %v4078 = vpow.pop %v4077
    %v4079 = vsub.f32 %v3952, 1.0
    %v4080 = vsub.f32 %v3954, 1.0
    %v4081 = vsub.f32 %v3956, 1.0
    %v4082 = vsub.f32 %v3958, 1.0
    %v4083 = vsub.f32 %v3960, 1.0
    %v4084 = vsub.f32 %v3962, 1.0
    %v4085 = vsub.f32 %v3964, 1.0
    %v4086 = vsub.f32 %v3966, 1.0
    %v4087 = vsub.f32 %v3968, 1.0
    %v4088 = vsub.f32 %v3970, 1.0
    %v4089 = vsub.f32 %v3972, 1.0
    %v4090 = vsub.f32 %v3974, 1.0
    %v4091 = vsub.f32 %v3976, 1.0
    %v4092 = vsub.f32 %v3978, 1.0
    %v4093 = vsub.f32 %v3980, 1.0
    %v4094 = vsub.f32 %v3982, 1.0
    %v4095 = vsub.f32 %v3984, 1.0
    %v4096 = vsub.f32 %v3986, 1.0
    %v4097 = vsub.f32 %v3988, 1.0
    %v4098 = vsub.f32 %v3990, 1.0
    %v4099 = vsub.f32 %v3992, 1.0
    %v4100 = vsub.f32 %v3994, 1.0
    %v4101 = vsub.f32 %v3996, 1.0
    %v4102 = vsub.f32 %v3998, 1.0
    %v4103 = vsub.f32 %v4000, 1.0
    %v4104 = vsub.f32 %v4002, 1.0
    %v4105 = vsub.f32 %v4004, 1.0
    %v4106 = vsub.f32 %v4006, 1.0
    %v4107 = vsub.f32 %v4008, 1.0
    %v4108 = vsub.f32 %v4010, 1.0
    %v4109 = vsub.f32 %v4012, 1.0
    %v4110 = vsub.f32 %v4014, 1.0
    %v4111 = vsub.f32 %v4016, 1.0
    %v4112 = vsub.f32 %v4018, 1.0
    %v4113 = vsub.f32 %v4020, 1.0
    %v4114 = vsub.f32 %v4022, 1.0
    %v4115 = vsub.f32 %v4024, 1.0
    %v4116 = vsub.f32 %v4026, 1.0
    %v4117 = vsub.f32 %v4028, 1.0
    %v4118 = vsub.f32 %v4030, 1.0
    %v4119 = vsub.f32 %v4032, 1.0
    %v4120 = vsub.f32 %v4034, 1.0
    %v4121 = vsub.f32 %v4036, 1.0
    %v4122 = vsub.f32 %v4038, 1.0
    %v4123 = vsub.f32 %v4040, 1.0
    %v4124 = vsub.f32 %v4042, 1.0
    %v4125 = vsub.f32 %v4044, 1.0
    %v4126 = vsub.f32 %v4046, 1.0
    %v4127 = vsub.f32 %v4048, 1.0
    %v4128 = vsub.f32 %v4050, 1.0
    %v4129 = vsub.f32 %v4052, 1.0
    %v4130 = vsub.f32 %v4054, 1.0
    %v4131 = vsub.f32 %v4056, 1.0
    %v4132 = vsub.f32 %v4058, 1.0
    %v4133 = vsub.f32 %v4060, 1.0
    %v4134 = vsub.f32 %v4062, 1.0
    %v4135 = vsub.f32 %v4064, 1.0
    %v4136 = vsub.f32 %v4066, 1.0
    %v4137 = vsub.f32 %v4068, 1.0
    %v4138 = vsub.f32 %v4070, 1.0
    %v4139 = vsub.f32 %v4072, 1.0
    %v4140 = vsub.f32 %v4074, 1.0
    %v4141 = vsub.f32 %v4076, 1.0
    %v4142 = vsub.f32 %v4078, 1.0
    %v4143 = vsel %vm3823, %v847, %v4079
    %v4144 = vsel %vm3824, %v849, %v4080
    %v4145 = vsel %vm3825, %v960, %v4081
    %v4146 = vsel %vm3826, %v962, %v4082
    %v4147 = vsel %vm3827, %v851, %v4083
    %v4148 = vsel %vm3828, %v853, %v4084
    %v4149 = vsel %vm3829, %v964, %v4085
    %v4150 = vsel %vm3830, %v966, %v4086
    %v4151 = vsel %vm3831, %v857, %v4087
    %v4152 = vsel %vm3832, %v859, %v4088
    %v4153 = vsel %vm3833, %v970, %v4089
    %v4154 = vsel %vm3834, %v972, %v4090
    %v4155 = vsel %vm3835, %v861, %v4091
    %v4156 = vsel %vm3836, %v863, %v4092
    %v4157 = vsel %vm3837, %v974, %v4093
    %v4158 = vsel %vm3838, %v976, %v4094
    %v4159 = vsel %vm3839, %v867, %v4095
    %v4160 = vsel %vm3840, %v869, %v4096
    %v4161 = vsel %vm3841, %v980, %v4097
    %v4162 = vsel %vm3842, %v982, %v4098
    %v4163 = vsel %vm3843, %v871, %v4099
    %v4164 = vsel %vm3844, %v873, %v4100
    %v4165 = vsel %vm3845, %v984, %v4101
    %v4166 = vsel %vm3846, %v986, %v4102
    %v4167 = vsel %vm3847, %v877, %v4103
    %v4168 = vsel %vm3848, %v879, %v4104
    %v4169 = vsel %vm3849, %v990, %v4105
    %v4170 = vsel %vm3850, %v992, %v4106
    %v4171 = vsel %vm3851, %v881, %v4107
    %v4172 = vsel %vm3852, %v883, %v4108
    %v4173 = vsel %vm3853, %v994, %v4109
    %v4174 = vsel %vm3854, %v996, %v4110
    %v4175 = vsel %vm3855, %v887, %v4111
    %v4176 = vsel %vm3856, %v889, %v4112
    %v4177 = vsel %vm3857, %v1000, %v4113
    %v4178 = vsel %vm3858, %v1002, %v4114
    %v4179 = vsel %vm3859, %v891, %v4115
    %v4180 = vsel %vm3860, %v893, %v4116
    %v4181 = vsel %vm3861, %v1004, %v4117
    %v4182 = vsel %vm3862, %v1006, %v4118
    %v4183 = vsel %vm3863, %v897, %v4119
    %v4184 = vsel %vm3864, %v899, %v4120
    %v4185 = vsel %vm3865, %v1010, %v4121
    %v4186 = vsel %vm3866, %v1012, %v4122
    %v4187 = vsel %vm3867, %v901, %v4123
    %v4188 = vsel %vm3868, %v903, %v4124
    %v4189 = vsel %vm3869, %v1014, %v4125
    %v4190 = vsel %vm3870, %v1016, %v4126
    %v4191 = vsel %vm3871, %v907, %v4127
    %v4192 = vsel %vm3872, %v909, %v4128
    %v4193 = vsel %vm3873, %v1020, %v4129
    %v4194 = vsel %vm3874, %v1022, %v4130
    %v4195 = vsel %vm3875, %v911, %v4131
    %v4196 = vsel %vm3876, %v913, %v4132
    %v4197 = vsel %vm3877, %v1024, %v4133
    %v4198 = vsel %vm3878, %v1026, %v4134
    %v4199 = vsel %vm3879, %v917, %v4135
    %v4200 = vsel %vm3880, %v919, %v4136
    %v4201 = vsel %vm3881, %v1030, %v4137
    %v4202 = vsel %vm3882, %v1032, %v4138
    %v4203 = vsel %vm3883, %v921, %v4139
    %v4204 = vsel %vm3884, %v923, %v4140
    %v4205 = vsel %vm3885, %v1034, %v4141
    %v4206 = vsel %vm3886, %v1036, %v4142
    %v4207 = vpack.c.bf16 %v4147, %v4143
    %v4208 = vpack.c.bf16 %v4148, %v4144
    %v4209 = vpack.c.bf16 %v4149, %v4145
    %v4210 = vpack.c.bf16 %v4150, %v4146
    %v4211 = vpack.c.bf16 %v4155, %v4151
    %v4212 = vpack.c.bf16 %v4156, %v4152
    %v4213 = vpack.c.bf16 %v4157, %v4153
    %v4214 = vpack.c.bf16 %v4158, %v4154
    %v4215 = vpack.c.bf16 %v4163, %v4159
    %v4216 = vpack.c.bf16 %v4164, %v4160
    %v4217 = vpack.c.bf16 %v4165, %v4161
    %v4218 = vpack.c.bf16 %v4166, %v4162
    %v4219 = vpack.c.bf16 %v4171, %v4167
    %v4220 = vpack.c.bf16 %v4172, %v4168
    %v4221 = vpack.c.bf16 %v4173, %v4169
    %v4222 = vpack.c.bf16 %v4174, %v4170
    %v4223 = vpack.c.bf16 %v4179, %v4175
    %v4224 = vpack.c.bf16 %v4180, %v4176
    %v4225 = vpack.c.bf16 %v4181, %v4177
    %v4226 = vpack.c.bf16 %v4182, %v4178
    %v4227 = vpack.c.bf16 %v4187, %v4183
    %v4228 = vpack.c.bf16 %v4188, %v4184
    %v4229 = vpack.c.bf16 %v4189, %v4185
    %v4230 = vpack.c.bf16 %v4190, %v4186
    %v4231 = vpack.c.bf16 %v4195, %v4191
    %v4232 = vpack.c.bf16 %v4196, %v4192
    %v4233 = vpack.c.bf16 %v4197, %v4193
    %v4234 = vpack.c.bf16 %v4198, %v4194
    %v4235 = vpack.c.bf16 %v4203, %v4199
    %v4236 = vpack.c.bf16 %v4204, %v4200
    %v4237 = vpack.c.bf16 %v4205, %v4201
    %v4238 = vpack.c.bf16 %v4206, %v4202
    %s4239 = scalar_lea.vmem [#allocation6], 512
    %v4240 = vld [vmem:[%s4239] sm:$0xff]
    %v4241 = vld [vmem:[%s4239 + $0x8] sm:$0xff]
    %v4242 = vld [vmem:[%s4239 + $0x10] sm:$0xff]
    %v4243 = vld [vmem:[%s4239 + $0x18] sm:$0xff]
    %v4244 = vld [vmem:[%s4239 + $0x20] sm:$0xff]
    %v4245 = vld [vmem:[%s4239 + $0x28] sm:$0xff]
    %v4246 = vld [vmem:[%s4239 + $0x30] sm:$0xff]
    %v4247 = vld [vmem:[%s4239 + $0x38] sm:$0xff]
    %v4248 = vld [vmem:[%s4239 + $0x40] sm:$0xff]
    %v4249 = vld [vmem:[%s4239 + $0x48] sm:$0xff]
    %v4250 = vld [vmem:[%s4239 + $0x50] sm:$0xff]
    %v4251 = vld [vmem:[%s4239 + $0x58] sm:$0xff]
    %v4252 = vld [vmem:[%s4239 + $0x60] sm:$0xff]
    %v4253 = vld [vmem:[%s4239 + $0x68] sm:$0xff]
    %v4254 = vld [vmem:[%s4239 + $0x70] sm:$0xff]
    %v4255 = vld [vmem:[%s4239 + $0x78] sm:$0xff]
    %v4256 = vld [vmem:[%s4239 + $0x80] sm:$0xff]
    %v4257 = vld [vmem:[%s4239 + $0x88] sm:$0xff]
    %v4258 = vld [vmem:[%s4239 + $0x90] sm:$0xff]
    %v4259 = vld [vmem:[%s4239 + $0x98] sm:$0xff]
    %v4260 = vld [vmem:[%s4239 + $0xa0] sm:$0xff]
    %v4261 = vld [vmem:[%s4239 + $0xa8] sm:$0xff]
    %v4262 = vld [vmem:[%s4239 + $0xb0] sm:$0xff]
    %v4263 = vld [vmem:[%s4239 + $0xb8] sm:$0xff]
    %v4264 = vld [vmem:[%s4239 + $0xc0] sm:$0xff]
    %v4265 = vld [vmem:[%s4239 + $0xc8] sm:$0xff]
    %v4266 = vld [vmem:[%s4239 + $0xd0] sm:$0xff]
    %v4267 = vld [vmem:[%s4239 + $0xd8] sm:$0xff]
    %v4268 = vld [vmem:[%s4239 + $0xe0] sm:$0xff]
    %v4269 = vld [vmem:[%s4239 + $0xe8] sm:$0xff]
    %v4270 = vld [vmem:[%s4239 + $0xf0] sm:$0xff]
    %v4271 = vld [vmem:[%s4239 + $0xf8] sm:$0xff]
    %v4272 = vld [vmem:[%s4239 + $0x100] sm:$0xff]
    %v4273 = vld [vmem:[%s4239 + $0x108] sm:$0xff]
    %v4274 = vld [vmem:[%s4239 + $0x110] sm:$0xff]
    %v4275 = vld [vmem:[%s4239 + $0x118] sm:$0xff]
    %v4276 = vld [vmem:[%s4239 + $0x120] sm:$0xff]
    %v4277 = vld [vmem:[%s4239 + $0x128] sm:$0xff]
    %v4278 = vld [vmem:[%s4239 + $0x130] sm:$0xff]
    %v4279 = vld [vmem:[%s4239 + $0x138] sm:$0xff]
    %v4280 = vld [vmem:[%s4239 + $0x140] sm:$0xff]
    %v4281 = vld [vmem:[%s4239 + $0x148] sm:$0xff]
    %v4282 = vld [vmem:[%s4239 + $0x150] sm:$0xff]
    %v4283 = vld [vmem:[%s4239 + $0x158] sm:$0xff]
    %v4284 = vld [vmem:[%s4239 + $0x160] sm:$0xff]
    %v4285 = vld [vmem:[%s4239 + $0x168] sm:$0xff]
    %v4286 = vld [vmem:[%s4239 + $0x170] sm:$0xff]
    %v4287 = vld [vmem:[%s4239 + $0x178] sm:$0xff]
    %v4288 = vld [vmem:[%s4239 + $0x180] sm:$0xff]
    %v4289 = vld [vmem:[%s4239 + $0x188] sm:$0xff]
    %v4290 = vld [vmem:[%s4239 + $0x190] sm:$0xff]
    %v4291 = vld [vmem:[%s4239 + $0x198] sm:$0xff]
    %v4292 = vld [vmem:[%s4239 + $0x1a0] sm:$0xff]
    %v4293 = vld [vmem:[%s4239 + $0x1a8] sm:$0xff]
    %v4294 = vld [vmem:[%s4239 + $0x1b0] sm:$0xff]
    %v4295 = vld [vmem:[%s4239 + $0x1b8] sm:$0xff]
    %v4296 = vld [vmem:[%s4239 + $0x1c0] sm:$0xff]
    %v4297 = vld [vmem:[%s4239 + $0x1c8] sm:$0xff]
    %v4298 = vld [vmem:[%s4239 + $0x1d0] sm:$0xff]
    %v4299 = vld [vmem:[%s4239 + $0x1d8] sm:$0xff]
    %v4300 = vld [vmem:[%s4239 + $0x1e0] sm:$0xff]
    %v4301 = vld [vmem:[%s4239 + $0x1e8] sm:$0xff]
    %v4302 = vld [vmem:[%s4239 + $0x1f0] sm:$0xff]
    %v4303 = vld [vmem:[%s4239 + $0x1f8] sm:$0xff]
    %v4304 = vld [vmem:[%s7 + $0xe] sm:$0x3]
    %v4306 = vlaneseq
    %v4307 = vshrl.u32 %v4306, 7
    %v4308 = vsub.s32 0, %v4307
    %v4309 = vrot.slane %v4304, %v4308
    %v4310 = vlaneseq
    %v4311 = vshrl.u32 %v4310, 7
    %v4312 = vsub.s32 1, %v4311
    %v4313 = vrot.slane %v4304, %v4312
    %v4380 = vunpack.c.l.b16 %v4240
    %v4381 = vunpack.c.h.b16 %v4240
    %v4382 = vunpack.c.l.b16 %v4241
    %v4383 = vunpack.c.h.b16 %v4241
    %v4384 = vunpack.c.l.b16 %v4242
    %v4385 = vunpack.c.h.b16 %v4242
    %v4386 = vunpack.c.l.b16 %v4243
    %v4387 = vunpack.c.h.b16 %v4243
    %v4388 = vunpack.c.l.b16 %v4244
    %v4389 = vunpack.c.h.b16 %v4244
    %v4390 = vunpack.c.l.b16 %v4245
    %v4391 = vunpack.c.h.b16 %v4245
    %v4392 = vunpack.c.l.b16 %v4246
    %v4393 = vunpack.c.h.b16 %v4246
    %v4394 = vunpack.c.l.b16 %v4247
    %v4395 = vunpack.c.h.b16 %v4247
    %v4396 = vunpack.c.l.b16 %v4248
    %v4397 = vunpack.c.h.b16 %v4248
    %v4398 = vunpack.c.l.b16 %v4249
    %v4399 = vunpack.c.h.b16 %v4249
    %v4400 = vunpack.c.l.b16 %v4250
    %v4401 = vunpack.c.h.b16 %v4250
    %v4402 = vunpack.c.l.b16 %v4251
    %v4403 = vunpack.c.h.b16 %v4251
    %v4404 = vunpack.c.l.b16 %v4252
    %v4405 = vunpack.c.h.b16 %v4252
    %v4406 = vunpack.c.l.b16 %v4253
    %v4407 = vunpack.c.h.b16 %v4253
    %v4408 = vunpack.c.l.b16 %v4254
    %v4409 = vunpack.c.h.b16 %v4254
    %v4410 = vunpack.c.l.b16 %v4255
    %v4411 = vunpack.c.h.b16 %v4255
    %v4412 = vunpack.c.l.b16 %v4256
    %v4413 = vunpack.c.h.b16 %v4256
    %v4414 = vunpack.c.l.b16 %v4257
    %v4415 = vunpack.c.h.b16 %v4257
    %v4416 = vunpack.c.l.b16 %v4258
    %v4417 = vunpack.c.h.b16 %v4258
    %v4418 = vunpack.c.l.b16 %v4259
    %v4419 = vunpack.c.h.b16 %v4259
    %v4420 = vunpack.c.l.b16 %v4260
    %v4421 = vunpack.c.h.b16 %v4260
    %v4422 = vunpack.c.l.b16 %v4261
    %v4423 = vunpack.c.h.b16 %v4261
    %v4424 = vunpack.c.l.b16 %v4262
    %v4425 = vunpack.c.h.b16 %v4262
    %v4426 = vunpack.c.l.b16 %v4263
    %v4427 = vunpack.c.h.b16 %v4263
    %v4428 = vunpack.c.l.b16 %v4264
    %v4429 = vunpack.c.h.b16 %v4264
    %v4430 = vunpack.c.l.b16 %v4265
    %v4431 = vunpack.c.h.b16 %v4265
    %v4432 = vunpack.c.l.b16 %v4266
    %v4433 = vunpack.c.h.b16 %v4266
    %v4434 = vunpack.c.l.b16 %v4267
    %v4435 = vunpack.c.h.b16 %v4267
    %v4436 = vunpack.c.l.b16 %v4268
    %v4437 = vunpack.c.h.b16 %v4268
    %v4438 = vunpack.c.l.b16 %v4269
    %v4439 = vunpack.c.h.b16 %v4269
    %v4440 = vunpack.c.l.b16 %v4270
    %v4441 = vunpack.c.h.b16 %v4270
    %v4442 = vunpack.c.l.b16 %v4271
    %v4443 = vunpack.c.h.b16 %v4271
    %v4444 = vunpack.c.l.b16 %v4272
    %v4445 = vunpack.c.h.b16 %v4272
    %v4446 = vunpack.c.l.b16 %v4273
    %v4447 = vunpack.c.h.b16 %v4273
    %v4448 = vunpack.c.l.b16 %v4274
    %v4449 = vunpack.c.h.b16 %v4274
    %v4450 = vunpack.c.l.b16 %v4275
    %v4451 = vunpack.c.h.b16 %v4275
    %v4452 = vunpack.c.l.b16 %v4276
    %v4453 = vunpack.c.h.b16 %v4276
    %v4454 = vunpack.c.l.b16 %v4277
    %v4455 = vunpack.c.h.b16 %v4277
    %v4456 = vunpack.c.l.b16 %v4278
    %v4457 = vunpack.c.h.b16 %v4278
    %v4458 = vunpack.c.l.b16 %v4279
    %v4459 = vunpack.c.h.b16 %v4279
    %v4460 = vunpack.c.l.b16 %v4280
    %v4461 = vunpack.c.h.b16 %v4280
    %v4462 = vunpack.c.l.b16 %v4281
    %v4463 = vunpack.c.h.b16 %v4281
    %v4464 = vunpack.c.l.b16 %v4282
    %v4465 = vunpack.c.h.b16 %v4282
    %v4466 = vunpack.c.l.b16 %v4283
    %v4467 = vunpack.c.h.b16 %v4283
    %v4468 = vunpack.c.l.b16 %v4284
    %v4469 = vunpack.c.h.b16 %v4284
    %v4470 = vunpack.c.l.b16 %v4285
    %v4471 = vunpack.c.h.b16 %v4285
    %v4472 = vunpack.c.l.b16 %v4286
    %v4473 = vunpack.c.h.b16 %v4286
    %v4474 = vunpack.c.l.b16 %v4287
    %v4475 = vunpack.c.h.b16 %v4287
    %v4476 = vunpack.c.l.b16 %v4288
    %v4477 = vunpack.c.h.b16 %v4288
    %v4478 = vunpack.c.l.b16 %v4289
    %v4479 = vunpack.c.h.b16 %v4289
    %v4480 = vunpack.c.l.b16 %v4290
    %v4481 = vunpack.c.h.b16 %v4290
    %v4482 = vunpack.c.l.b16 %v4291
    %v4483 = vunpack.c.h.b16 %v4291
    %v4484 = vunpack.c.l.b16 %v4292
    %v4485 = vunpack.c.h.b16 %v4292
    %v4486 = vunpack.c.l.b16 %v4293
    %v4487 = vunpack.c.h.b16 %v4293
    %v4488 = vunpack.c.l.b16 %v4294
    %v4489 = vunpack.c.h.b16 %v4294
    %v4490 = vunpack.c.l.b16 %v4295
    %v4491 = vunpack.c.h.b16 %v4295
    %v4492 = vunpack.c.l.b16 %v4296
    %v4493 = vunpack.c.h.b16 %v4296
    %v4494 = vunpack.c.l.b16 %v4297
    %v4495 = vunpack.c.h.b16 %v4297
    %v4496 = vunpack.c.l.b16 %v4298
    %v4497 = vunpack.c.h.b16 %v4298
    %v4498 = vunpack.c.l.b16 %v4299
    %v4499 = vunpack.c.h.b16 %v4299
    %v4500 = vunpack.c.l.b16 %v4300
    %v4501 = vunpack.c.h.b16 %v4300
    %v4502 = vunpack.c.l.b16 %v4301
    %v4503 = vunpack.c.h.b16 %v4301
    %v4504 = vunpack.c.l.b16 %v4302
    %v4505 = vunpack.c.h.b16 %v4302
    %v4506 = vunpack.c.l.b16 %v4303
    %v4507 = vunpack.c.h.b16 %v4303
    %v4508 = vpack.c.b16 %v4382, %v4380
    %v4509 = vpack.c.b16 %v4383, %v4381
    %v4510 = vpack.c.b16 %v4386, %v4384
    %v4511 = vpack.c.b16 %v4387, %v4385
    %v4512 = vpack.c.b16 %v4390, %v4388
    %v4513 = vpack.c.b16 %v4391, %v4389
    %v4514 = vpack.c.b16 %v4394, %v4392
    %v4515 = vpack.c.b16 %v4395, %v4393
    %v4516 = vpack.c.b16 %v4398, %v4396
    %v4517 = vpack.c.b16 %v4399, %v4397
    %v4518 = vpack.c.b16 %v4402, %v4400
    %v4519 = vpack.c.b16 %v4403, %v4401
    %v4520 = vpack.c.b16 %v4406, %v4404
    %v4521 = vpack.c.b16 %v4407, %v4405
    %v4522 = vpack.c.b16 %v4410, %v4408
    %v4523 = vpack.c.b16 %v4411, %v4409
    %v4524 = vpack.c.b16 %v4414, %v4412
    %v4525 = vpack.c.b16 %v4415, %v4413
    %v4526 = vpack.c.b16 %v4418, %v4416
    %v4527 = vpack.c.b16 %v4419, %v4417
    %v4528 = vpack.c.b16 %v4422, %v4420
    %v4529 = vpack.c.b16 %v4423, %v4421
    %v4530 = vpack.c.b16 %v4426, %v4424
    %v4531 = vpack.c.b16 %v4427, %v4425
    %v4532 = vpack.c.b16 %v4430, %v4428
    %v4533 = vpack.c.b16 %v4431, %v4429
    %v4534 = vpack.c.b16 %v4434, %v4432
    %v4535 = vpack.c.b16 %v4435, %v4433
    %v4536 = vpack.c.b16 %v4438, %v4436
    %v4537 = vpack.c.b16 %v4439, %v4437
    %v4538 = vpack.c.b16 %v4442, %v4440
    %v4539 = vpack.c.b16 %v4443, %v4441
    %v4540 = vpack.c.b16 %v4446, %v4444
    %v4541 = vpack.c.b16 %v4447, %v4445
    %v4542 = vpack.c.b16 %v4450, %v4448
    %v4543 = vpack.c.b16 %v4451, %v4449
    %v4544 = vpack.c.b16 %v4454, %v4452
    %v4545 = vpack.c.b16 %v4455, %v4453
    %v4546 = vpack.c.b16 %v4458, %v4456
    %v4547 = vpack.c.b16 %v4459, %v4457
    %v4548 = vpack.c.b16 %v4462, %v4460
    %v4549 = vpack.c.b16 %v4463, %v4461
    %v4550 = vpack.c.b16 %v4466, %v4464
    %v4551 = vpack.c.b16 %v4467, %v4465
    %v4552 = vpack.c.b16 %v4470, %v4468
    %v4553 = vpack.c.b16 %v4471, %v4469
    %v4554 = vpack.c.b16 %v4474, %v4472
    %v4555 = vpack.c.b16 %v4475, %v4473
    %v4556 = vpack.c.b16 %v4478, %v4476
    %v4557 = vpack.c.b16 %v4479, %v4477
    %v4558 = vpack.c.b16 %v4482, %v4480
    %v4559 = vpack.c.b16 %v4483, %v4481
    %v4560 = vpack.c.b16 %v4486, %v4484
    %v4561 = vpack.c.b16 %v4487, %v4485
    %v4562 = vpack.c.b16 %v4490, %v4488
    %v4563 = vpack.c.b16 %v4491, %v4489
    %v4564 = vpack.c.b16 %v4494, %v4492
    %v4565 = vpack.c.b16 %v4495, %v4493
    %v4566 = vpack.c.b16 %v4498, %v4496
    %v4567 = vpack.c.b16 %v4499, %v4497
    %v4568 = vpack.c.b16 %v4502, %v4500
    %v4569 = vpack.c.b16 %v4503, %v4501
    %v4570 = vpack.c.b16 %v4506, %v4504
    %v4571 = vpack.c.b16 %v4507, %v4505
    %4636 = vmatprep.subr.bf16.mxu0 %v4509
    %4637 = vmatpush1.bf16.msra.mxu0 %v4508
    %4638 = vmatprep.subr.bf16.mxu0 %v4511
    %4639 = vmatpush1.bf16.msra.mxu0 %v4510
    %4640 = vmatprep.subr.bf16.mxu0 %v4513
    %4641 = vmatpush1.bf16.msra.mxu0 %v4512
    %4642 = vmatprep.subr.bf16.mxu0 %v4515
    %4643 = vmatpush1.bf16.msra.mxu0 %v4514
    %4644 = vmatprep.subr.bf16.mxu0 %v4517
    %4645 = vmatpush1.bf16.msra.mxu0 %v4516
    %4646 = vmatprep.subr.bf16.mxu0 %v4519
    %4647 = vmatpush1.bf16.msra.mxu0 %v4518
    %4648 = vmatprep.subr.bf16.mxu0 %v4521
    %4649 = vmatpush1.bf16.msra.mxu0 %v4520
    %4650 = vmatprep.subr.bf16.mxu0 %v4523
    %4651 = vmatpush1.bf16.msra.mxu0 %v4522
    %4652 = vmatprep.subr.bf16.mxu0 %v4525
    %4653 = vmatpush1.bf16.msra.mxu0 %v4524
    %4654 = vmatprep.subr.bf16.mxu0 %v4527
    %4655 = vmatpush1.bf16.msra.mxu0 %v4526
    %4656 = vmatprep.subr.bf16.mxu0 %v4529
    %4657 = vmatpush1.bf16.msra.mxu0 %v4528
    %4658 = vmatprep.subr.bf16.mxu0 %v4531
    %4659 = vmatpush1.bf16.msra.mxu0 %v4530
    %4660 = vmatprep.subr.bf16.mxu0 %v4533
    %4661 = vmatpush1.bf16.msra.mxu0 %v4532
    %4662 = vmatprep.subr.bf16.mxu0 %v4535
    %4663 = vmatpush1.bf16.msra.mxu0 %v4534
    %4664 = vmatprep.subr.bf16.mxu0 %v4537
    %4665 = vmatpush1.bf16.msra.mxu0 %v4536
    %4666 = vmatprep.subr.bf16.mxu0 %v4539
    %4667 = vmatpush1.bf16.msra.mxu0 %v4538
    %4668 = vmatprep.mubr.bf16.mxu0 %v4208
    %4669 = vmatmul.mubr.bf16.gmra.mrb[0].mxu0 %v4207
    %v4670 = vpop.f32.mrb[0].mxu0
    %v4671 = vadd.f32 %v4309, %v4670
    %v4672 = vpop.f32.mrb[0].mxu0
    %v4673 = vadd.f32 %v4313, %v4672
    %v4674 = vpop.f32.mrb[0].mxu0
    %v4675 = vadd.f32 %v4309, %v4674
    %v4676 = vpop.f32.mrb[0].mxu0
    %v4677 = vadd.f32 %v4313, %v4676
    %4678 = vmatprep.mubr.bf16.mxu0 %v4212
    %4679 = vmatmul.mubr.bf16.gmra.mrb[0].mxu0 %v4211
    %v4680 = vpop.f32.mrb[0].mxu0
    %v4681 = vadd.f32 %v4309, %v4680
    %v4682 = vpop.f32.mrb[0].mxu0
    %v4683 = vadd.f32 %v4313, %v4682
    %v4684 = vpop.f32.mrb[0].mxu0
    %v4685 = vadd.f32 %v4309, %v4684
    %v4686 = vpop.f32.mrb[0].mxu0
    %v4687 = vadd.f32 %v4313, %v4686
    %4688 = vmatprep.mubr.bf16.mxu0 %v4216
    %4689 = vmatmul.mubr.bf16.gmra.mrb[0].mxu0 %v4215
    %v4690 = vpop.f32.mrb[0].mxu0
    %v4691 = vadd.f32 %v4309, %v4690
    %v4692 = vpop.f32.mrb[0].mxu0
    %v4693 = vadd.f32 %v4313, %v4692
    %v4694 = vpop.f32.mrb[0].mxu0
    %v4695 = vadd.f32 %v4309, %v4694
    %v4696 = vpop.f32.mrb[0].mxu0
    %v4697 = vadd.f32 %v4313, %v4696
    %4698 = vmatprep.mubr.bf16.mxu0 %v4220
    %4699 = vmatmul.mubr.bf16.gmra.mrb[0].mxu0 %v4219
    %v4700 = vpop.f32.mrb[0].mxu0
    %v4701 = vadd.f32 %v4309, %v4700
    %v4702 = vpop.f32.mrb[0].mxu0
    %v4703 = vadd.f32 %v4313, %v4702
    %v4704 = vpop.f32.mrb[0].mxu0
    %v4705 = vadd.f32 %v4309, %v4704
    %v4706 = vpop.f32.mrb[0].mxu0
    %v4707 = vadd.f32 %v4313, %v4706
    %4708 = vmatprep.mubr.bf16.mxu0 %v4224
    %4709 = vmatmul.mubr.bf16.gmra.mrb[0].mxu0 %v4223
    %v4710 = vpop.f32.mrb[0].mxu0
    %v4711 = vadd.f32 %v4309, %v4710
    %v4712 = vpop.f32.mrb[0].mxu0
    %v4713 = vadd.f32 %v4313, %v4712
    %v4714 = vpop.f32.mrb[0].mxu0
    %v4715 = vadd.f32 %v4309, %v4714
    %v4716 = vpop.f32.mrb[0].mxu0
    %v4717 = vadd.f32 %v4313, %v4716
    %4718 = vmatprep.mubr.bf16.mxu0 %v4228
    %4719 = vmatmul.mubr.bf16.gmra.mrb[0].mxu0 %v4227
    %v4720 = vpop.f32.mrb[0].mxu0
    %v4721 = vadd.f32 %v4309, %v4720
    %v4722 = vpop.f32.mrb[0].mxu0
    %v4723 = vadd.f32 %v4313, %v4722
    %v4724 = vpop.f32.mrb[0].mxu0
    %v4725 = vadd.f32 %v4309, %v4724
    %v4726 = vpop.f32.mrb[0].mxu0
    %v4727 = vadd.f32 %v4313, %v4726
    %4728 = vmatprep.mubr.bf16.mxu0 %v4232
    %4729 = vmatmul.mubr.bf16.gmra.mrb[0].mxu0 %v4231
    %v4730 = vpop.f32.mrb[0].mxu0
    %v4731 = vadd.f32 %v4309, %v4730
    %v4732 = vpop.f32.mrb[0].mxu0
    %v4733 = vadd.f32 %v4313, %v4732
    %v4734 = vpop.f32.mrb[0].mxu0
    %v4735 = vadd.f32 %v4309, %v4734
    %v4736 = vpop.f32.mrb[0].mxu0
    %v4737 = vadd.f32 %v4313, %v4736
    %4738 = vmatprep.mubr.bf16.mxu0 %v4236
    %4739 = vmatmul.mubr.bf16.gmra.mrb[0].mxu0 %v4235
    %v4740 = vpop.f32.mrb[0].mxu0
    %v4741 = vadd.f32 %v4309, %v4740
    %v4742 = vpop.f32.mrb[0].mxu0
    %v4743 = vadd.f32 %v4313, %v4742
    %v4744 = vpop.f32.mrb[0].mxu0
    %v4745 = vadd.f32 %v4309, %v4744
    %v4746 = vpop.f32.mrb[0].mxu0
    %v4747 = vadd.f32 %v4313, %v4746
    %4748 = vdwg.mxu0
    %4749 = vmatprep.subr.bf16.mxu0 %v4541
    %4750 = vmatpush1.bf16.msra.mxu0 %v4540
    %4751 = vmatprep.subr.bf16.mxu0 %v4543
    %4752 = vmatpush1.bf16.msra.mxu0 %v4542
    %4753 = vmatprep.subr.bf16.mxu0 %v4545
    %4754 = vmatpush1.bf16.msra.mxu0 %v4544
    %4755 = vmatprep.subr.bf16.mxu0 %v4547
    %4756 = vmatpush1.bf16.msra.mxu0 %v4546
    %4757 = vmatprep.subr.bf16.mxu0 %v4549
    %4758 = vmatpush1.bf16.msra.mxu0 %v4548
    %4759 = vmatprep.subr.bf16.mxu0 %v4551
    %4760 = vmatpush1.bf16.msra.mxu0 %v4550
    %4761 = vmatprep.subr.bf16.mxu0 %v4553
    %4762 = vmatpush1.bf16.msra.mxu0 %v4552
    %4763 = vmatprep.subr.bf16.mxu0 %v4555
    %4764 = vmatpush1.bf16.msra.mxu0 %v4554
    %4765 = vmatprep.subr.bf16.mxu0 %v4557
    %4766 = vmatpush1.bf16.msra.mxu0 %v4556
    %4767 = vmatprep.subr.bf16.mxu0 %v4559
    %4768 = vmatpush1.bf16.msra.mxu0 %v4558
    %4769 = vmatprep.subr.bf16.mxu0 %v4561
    %4770 = vmatpush1.bf16.msra.mxu0 %v4560
    %4771 = vmatprep.subr.bf16.mxu0 %v4563
    %4772 = vmatpush1.bf16.msra.mxu0 %v4562
    %4773 = vmatprep.subr.bf16.mxu0 %v4565
    %4774 = vmatpush1.bf16.msra.mxu0 %v4564
    %4775 = vmatprep.subr.bf16.mxu0 %v4567
    %4776 = vmatpush1.bf16.msra.mxu0 %v4566
    %4777 = vmatprep.subr.bf16.mxu0 %v4569
    %4778 = vmatpush1.bf16.msra.mxu0 %v4568
    %4779 = vmatprep.subr.bf16.mxu0 %v4571
    %4780 = vmatpush1.bf16.msra.mxu0 %v4570
    %4781 = vmatprep.mubr.bf16.mxu0 %v4210
    %4782 = vmatmul.mubr.bf16.gmra.mrb[0].mxu0 %v4209
    %v4783 = vpop.f32.mrb[0].mxu0
    %v4784 = vadd.f32 %v4671, %v4783
    %v4785 = vpop.f32.mrb[0].mxu0
    %v4786 = vadd.f32 %v4673, %v4785
    %v4787 = vpop.f32.mrb[0].mxu0
    %v4788 = vadd.f32 %v4675, %v4787
    %v4789 = vpop.f32.mrb[0].mxu0
    %v4790 = vadd.f32 %v4677, %v4789
    %4791 = vmatprep.mubr.bf16.mxu0 %v4214
    %4792 = vmatmul.mubr.bf16.gmra.mrb[0].mxu0 %v4213
    %v4793 = vpop.f32.mrb[0].mxu0
    %v4794 = vadd.f32 %v4681, %v4793
    %v4795 = vpop.f32.mrb[0].mxu0
    %v4796 = vadd.f32 %v4683, %v4795
    %v4797 = vpop.f32.mrb[0].mxu0
    %v4798 = vadd.f32 %v4685, %v4797
    %v4799 = vpop.f32.mrb[0].mxu0
    %v4800 = vadd.f32 %v4687, %v4799
    %4801 = vmatprep.mubr.bf16.mxu0 %v4218
    %4802 = vmatmul.mubr.bf16.gmra.mrb[0].mxu0 %v4217
    %v4803 = vpop.f32.mrb[0].mxu0
    %v4804 = vadd.f32 %v4691, %v4803
    %v4805 = vpop.f32.mrb[0].mxu0
    %v4806 = vadd.f32 %v4693, %v4805
    %v4807 = vpop.f32.mrb[0].mxu0
    %v4808 = vadd.f32 %v4695, %v4807
    %v4809 = vpop.f32.mrb[0].mxu0
    %v4810 = vadd.f32 %v4697, %v4809
    %4811 = vmatprep.mubr.bf16.mxu0 %v4222
    %4812 = vmatmul.mubr.bf16.gmra.mrb[0].mxu0 %v4221
    %v4813 = vpop.f32.mrb[0].mxu0
    %v4814 = vadd.f32 %v4701, %v4813
    %v4815 = vpop.f32.mrb[0].mxu0
    %v4816 = vadd.f32 %v4703, %v4815
    %v4817 = vpop.f32.mrb[0].mxu0
    %v4818 = vadd.f32 %v4705, %v4817
    %v4819 = vpop.f32.mrb[0].mxu0
    %v4820 = vadd.f32 %v4707, %v4819
    %4821 = vmatprep.mubr.bf16.mxu0 %v4226
    %4822 = vmatmul.mubr.bf16.gmra.mrb[0].mxu0 %v4225
    %v4823 = vpop.f32.mrb[0].mxu0
    %v4824 = vadd.f32 %v4711, %v4823
    %v4825 = vpop.f32.mrb[0].mxu0
    %v4826 = vadd.f32 %v4713, %v4825
    %v4827 = vpop.f32.mrb[0].mxu0
    %v4828 = vadd.f32 %v4715, %v4827
    %v4829 = vpop.f32.mrb[0].mxu0
    %v4830 = vadd.f32 %v4717, %v4829
    %4831 = vmatprep.mubr.bf16.mxu0 %v4230
    %4832 = vmatmul.mubr.bf16.gmra.mrb[0].mxu0 %v4229
    %v4833 = vpop.f32.mrb[0].mxu0
    %v4834 = vadd.f32 %v4721, %v4833
    %v4835 = vpop.f32.mrb[0].mxu0
    %v4836 = vadd.f32 %v4723, %v4835
    %v4837 = vpop.f32.mrb[0].mxu0
    %v4838 = vadd.f32 %v4725, %v4837
    %v4839 = vpop.f32.mrb[0].mxu0
    %v4840 = vadd.f32 %v4727, %v4839
    %4841 = vmatprep.mubr.bf16.mxu0 %v4234
    %4842 = vmatmul.mubr.bf16.gmra.mrb[0].mxu0 %v4233
    %v4843 = vpop.f32.mrb[0].mxu0
    %v4844 = vadd.f32 %v4731, %v4843
    %v4845 = vpop.f32.mrb[0].mxu0
    %v4846 = vadd.f32 %v4733, %v4845
    %v4847 = vpop.f32.mrb[0].mxu0
    %v4848 = vadd.f32 %v4735, %v4847
    %v4849 = vpop.f32.mrb[0].mxu0
    %v4850 = vadd.f32 %v4737, %v4849
    %4851 = vmatprep.mubr.bf16.mxu0 %v4238
    %4852 = vmatmul.mubr.bf16.gmra.mrb[0].mxu0 %v4237
    %v4853 = vpop.f32.mrb[0].mxu0
    %v4854 = vadd.f32 %v4741, %v4853
    %v4855 = vpop.f32.mrb[0].mxu0
    %v4856 = vadd.f32 %v4743, %v4855
    %v4857 = vpop.f32.mrb[0].mxu0
    %v4858 = vadd.f32 %v4745, %v4857
    %v4859 = vpop.f32.mrb[0].mxu0
    %v4860 = vadd.f32 %v4747, %v4859
    %4861 = vdwg.mxu0
    %vm4862 = vcmp.gt.f32.partialorder %v4784, 0.0
    %vm4863 = vcmp.gt.f32.partialorder %v4786, 0.0
    %vm4864 = vcmp.gt.f32.partialorder %v4788, 0.0
    %vm4865 = vcmp.gt.f32.partialorder %v4790, 0.0
    %vm4866 = vcmp.gt.f32.partialorder %v4794, 0.0
    %vm4867 = vcmp.gt.f32.partialorder %v4796, 0.0
    %vm4868 = vcmp.gt.f32.partialorder %v4798, 0.0
    %vm4869 = vcmp.gt.f32.partialorder %v4800, 0.0
    %vm4870 = vcmp.gt.f32.partialorder %v4804, 0.0
    %vm4871 = vcmp.gt.f32.partialorder %v4806, 0.0
    %vm4872 = vcmp.gt.f32.partialorder %v4808, 0.0
    %vm4873 = vcmp.gt.f32.partialorder %v4810, 0.0
    %vm4874 = vcmp.gt.f32.partialorder %v4814, 0.0
    %vm4875 = vcmp.gt.f32.partialorder %v4816, 0.0
    %vm4876 = vcmp.gt.f32.partialorder %v4818, 0.0
    %vm4877 = vcmp.gt.f32.partialorder %v4820, 0.0
    %vm4878 = vcmp.gt.f32.partialorder %v4824, 0.0
    %vm4879 = vcmp.gt.f32.partialorder %v4826, 0.0
    %vm4880 = vcmp.gt.f32.partialorder %v4828, 0.0
    %vm4881 = vcmp.gt.f32.partialorder %v4830, 0.0
    %vm4882 = vcmp.gt.f32.partialorder %v4834, 0.0
    %vm4883 = vcmp.gt.f32.partialorder %v4836, 0.0
    %vm4884 = vcmp.gt.f32.partialorder %v4838, 0.0
    %vm4885 = vcmp.gt.f32.partialorder %v4840, 0.0
    %vm4886 = vcmp.gt.f32.partialorder %v4844, 0.0
    %vm4887 = vcmp.gt.f32.partialorder %v4846, 0.0
    %vm4888 = vcmp.gt.f32.partialorder %v4848, 0.0
    %vm4889 = vcmp.gt.f32.partialorder %v4850, 0.0
    %vm4890 = vcmp.gt.f32.partialorder %v4854, 0.0
    %vm4891 = vcmp.gt.f32.partialorder %v4856, 0.0
    %vm4892 = vcmp.gt.f32.partialorder %v4858, 0.0
    %vm4893 = vcmp.gt.f32.partialorder %v4860, 0.0
    %v4894 = vmin.f32 %v4784, 0.0
    %v4895 = vmin.f32 %v4786, 0.0
    %v4896 = vmin.f32 %v4788, 0.0
    %v4897 = vmin.f32 %v4790, 0.0
    %v4898 = vmin.f32 %v4794, 0.0
    %v4899 = vmin.f32 %v4796, 0.0
    %v4900 = vmin.f32 %v4798, 0.0
    %v4901 = vmin.f32 %v4800, 0.0
    %v4902 = vmin.f32 %v4804, 0.0
    %v4903 = vmin.f32 %v4806, 0.0
    %v4904 = vmin.f32 %v4808, 0.0
    %v4905 = vmin.f32 %v4810, 0.0
    %v4906 = vmin.f32 %v4814, 0.0
    %v4907 = vmin.f32 %v4816, 0.0
    %v4908 = vmin.f32 %v4818, 0.0
    %v4909 = vmin.f32 %v4820, 0.0
    %v4910 = vmin.f32 %v4824, 0.0
    %v4911 = vmin.f32 %v4826, 0.0
    %v4912 = vmin.f32 %v4828, 0.0
    %v4913 = vmin.f32 %v4830, 0.0
    %v4914 = vmin.f32 %v4834, 0.0
    %v4915 = vmin.f32 %v4836, 0.0
    %v4916 = vmin.f32 %v4838, 0.0
    %v4917 = vmin.f32 %v4840, 0.0
    %v4918 = vmin.f32 %v4844, 0.0
    %v4919 = vmin.f32 %v4846, 0.0
    %v4920 = vmin.f32 %v4848, 0.0
    %v4921 = vmin.f32 %v4850, 0.0
    %v4922 = vmin.f32 %v4854, 0.0
    %v4923 = vmin.f32 %v4856, 0.0
    %v4924 = vmin.f32 %v4858, 0.0
    %v4925 = vmin.f32 %v4860, 0.0
    %v4926 = vmul.f32 %v4894, 1.442695
    %v4927 = vpow.pop %v4926
    %v4928 = vmul.f32 %v4895, 1.442695
    %v4929 = vpow.pop %v4928
    %v4930 = vmul.f32 %v4896, 1.442695
    %v4931 = vpow.pop %v4930
    %v4932 = vmul.f32 %v4897, 1.442695
    %v4933 = vpow.pop %v4932
    %v4934 = vmul.f32 %v4898, 1.442695
    %v4935 = vpow.pop %v4934
    %v4936 = vmul.f32 %v4899, 1.442695
    %v4937 = vpow.pop %v4936
    %v4938 = vmul.f32 %v4900, 1.442695
    %v4939 = vpow.pop %v4938
    %v4940 = vmul.f32 %v4901, 1.442695
    %v4941 = vpow.pop %v4940
    %v4942 = vmul.f32 %v4902, 1.442695
    %v4943 = vpow.pop %v4942
    %v4944 = vmul.f32 %v4903, 1.442695
    %v4945 = vpow.pop %v4944
    %v4946 = vmul.f32 %v4904, 1.442695
    %v4947 = vpow.pop %v4946
    %v4948 = vmul.f32 %v4905, 1.442695
    %v4949 = vpow.pop %v4948
    %v4950 = vmul.f32 %v4906, 1.442695
    %v4951 = vpow.pop %v4950
    %v4952 = vmul.f32 %v4907, 1.442695
    %v4953 = vpow.pop %v4952
    %v4954 = vmul.f32 %v4908, 1.442695
    %v4955 = vpow.pop %v4954
    %v4956 = vmul.f32 %v4909, 1.442695
    %v4957 = vpow.pop %v4956
    %v4958 = vmul.f32 %v4910, 1.442695
    %v4959 = vpow.pop %v4958
    %v4960 = vmul.f32 %v4911, 1.442695
    %v4961 = vpow.pop %v4960
    %v4962 = vmul.f32 %v4912, 1.442695
    %v4963 = vpow.pop %v4962
    %v4964 = vmul.f32 %v4913, 1.442695
    %v4965 = vpow.pop %v4964
    %v4966 = vmul.f32 %v4914, 1.442695
    %v4967 = vpow.pop %v4966
    %v4968 = vmul.f32 %v4915, 1.442695
    %v4969 = vpow.pop %v4968
    %v4970 = vmul.f32 %v4916, 1.442695
    %v4971 = vpow.pop %v4970
    %v4972 = vmul.f32 %v4917, 1.442695
    %v4973 = vpow.pop %v4972
    %v4974 = vmul.f32 %v4918, 1.442695
    %v4975 = vpow.pop %v4974
    %v4976 = vmul.f32 %v4919, 1.442695
    %v4977 = vpow.pop %v4976
    %v4978 = vmul.f32 %v4920, 1.442695
    %v4979 = vpow.pop %v4978
    %v4980 = vmul.f32 %v4921, 1.442695
    %v4981 = vpow.pop %v4980
    %v4982 = vmul.f32 %v4922, 1.442695
    %v4983 = vpow.pop %v4982
    %v4984 = vmul.f32 %v4923, 1.442695
    %v4985 = vpow.pop %v4984
    %v4986 = vmul.f32 %v4924, 1.442695
    %v4987 = vpow.pop %v4986
    %v4988 = vmul.f32 %v4925, 1.442695
    %v4989 = vpow.pop %v4988
    %v4990 = vsub.f32 %v4927, 1.0
    %v4991 = vsub.f32 %v4929, 1.0
    %v4992 = vsub.f32 %v4931, 1.0
    %v4993 = vsub.f32 %v4933, 1.0
    %v4994 = vsub.f32 %v4935, 1.0
    %v4995 = vsub.f32 %v4937, 1.0
    %v4996 = vsub.f32 %v4939, 1.0
    %v4997 = vsub.f32 %v4941, 1.0
    %v4998 = vsub.f32 %v4943, 1.0
    %v4999 = vsub.f32 %v4945, 1.0
    %v5000 = vsub.f32 %v4947, 1.0
    %v5001 = vsub.f32 %v4949, 1.0
    %v5002 = vsub.f32 %v4951, 1.0
    %v5003 = vsub.f32 %v4953, 1.0
    %v5004 = vsub.f32 %v4955, 1.0
    %v5005 = vsub.f32 %v4957, 1.0
    %v5006 = vsub.f32 %v4959, 1.0
    %v5007 = vsub.f32 %v4961, 1.0
    %v5008 = vsub.f32 %v4963, 1.0
    %v5009 = vsub.f32 %v4965, 1.0
    %v5010 = vsub.f32 %v4967, 1.0
    %v5011 = vsub.f32 %v4969, 1.0
    %v5012 = vsub.f32 %v4971, 1.0
    %v5013 = vsub.f32 %v4973, 1.0
    %v5014 = vsub.f32 %v4975, 1.0
    %v5015 = vsub.f32 %v4977, 1.0
    %v5016 = vsub.f32 %v4979, 1.0
    %v5017 = vsub.f32 %v4981, 1.0
    %v5018 = vsub.f32 %v4983, 1.0
    %v5019 = vsub.f32 %v4985, 1.0
    %v5020 = vsub.f32 %v4987, 1.0
    %v5021 = vsub.f32 %v4989, 1.0
    %v5022 = vsel %vm4862, %v4784, %v4990
    %v5023 = vsel %vm4863, %v4786, %v4991
    %v5024 = vsel %vm4864, %v4788, %v4992
    %v5025 = vsel %vm4865, %v4790, %v4993
    %v5026 = vsel %vm4866, %v4794, %v4994
    %v5027 = vsel %vm4867, %v4796, %v4995
    %v5028 = vsel %vm4868, %v4798, %v4996
    %v5029 = vsel %vm4869, %v4800, %v4997
    %v5030 = vsel %vm4870, %v4804, %v4998
    %v5031 = vsel %vm4871, %v4806, %v4999
    %v5032 = vsel %vm4872, %v4808, %v5000
    %v5033 = vsel %vm4873, %v4810, %v5001
    %v5034 = vsel %vm4874, %v4814, %v5002
    %v5035 = vsel %vm4875, %v4816, %v5003
    %v5036 = vsel %vm4876, %v4818, %v5004
    %v5037 = vsel %vm4877, %v4820, %v5005
    %v5038 = vsel %vm4878, %v4824, %v5006
    %v5039 = vsel %vm4879, %v4826, %v5007
    %v5040 = vsel %vm4880, %v4828, %v5008
    %v5041 = vsel %vm4881, %v4830, %v5009
    %v5042 = vsel %vm4882, %v4834, %v5010
    %v5043 = vsel %vm4883, %v4836, %v5011
    %v5044 = vsel %vm4884, %v4838, %v5012
    %v5045 = vsel %vm4885, %v4840, %v5013
    %v5046 = vsel %vm4886, %v4844, %v5014
    %v5047 = vsel %vm4887, %v4846, %v5015
    %v5048 = vsel %vm4888, %v4848, %v5016
    %v5049 = vsel %vm4889, %v4850, %v5017
    %v5050 = vsel %vm4890, %v4854, %v5018
    %v5051 = vsel %vm4891, %v4856, %v5019
    %v5052 = vsel %vm4892, %v4858, %v5020
    %v5053 = vsel %vm4893, %v4860, %v5021
    %v5054 = vpack.c.bf16 %v5024, %v5022
    %v5055 = vpack.c.bf16 %v5025, %v5023
    %v5056 = vpack.c.bf16 %v5028, %v5026
    %v5057 = vpack.c.bf16 %v5029, %v5027
    %v5058 = vpack.c.bf16 %v5032, %v5030
    %v5059 = vpack.c.bf16 %v5033, %v5031
    %v5060 = vpack.c.bf16 %v5036, %v5034
    %v5061 = vpack.c.bf16 %v5037, %v5035
    %v5062 = vpack.c.bf16 %v5040, %v5038
    %v5063 = vpack.c.bf16 %v5041, %v5039
    %v5064 = vpack.c.bf16 %v5044, %v5042
    %v5065 = vpack.c.bf16 %v5045, %v5043
    %v5066 = vpack.c.bf16 %v5048, %v5046
    %v5067 = vpack.c.bf16 %v5049, %v5047
    %v5068 = vpack.c.bf16 %v5052, %v5050
    %v5069 = vpack.c.bf16 %v5053, %v5051
    %s5070 = scalar_lea.vmem [#allocation7], 256
    %v5071 = vld [vmem:[%s5070] sm:$0xf]
    %v5072 = vld [vmem:[%s5070 + $0x4] sm:$0xf]
    %v5073 = vld [vmem:[%s5070 + $0x8] sm:$0xf]
    %v5074 = vld [vmem:[%s5070 + $0xc] sm:$0xf]
    %v5075 = vld [vmem:[%s5070 + $0x10] sm:$0xf]
    %v5076 = vld [vmem:[%s5070 + $0x14] sm:$0xf]
    %v5077 = vld [vmem:[%s5070 + $0x18] sm:$0xf]
    %v5078 = vld [vmem:[%s5070 + $0x1c] sm:$0xf]
    %v5079 = vld [vmem:[%s5070 + $0x20] sm:$0xf]
    %v5080 = vld [vmem:[%s5070 + $0x24] sm:$0xf]
    %v5081 = vld [vmem:[%s5070 + $0x28] sm:$0xf]
    %v5082 = vld [vmem:[%s5070 + $0x2c] sm:$0xf]
    %v5083 = vld [vmem:[%s5070 + $0x30] sm:$0xf]
    %v5084 = vld [vmem:[%s5070 + $0x34] sm:$0xf]
    %v5085 = vld [vmem:[%s5070 + $0x38] sm:$0xf]
    %v5086 = vld [vmem:[%s5070 + $0x3c] sm:$0xf]
    %v5087 = vld [vmem:[%s5070 + $0x40] sm:$0xf]
    %v5088 = vld [vmem:[%s5070 + $0x44] sm:$0xf]
    %v5089 = vld [vmem:[%s5070 + $0x48] sm:$0xf]
    %v5090 = vld [vmem:[%s5070 + $0x4c] sm:$0xf]
    %v5091 = vld [vmem:[%s5070 + $0x50] sm:$0xf]
    %v5092 = vld [vmem:[%s5070 + $0x54] sm:$0xf]
    %v5093 = vld [vmem:[%s5070 + $0x58] sm:$0xf]
    %v5094 = vld [vmem:[%s5070 + $0x5c] sm:$0xf]
    %v5095 = vld [vmem:[%s5070 + $0x60] sm:$0xf]
    %v5096 = vld [vmem:[%s5070 + $0x64] sm:$0xf]
    %v5097 = vld [vmem:[%s5070 + $0x68] sm:$0xf]
    %v5098 = vld [vmem:[%s5070 + $0x6c] sm:$0xf]
    %v5099 = vld [vmem:[%s5070 + $0x70] sm:$0xf]
    %v5100 = vld [vmem:[%s5070 + $0x74] sm:$0xf]
    %v5101 = vld [vmem:[%s5070 + $0x78] sm:$0xf]
    %v5102 = vld [vmem:[%s5070 + $0x7c] sm:$0xf]
    %v5103 = vld [vmem:[%s7 + $0x10] sm:$0x1]
    %v5105 = vlaneseq
    %v5106 = vshrl.u32 %v5105, 7
    %v5107 = vsub.s32 0, %v5106
    %v5108 = vrot.slane %v5103, %v5107
    %v5142 = vunpack.c.l.b16 %v5071
    %v5143 = vunpack.c.l.b16 %v5072
    %v5144 = vunpack.c.l.b16 %v5073
    %v5145 = vunpack.c.l.b16 %v5074
    %v5146 = vunpack.c.l.b16 %v5075
    %v5147 = vunpack.c.l.b16 %v5076
    %v5148 = vunpack.c.l.b16 %v5077
    %v5149 = vunpack.c.l.b16 %v5078
    %v5150 = vunpack.c.l.b16 %v5079
    %v5151 = vunpack.c.l.b16 %v5080
    %v5152 = vunpack.c.l.b16 %v5081
    %v5153 = vunpack.c.l.b16 %v5082
    %v5154 = vunpack.c.l.b16 %v5083
    %v5155 = vunpack.c.l.b16 %v5084
    %v5156 = vunpack.c.l.b16 %v5085
    %v5157 = vunpack.c.l.b16 %v5086
    %v5158 = vunpack.c.l.b16 %v5087
    %v5159 = vunpack.c.l.b16 %v5088
    %v5160 = vunpack.c.l.b16 %v5089
    %v5161 = vunpack.c.l.b16 %v5090
    %v5162 = vunpack.c.l.b16 %v5091
    %v5163 = vunpack.c.l.b16 %v5092
    %v5164 = vunpack.c.l.b16 %v5093
    %v5165 = vunpack.c.l.b16 %v5094
    %v5166 = vunpack.c.l.b16 %v5095
    %v5167 = vunpack.c.l.b16 %v5096
    %v5168 = vunpack.c.l.b16 %v5097
    %v5169 = vunpack.c.l.b16 %v5098
    %v5170 = vunpack.c.l.b16 %v5099
    %v5171 = vunpack.c.l.b16 %v5100
    %v5172 = vunpack.c.l.b16 %v5101
    %v5173 = vunpack.c.l.b16 %v5102
    %v5174 = vpack.c.b16 %v5143, %v5142
    %v5175 = vpack.c.b16 %v5145, %v5144
    %v5176 = vpack.c.b16 %v5147, %v5146
    %v5177 = vpack.c.b16 %v5149, %v5148
    %v5178 = vpack.c.b16 %v5151, %v5150
    %v5179 = vpack.c.b16 %v5153, %v5152
    %v5180 = vpack.c.b16 %v5155, %v5154
    %v5181 = vpack.c.b16 %v5157, %v5156
    %v5182 = vpack.c.b16 %v5159, %v5158
    %v5183 = vpack.c.b16 %v5161, %v5160
    %v5184 = vpack.c.b16 %v5163, %v5162
    %v5185 = vpack.c.b16 %v5165, %v5164
    %v5186 = vpack.c.b16 %v5167, %v5166
    %v5187 = vpack.c.b16 %v5169, %v5168
    %v5188 = vpack.c.b16 %v5171, %v5170
    %v5189 = vpack.c.b16 %v5173, %v5172
    %5206 = vmatprep.subr.bf16.mxu0 0
    %5207 = vmatpush1.bf16.msra.mxu0 %v5174
    %5208 = vmatprep.subr.bf16.mxu0 0
    %5209 = vmatpush1.bf16.msra.mxu0 %v5175
    %5210 = vmatprep.subr.bf16.mxu0 0
    %5211 = vmatpush1.bf16.msra.mxu0 %v5176
    %5212 = vmatprep.subr.bf16.mxu0 0
    %5213 = vmatpush1.bf16.msra.mxu0 %v5177
    %5214 = vmatprep.subr.bf16.mxu0 0
    %5215 = vmatpush1.bf16.msra.mxu0 %v5178
    %5216 = vmatprep.subr.bf16.mxu0 0
    %5217 = vmatpush1.bf16.msra.mxu0 %v5179
    %5218 = vmatprep.subr.bf16.mxu0 0
    %5219 = vmatpush1.bf16.msra.mxu0 %v5180
    %5220 = vmatprep.subr.bf16.mxu0 0
    %5221 = vmatpush1.bf16.msra.mxu0 %v5181
    %5222 = vmatprep.subr.bf16.mxu0 0
    %5223 = vmatpush1.bf16.msra.mxu0 %v5182
    %5224 = vmatprep.subr.bf16.mxu0 0
    %5225 = vmatpush1.bf16.msra.mxu0 %v5183
    %5226 = vmatprep.subr.bf16.mxu0 0
    %5227 = vmatpush1.bf16.msra.mxu0 %v5184
    %5228 = vmatprep.subr.bf16.mxu0 0
    %5229 = vmatpush1.bf16.msra.mxu0 %v5185
    %5230 = vmatprep.subr.bf16.mxu0 0
    %5231 = vmatpush1.bf16.msra.mxu0 %v5186
    %5232 = vmatprep.subr.bf16.mxu0 0
    %5233 = vmatpush1.bf16.msra.mxu0 %v5187
    %5234 = vmatprep.subr.bf16.mxu0 0
    %5235 = vmatpush1.bf16.msra.mxu0 %v5188
    %5236 = vmatprep.subr.bf16.mxu0 0
    %5237 = vmatpush1.bf16.msra.mxu0 %v5189
    %5238 = vmatprep.mubr.bf16.mxu0 %v5055
    %5239 = vmatmul.mubr.bf16.gmra.mrb[0].mxu0 %v5054
    %v5240 = vpop.f32.mrb[0].mxu0
    %v5241 = vadd.f32 %v5108, %v5240
    %v5242 = vpop.f32.mrb[0].mxu0
    %v5243 = vpop.f32.mrb[0].mxu0
    %v5244 = vadd.f32 %v5108, %v5243
    %v5245 = vpop.f32.mrb[0].mxu0
    %5246 = vmatprep.mubr.bf16.mxu0 %v5057
    %5247 = vmatmul.mubr.bf16.gmra.mrb[0].mxu0 %v5056
    %v5248 = vpop.f32.mrb[0].mxu0
    %v5249 = vadd.f32 %v5108, %v5248
    %v5250 = vpop.f32.mrb[0].mxu0
    %v5251 = vpop.f32.mrb[0].mxu0
    %v5252 = vadd.f32 %v5108, %v5251
    %v5253 = vpop.f32.mrb[0].mxu0
    %5254 = vmatprep.mubr.bf16.mxu0 %v5059
    %5255 = vmatmul.mubr.bf16.gmra.mrb[0].mxu0 %v5058
    %v5256 = vpop.f32.mrb[0].mxu0
    %v5257 = vadd.f32 %v5108, %v5256
    %v5258 = vpop.f32.mrb[0].mxu0
    %v5259 = vpop.f32.mrb[0].mxu0
    %v5260 = vadd.f32 %v5108, %v5259
    %v5261 = vpop.f32.mrb[0].mxu0
    %5262 = vmatprep.mubr.bf16.mxu0 %v5061
    %5263 = vmatmul.mubr.bf16.gmra.mrb[0].mxu0 %v5060
    %v5264 = vpop.f32.mrb[0].mxu0
    %v5265 = vadd.f32 %v5108, %v5264
    %v5266 = vpop.f32.mrb[0].mxu0
    %v5267 = vpop.f32.mrb[0].mxu0
    %v5268 = vadd.f32 %v5108, %v5267
    %v5269 = vpop.f32.mrb[0].mxu0
    %5270 = vmatprep.mubr.bf16.mxu0 %v5063
    %5271 = vmatmul.mubr.bf16.gmra.mrb[0].mxu0 %v5062
    %v5272 = vpop.f32.mrb[0].mxu0
    %v5273 = vadd.f32 %v5108, %v5272
    %v5274 = vpop.f32.mrb[0].mxu0
    %v5275 = vpop.f32.mrb[0].mxu0
    %v5276 = vadd.f32 %v5108, %v5275
    %v5277 = vpop.f32.mrb[0].mxu0
    %5278 = vmatprep.mubr.bf16.mxu0 %v5065
    %5279 = vmatmul.mubr.bf16.gmra.mrb[0].mxu0 %v5064
    %v5280 = vpop.f32.mrb[0].mxu0
    %v5281 = vadd.f32 %v5108, %v5280
    %v5282 = vpop.f32.mrb[0].mxu0
    %v5283 = vpop.f32.mrb[0].mxu0
    %v5284 = vadd.f32 %v5108, %v5283
    %v5285 = vpop.f32.mrb[0].mxu0
    %5286 = vmatprep.mubr.bf16.mxu0 %v5067
    %5287 = vmatmul.mubr.bf16.gmra.mrb[0].mxu0 %v5066
    %v5288 = vpop.f32.mrb[0].mxu0
    %v5289 = vadd.f32 %v5108, %v5288
    %v5290 = vpop.f32.mrb[0].mxu0
    %v5291 = vpop.f32.mrb[0].mxu0
    %v5292 = vadd.f32 %v5108, %v5291
    %v5293 = vpop.f32.mrb[0].mxu0
    %5294 = vmatprep.mubr.bf16.mxu0 %v5069
    %5295 = vmatmul.mubr.bf16.gmra.mrb[0].mxu0 %v5068
    %v5296 = vpop.f32.mrb[0].mxu0
    %v5297 = vadd.f32 %v5108, %v5296
    %v5298 = vpop.f32.mrb[0].mxu0
    %v5299 = vpop.f32.mrb[0].mxu0
    %v5300 = vadd.f32 %v5108, %v5299
    %v5301 = vpop.f32.mrb[0].mxu0
    %5302 = vdwg.mxu0
    %vm5303 = vcmp.gt.f32.partialorder %v5241, 0.0
    %vm5304 = vcmp.gt.f32.partialorder %v5244, 0.0
    %vm5305 = vcmp.gt.f32.partialorder %v5249, 0.0
    %vm5306 = vcmp.gt.f32.partialorder %v5252, 0.0
    %vm5307 = vcmp.gt.f32.partialorder %v5257, 0.0
    %vm5308 = vcmp.gt.f32.partialorder %v5260, 0.0
    %vm5309 = vcmp.gt.f32.partialorder %v5265, 0.0
    %vm5310 = vcmp.gt.f32.partialorder %v5268, 0.0
    %vm5311 = vcmp.gt.f32.partialorder %v5273, 0.0
    %vm5312 = vcmp.gt.f32.partialorder %v5276, 0.0
    %vm5313 = vcmp.gt.f32.partialorder %v5281, 0.0
    %vm5314 = vcmp.gt.f32.partialorder %v5284, 0.0
    %vm5315 = vcmp.gt.f32.partialorder %v5289, 0.0
    %vm5316 = vcmp.gt.f32.partialorder %v5292, 0.0
    %vm5317 = vcmp.gt.f32.partialorder %v5297, 0.0
    %vm5318 = vcmp.gt.f32.partialorder %v5300, 0.0
    %v5319 = vmin.f32 %v5241, 0.0
    %v5320 = vmin.f32 %v5244, 0.0
    %v5321 = vmin.f32 %v5249, 0.0
    %v5322 = vmin.f32 %v5252, 0.0
    %v5323 = vmin.f32 %v5257, 0.0
    %v5324 = vmin.f32 %v5260, 0.0
    %v5325 = vmin.f32 %v5265, 0.0
    %v5326 = vmin.f32 %v5268, 0.0
    %v5327 = vmin.f32 %v5273, 0.0
    %v5328 = vmin.f32 %v5276, 0.0
    %v5329 = vmin.f32 %v5281, 0.0
    %v5330 = vmin.f32 %v5284, 0.0
    %v5331 = vmin.f32 %v5289, 0.0
    %v5332 = vmin.f32 %v5292, 0.0
    %v5333 = vmin.f32 %v5297, 0.0
    %v5334 = vmin.f32 %v5300, 0.0
    %v5335 = vmul.f32 %v5319, 1.442695
    %v5336 = vpow.pop %v5335
    %v5337 = vmul.f32 %v5320, 1.442695
    %v5338 = vpow.pop %v5337
    %v5339 = vmul.f32 %v5321, 1.442695
    %v5340 = vpow.pop %v5339
    %v5341 = vmul.f32 %v5322, 1.442695
    %v5342 = vpow.pop %v5341
    %v5343 = vmul.f32 %v5323, 1.442695
    %v5344 = vpow.pop %v5343
    %v5345 = vmul.f32 %v5324, 1.442695
    %v5346 = vpow.pop %v5345
    %v5347 = vmul.f32 %v5325, 1.442695
    %v5348 = vpow.pop %v5347
    %v5349 = vmul.f32 %v5326, 1.442695
    %v5350 = vpow.pop %v5349
    %v5351 = vmul.f32 %v5327, 1.442695
    %v5352 = vpow.pop %v5351
    %v5353 = vmul.f32 %v5328, 1.442695
    %v5354 = vpow.pop %v5353
    %v5355 = vmul.f32 %v5329, 1.442695
    %v5356 = vpow.pop %v5355
    %v5357 = vmul.f32 %v5330, 1.442695
    %v5358 = vpow.pop %v5357
    %v5359 = vmul.f32 %v5331, 1.442695
    %v5360 = vpow.pop %v5359
    %v5361 = vmul.f32 %v5332, 1.442695
    %v5362 = vpow.pop %v5361
    %v5363 = vmul.f32 %v5333, 1.442695
    %v5364 = vpow.pop %v5363
    %v5365 = vmul.f32 %v5334, 1.442695
    %v5366 = vpow.pop %v5365
    %v5367 = vsub.f32 %v5336, 1.0
    %v5368 = vsub.f32 %v5338, 1.0
    %v5369 = vsub.f32 %v5340, 1.0
    %v5370 = vsub.f32 %v5342, 1.0
    %v5371 = vsub.f32 %v5344, 1.0
    %v5372 = vsub.f32 %v5346, 1.0
    %v5373 = vsub.f32 %v5348, 1.0
    %v5374 = vsub.f32 %v5350, 1.0
    %v5375 = vsub.f32 %v5352, 1.0
    %v5376 = vsub.f32 %v5354, 1.0
    %v5377 = vsub.f32 %v5356, 1.0
    %v5378 = vsub.f32 %v5358, 1.0
    %v5379 = vsub.f32 %v5360, 1.0
    %v5380 = vsub.f32 %v5362, 1.0
    %v5381 = vsub.f32 %v5364, 1.0
    %v5382 = vsub.f32 %v5366, 1.0
    %v5383 = vsel %vm5303, %v5241, %v5367
    %v5384 = vsel %vm5304, %v5244, %v5368
    %v5385 = vsel %vm5305, %v5249, %v5369
    %v5386 = vsel %vm5306, %v5252, %v5370
    %v5387 = vsel %vm5307, %v5257, %v5371
    %v5388 = vsel %vm5308, %v5260, %v5372
    %v5389 = vsel %vm5309, %v5265, %v5373
    %v5390 = vsel %vm5310, %v5268, %v5374
    %v5391 = vsel %vm5311, %v5273, %v5375
    %v5392 = vsel %vm5312, %v5276, %v5376
    %v5393 = vsel %vm5313, %v5281, %v5377
    %v5394 = vsel %vm5314, %v5284, %v5378
    %v5395 = vsel %vm5315, %v5289, %v5379
    %v5396 = vsel %vm5316, %v5292, %v5380
    %v5397 = vsel %vm5317, %v5297, %v5381
    %v5398 = vsel %vm5318, %v5300, %v5382
    %v5399 = vpack.c.bf16 %v5384, %v5383
    %v5400 = vpack.c.bf16 %v5386, %v5385
    %v5401 = vpack.c.bf16 %v5388, %v5387
    %v5402 = vpack.c.bf16 %v5390, %v5389
    %v5403 = vpack.c.bf16 %v5392, %v5391
    %v5404 = vpack.c.bf16 %v5394, %v5393
    %v5405 = vpack.c.bf16 %v5396, %v5395
    %v5406 = vpack.c.bf16 %v5398, %v5397
    %v5407 = vld [vmem:[#allocation9] sm:$0xf]
    %v5408 = vld [vmem:[#allocation9 + $0x4] sm:$0xf]
    %v5409 = vld [vmem:[#allocation9 + $0x8] sm:$0xf]
    %v5410 = vld [vmem:[#allocation9 + $0xc] sm:$0xf]
    %v5411 = vld [vmem:[#allocation9 + $0x10] sm:$0xf]
    %v5412 = vld [vmem:[#allocation9 + $0x14] sm:$0xf]
    %v5413 = vld [vmem:[#allocation9 + $0x18] sm:$0xf]
    %v5414 = vld [vmem:[#allocation9 + $0x1c] sm:$0xf]
    %v5415 = vld [vmem:[#allocation9 + $0x20] sm:$0xf]
    %v5416 = vld [vmem:[#allocation9 + $0x24] sm:$0xf]
    %v5417 = vld [vmem:[#allocation9 + $0x28] sm:$0xf]
    %v5418 = vld [vmem:[#allocation9 + $0x2c] sm:$0xf]
    %v5419 = vld [vmem:[#allocation9 + $0x30] sm:$0xf]
    %v5420 = vld [vmem:[#allocation9 + $0x34] sm:$0xf]
    %v5421 = vld [vmem:[#allocation9 + $0x38] sm:$0xf]
    %v5422 = vld [vmem:[#allocation9 + $0x3c] sm:$0xf]
    %v5423 = vld [vmem:[#allocation9 + $0x40] sm:$0xf]
    %v5424 = vld [vmem:[#allocation9 + $0x44] sm:$0xf]
    %v5425 = vld [vmem:[#allocation9 + $0x48] sm:$0xf]
    %v5426 = vld [vmem:[#allocation9 + $0x4c] sm:$0xf]
    %v5427 = vld [vmem:[#allocation9 + $0x50] sm:$0xf]
    %v5428 = vld [vmem:[#allocation9 + $0x54] sm:$0xf]
    %v5429 = vld [vmem:[#allocation9 + $0x58] sm:$0xf]
    %v5430 = vld [vmem:[#allocation9 + $0x5c] sm:$0xf]
    %v5431 = vld [vmem:[#allocation9 + $0x60] sm:$0xf]
    %v5432 = vld [vmem:[#allocation9 + $0x64] sm:$0xf]
    %v5433 = vld [vmem:[#allocation9 + $0x68] sm:$0xf]
    %v5434 = vld [vmem:[#allocation9 + $0x6c] sm:$0xf]
    %v5435 = vld [vmem:[#allocation9 + $0x70] sm:$0xf]
    %v5436 = vld [vmem:[#allocation9 + $0x74] sm:$0xf]
    %v5437 = vld [vmem:[#allocation9 + $0x78] sm:$0xf]
    %v5438 = vld [vmem:[#allocation9 + $0x7c] sm:$0xf]
    %v5471 = vunpack.c.l.b16 %v5407
    %v5472 = vunpack.c.l.b16 %v5408
    %v5473 = vunpack.c.l.b16 %v5409
    %v5474 = vunpack.c.l.b16 %v5410
    %v5475 = vunpack.c.l.b16 %v5411
    %v5476 = vunpack.c.l.b16 %v5412
    %v5477 = vunpack.c.l.b16 %v5413
    %v5478 = vunpack.c.l.b16 %v5414
    %v5479 = vunpack.c.l.b16 %v5415
    %v5480 = vunpack.c.l.b16 %v5416
    %v5481 = vunpack.c.l.b16 %v5417
    %v5482 = vunpack.c.l.b16 %v5418
    %v5483 = vunpack.c.l.b16 %v5419
    %v5484 = vunpack.c.l.b16 %v5420
    %v5485 = vunpack.c.l.b16 %v5421
    %v5486 = vunpack.c.l.b16 %v5422
    %v5487 = vunpack.c.l.b16 %v5423
    %v5488 = vunpack.c.l.b16 %v5424
    %v5489 = vunpack.c.l.b16 %v5425
    %v5490 = vunpack.c.l.b16 %v5426
    %v5491 = vunpack.c.l.b16 %v5427
    %v5492 = vunpack.c.l.b16 %v5428
    %v5493 = vunpack.c.l.b16 %v5429
    %v5494 = vunpack.c.l.b16 %v5430
    %v5495 = vunpack.c.l.b16 %v5431
    %v5496 = vunpack.c.l.b16 %v5432
    %v5497 = vunpack.c.l.b16 %v5433
    %v5498 = vunpack.c.l.b16 %v5434
    %v5499 = vunpack.c.l.b16 %v5435
    %v5500 = vunpack.c.l.b16 %v5436
    %v5501 = vunpack.c.l.b16 %v5437
    %v5502 = vunpack.c.l.b16 %v5438
    %v5503 = vpack.c.b16 %v5472, %v5471
    %v5504 = vpack.c.b16 %v5474, %v5473
    %v5505 = vpack.c.b16 %v5476, %v5475
    %v5506 = vpack.c.b16 %v5478, %v5477
    %v5507 = vpack.c.b16 %v5480, %v5479
    %v5508 = vpack.c.b16 %v5482, %v5481
    %v5509 = vpack.c.b16 %v5484, %v5483
    %v5510 = vpack.c.b16 %v5486, %v5485
    %v5511 = vpack.c.b16 %v5488, %v5487
    %v5512 = vpack.c.b16 %v5490, %v5489
    %v5513 = vpack.c.b16 %v5492, %v5491
    %v5514 = vpack.c.b16 %v5494, %v5493
    %v5515 = vpack.c.b16 %v5496, %v5495
    %v5516 = vpack.c.b16 %v5498, %v5497
    %v5517 = vpack.c.b16 %v5500, %v5499
    %v5518 = vpack.c.b16 %v5502, %v5501
    %5535 = vmatprep.subr.bf16.mxu0 0
    %5536 = vmatpush1.bf16.msra.mxu0 %v5503
    %5537 = vmatprep.subr.bf16.mxu0 0
    %5538 = vmatpush1.bf16.msra.mxu0 %v5504
    %5539 = vmatprep.subr.bf16.mxu0 0
    %5540 = vmatpush1.bf16.msra.mxu0 %v5505
    %5541 = vmatprep.subr.bf16.mxu0 0
    %5542 = vmatpush1.bf16.msra.mxu0 %v5506
    %5543 = vmatprep.subr.bf16.mxu0 0
    %5544 = vmatpush1.bf16.msra.mxu0 %v5507
    %5545 = vmatprep.subr.bf16.mxu0 0
    %5546 = vmatpush1.bf16.msra.mxu0 %v5508
    %5547 = vmatprep.subr.bf16.mxu0 0
    %5548 = vmatpush1.bf16.msra.mxu0 %v5509
    %5549 = vmatprep.subr.bf16.mxu0 0
    %5550 = vmatpush1.bf16.msra.mxu0 %v5510
    %5551 = vmatprep.subr.bf16.mxu0 0
    %5552 = vmatpush1.bf16.msra.mxu0 %v5511
    %5553 = vmatprep.subr.bf16.mxu0 0
    %5554 = vmatpush1.bf16.msra.mxu0 %v5512
    %5555 = vmatprep.subr.bf16.mxu0 0
    %5556 = vmatpush1.bf16.msra.mxu0 %v5513
    %5557 = vmatprep.subr.bf16.mxu0 0
    %5558 = vmatpush1.bf16.msra.mxu0 %v5514
    %5559 = vmatprep.subr.bf16.mxu0 0
    %5560 = vmatpush1.bf16.msra.mxu0 %v5515
    %5561 = vmatprep.subr.bf16.mxu0 0
    %5562 = vmatpush1.bf16.msra.mxu0 %v5516
    %5563 = vmatprep.subr.bf16.mxu0 0
    %5564 = vmatpush1.bf16.msra.mxu0 %v5517
    %5565 = vmatprep.subr.bf16.mxu0 0
    %5566 = vmatpush1.bf16.msra.mxu0 %v5518
    %5567 = vmatprep.mubr.bf16.mxu0 %v5399
    %5568 = vmatmul.mubr.bf16.gmra.mrb[0].mxu0 %v3815
    %v5569 = vpop.f32.mrb[0].mxu0
    %v5570 = vadd.f32 0.0, %v5569
    %v5571 = vpop.f32.mrb[0].mxu0
    %v5572 = vpop.f32.mrb[0].mxu0
    %v5573 = vadd.f32 0.0, %v5572
    %v5574 = vpop.f32.mrb[0].mxu0
    %5575 = vmatprep.mubr.bf16.mxu0 %v5400
    %5576 = vmatmul.mubr.bf16.gmra.mrb[0].mxu0 %v3816
    %v5577 = vpop.f32.mrb[0].mxu0
    %v5578 = vadd.f32 0.0, %v5577
    %v5579 = vpop.f32.mrb[0].mxu0
    %v5580 = vpop.f32.mrb[0].mxu0
    %v5581 = vadd.f32 0.0, %v5580
    %v5582 = vpop.f32.mrb[0].mxu0
    %5583 = vmatprep.mubr.bf16.mxu0 %v5401
    %5584 = vmatmul.mubr.bf16.gmra.mrb[0].mxu0 %v3817
    %v5585 = vpop.f32.mrb[0].mxu0
    %v5586 = vadd.f32 0.0, %v5585
    %v5587 = vpop.f32.mrb[0].mxu0
    %v5588 = vpop.f32.mrb[0].mxu0
    %v5589 = vadd.f32 0.0, %v5588
    %v5590 = vpop.f32.mrb[0].mxu0
    %5591 = vmatprep.mubr.bf16.mxu0 %v5402
    %5592 = vmatmul.mubr.bf16.gmra.mrb[0].mxu0 %v3818
    %v5593 = vpop.f32.mrb[0].mxu0
    %v5594 = vadd.f32 0.0, %v5593
    %v5595 = vpop.f32.mrb[0].mxu0
    %v5596 = vpop.f32.mrb[0].mxu0
    %v5597 = vadd.f32 0.0, %v5596
    %v5598 = vpop.f32.mrb[0].mxu0
    %5599 = vmatprep.mubr.bf16.mxu0 %v5403
    %5600 = vmatmul.mubr.bf16.gmra.mrb[0].mxu0 %v3819
    %v5601 = vpop.f32.mrb[0].mxu0
    %v5602 = vadd.f32 0.0, %v5601
    %v5603 = vpop.f32.mrb[0].mxu0
    %v5604 = vpop.f32.mrb[0].mxu0
    %v5605 = vadd.f32 0.0, %v5604
    %v5606 = vpop.f32.mrb[0].mxu0
    %5607 = vmatprep.mubr.bf16.mxu0 %v5404
    %5608 = vmatmul.mubr.bf16.gmra.mrb[0].mxu0 %v3820
    %v5609 = vpop.f32.mrb[0].mxu0
    %v5610 = vadd.f32 0.0, %v5609
    %v5611 = vpop.f32.mrb[0].mxu0
    %v5612 = vpop.f32.mrb[0].mxu0
    %v5613 = vadd.f32 0.0, %v5612
    %v5614 = vpop.f32.mrb[0].mxu0
    %5615 = vmatprep.mubr.bf16.mxu0 %v5405
    %5616 = vmatmul.mubr.bf16.gmra.mrb[0].mxu0 %v3821
    %v5617 = vpop.f32.mrb[0].mxu0
    %v5618 = vadd.f32 0.0, %v5617
    %v5619 = vpop.f32.mrb[0].mxu0
    %v5620 = vpop.f32.mrb[0].mxu0
    %v5621 = vadd.f32 0.0, %v5620
    %v5622 = vpop.f32.mrb[0].mxu0
    %5623 = vmatprep.mubr.bf16.mxu0 %v5406
    %5624 = vmatmul.mubr.bf16.gmra.mrb[0].mxu0 %v3822
    %v5625 = vpop.f32.mrb[0].mxu0
    %v5626 = vadd.f32 0.0, %v5625
    %v5627 = vpop.f32.mrb[0].mxu0
    %v5628 = vpop.f32.mrb[0].mxu0
    %v5629 = vadd.f32 0.0, %v5628
    %v5630 = vpop.f32.mrb[0].mxu0
    %5631 = vdwg.mxu0
    %v5632 = vadd.f32 %v1688, %v5570
    %v5633 = vadd.f32 %v1691, %v5573
    %v5634 = vadd.f32 %v1696, %v5578
    %v5635 = vadd.f32 %v1699, %v5581
    %v5636 = vadd.f32 %v1704, %v5586
    %v5637 = vadd.f32 %v1707, %v5589
    %v5638 = vadd.f32 %v1712, %v5594
    %v5639 = vadd.f32 %v1715, %v5597
    %v5640 = vadd.f32 %v1720, %v5602
    %v5641 = vadd.f32 %v1723, %v5605
    %v5642 = vadd.f32 %v1728, %v5610
    %v5643 = vadd.f32 %v1731, %v5613
    %v5644 = vadd.f32 %v1736, %v5618
    %v5645 = vadd.f32 %v1739, %v5621
    %v5646 = vadd.f32 %v1744, %v5626
    %v5647 = vadd.f32 %v1747, %v5629
    %5648 = vst [vmem:[%s8] sm:$0xff] %v5632
    %5649 = vst [vmem:[%s8 + $0x8] sm:$0xff] %v5633
    %5650 = vst [vmem:[%s8 + $0x10] sm:$0xff] %v5634
    %5651 = vst [vmem:[%s8 + $0x18] sm:$0xff] %v5635
    %5652 = vst [vmem:[%s8 + $0x20] sm:$0xff] %v5636
    %5653 = vst [vmem:[%s8 + $0x28] sm:$0xff] %v5637
    %5654 = vst [vmem:[%s8 + $0x30] sm:$0xff] %v5638
    %5655 = vst [vmem:[%s8 + $0x38] sm:$0xff] %v5639
    %5656 = vst [vmem:[%s8 + $0x40] sm:$0xff] %v5640
    %5657 = vst [vmem:[%s8 + $0x48] sm:$0xff] %v5641
    %5658 = vst [vmem:[%s8 + $0x50] sm:$0xff] %v5642
    %5659 = vst [vmem:[%s8 + $0x58] sm:$0xff] %v5643
    %5660 = vst [vmem:[%s8 + $0x60] sm:$0xff] %v5644
    %5661 = vst [vmem:[%s8 + $0x68] sm:$0xff] %v5645
    %5662 = vst [vmem:[%s8 + $0x70] sm:$0xff] %v5646
    %5663 = vst [vmem:[%s8 + $0x78] sm:$0xff] %v5647
    // Predicated region
    $region54: #{_lambda_.1} parent=1 // pred_check
      _
    $region55: #{_lambda_.1} parent=1 // pred_check_branch
      %5665 = sbr.rel (0) target = $region57
    $region56: #{_lambda_.1} parent=1 // pred_region
      _
    $region57: #{_lambda_.1} parent=1 // pred_fallthru
      _
    // Predicated region
    $region58: #{_lambda_.1} parent=1 // pred_check
      _
    $region59: #{_lambda_.1} parent=1 // pred_check_branch
      %5667 = sbr.rel (0) target = $region61
    $region60: #{_lambda_.1} parent=1 // pred_region
      _
    $region61: #{_lambda_.1} parent=1 // pred_fallthru
      _
    %5668 = vsyncpa [#allocation3], 1
    %5669 = vsyncpa [#allocation5], 1
    %5670 = vsyncpa [#allocation8], 1

</llo_original>
